<compile_context>
chip_gen: v5e
topology: v5e:2x2
jax: 0.10.0
libtpu: 0.0.40
codegen_flags: <defaults>
</compile_context>

<pallas_src>
import functools
import math

import jax
import jax.numpy as jnp
from jax.experimental import pallas as pl
from jax.experimental.pallas import tpu as pltpu


MXU_DTYPE = jnp.bfloat16     # matmul input dtype (f32 accumulation kept)
ACC_DTYPE = jnp.float32      # accumulation / softmax / LayerNorm dtype
WGT_DTYPE = jnp.bfloat16     # weights + mask bias as stored in HBM
ACT_DTYPE = jnp.bfloat16     # inter-kernel activations in HBM


# ----------------------------------------------------------------------------
# Device-dependent tuning + optional single-buffering of constant operands
# ----------------------------------------------------------------------------
@functools.lru_cache(maxsize=1)
def _device_tuning():
    """(vmem_limit_bytes, row_tile) per TPU generation."""
    try:
        kind = jax.devices()[0].device_kind.lower()
    except Exception:
        kind = ""
    if "v5" in kind or "v6" in kind:          # 128 MiB physical VMEM
        return 96 * 1024 * 1024, 512
    return 32 * 1024 * 1024, 256              # v7x (64 MiB) and fallback


def _cparams(grid_len):
    vmem, _ = _device_tuning()
    return pltpu.CompilerParams(
        dimension_semantics=("parallel",) * grid_len,
        vmem_limit_bytes=vmem)


@functools.lru_cache(maxsize=1)
def _const_pipeline_mode():
    """pl.Buffered(1) for never-changing blocks, if the runtime supports it.

    Probed eagerly (outside jit) with a tiny kernel; falls back to the default
    double-buffering if the kwarg / buffer count is rejected.
    """
    if not hasattr(pl, "Buffered"):
        return None
    try:
        def _copy(x_ref, o_ref):
            o_ref[...] = x_ref[...]
        probe = pl.pallas_call(
            _copy,
            out_shape=jax.ShapeDtypeStruct((16, 128), jnp.float32),
            grid=(2,),
            in_specs=[pl.BlockSpec((8, 128), lambda i: (0, 0),
                                   pipeline_mode=pl.Buffered(1))],
            out_specs=pl.BlockSpec((8, 128), lambda i: (i, 0)),
        )
        jax.block_until_ready(probe(jnp.zeros((8, 128), jnp.float32)))
        return pl.Buffered(1)
    except Exception:
        return None


def _const_spec(shape):
    """BlockSpec for an operand whose block never changes across grid steps."""
    nd = len(shape)
    idx = lambda *_: (0,) * nd
    mode = _const_pipeline_mode()
    if mode is None:
        return pl.BlockSpec(shape, idx)
    return pl.BlockSpec(shape, idx, pipeline_mode=mode)


def _batch_tile(batch, max_tile=8):
    for bb in range(min(batch, max_tile), 0, -1):
        if batch % bb == 0:
            return bb
    return 1


def _layernorm(x, gamma, beta):
    """Row-wise LayerNorm in f32, eps=1e-5 (PyTorch default). x:(M,N)."""
    mu = jnp.mean(x, axis=-1, keepdims=True)
    xc = x - mu
    var = jnp.mean(xc * xc, axis=-1, keepdims=True)
    return xc * jax.lax.rsqrt(var + 1e-5) * gamma + beta


# ----------------------------------------------------------------------------
# Kernel 1: encoder Linear(T*F -> H) + positional-encoding add
#           (row-tiled over M = B*N, lane-dense output)
# ----------------------------------------------------------------------------
def _encoder_kernel(x_ref, w_ref, b_ref, pe_ref, o_ref):
    acc = jnp.dot(x_ref[...], w_ref[...], preferred_element_type=ACC_DTYPE)
    acc = acc + b_ref[...].astype(ACC_DTYPE) + pe_ref[...].astype(ACC_DTYPE)
    o_ref[...] = acc.astype(o_ref.dtype)


def encode(x2, w, b, pe):
    """x2:(M,K) bf16, w:(K,H) bf16, b:(H,) f32, pe:(M,H) bf16 -> (M,H) bf16."""
    M, K = x2.shape
    H = w.shape[1]
    _, tile_m = _device_tuning()
    tm = M if M <= tile_m else tile_m
    return pl.pallas_call(
        _encoder_kernel,
        out_shape=jax.ShapeDtypeStruct((M, H), ACT_DTYPE),
        grid=(pl.cdiv(M, tm),),
        in_specs=[
            pl.BlockSpec((tm, K), lambda i: (i, 0)),
            _const_spec((K, H)),
            _const_spec((1, H)),
            pl.BlockSpec((tm, H), lambda i: (i, 0)),
        ],
        out_specs=pl.BlockSpec((tm, H), lambda i: (i, 0)),
        compiler_params=_cparams(1),
    )(x2, w, b.reshape(1, H), pe)


# ----------------------------------------------------------------------------
# Kernel 2: one fused transformer layer (grid over batch tiles)
#   QKV proj -> masked MHSA (per-head, out-proj accumulated) -> LayerNorm
#   -> FFN(H,2H)+ReLU -> FFN(2H,H) -> LayerNorm [-> decoder for last layer]
# ----------------------------------------------------------------------------
def _layer_kernel(x_ref, wqkv_ref, bqkv_ref, wo_ref, bo_ref, g1_ref, bl1_ref,
                  bias_ref, w1_ref, b1_ref, w2_ref, b2_ref, g2_ref, bl2_ref,
                  *rest, num_heads, scale, has_decoder):
    if has_decoder:
        dw_ref, db_ref, o_ref = rest
    else:
        (o_ref,) = rest

    bb, n, hdim = x_ref.shape
    dh = hdim // num_heads
    rows = bb * n

    # ---- fused QKV projection over all Bb*N rows (single (H,3H) matmul) ----
    x = x_ref[...].reshape(rows, hdim)                              # bf16
    qkv = jnp.dot(x, wqkv_ref[...], preferred_element_type=ACC_DTYPE)
    qkv = qkv + bqkv_ref[...].astype(ACC_DTYPE)                     # (rows,3H)
    qkv3 = qkv.reshape(bb, n, 3 * hdim)

    bias = bias_ref[...].astype(ACC_DTYPE)                          # (N,N)
    wo = wo_ref[...]                                                # (H,H) bf16

    # ---- per-head attention; out-projection accumulated (no concat) --------
    # TODO(synk): head lane-slices are 128-aligned only when dh % 128 == 0
    # (true for realistic H/num_heads); tiny demo dh keeps correctness but
    # underfills the MXU on the QK^T contraction.
    attn = jnp.zeros((rows, hdim), ACC_DTYPE)
    for h in range(num_heads):
        qh = qkv3[:, :, h * dh:(h + 1) * dh].astype(MXU_DTYPE)
        kh = qkv3[:, :, hdim + h * dh:hdim + (h + 1) * dh].astype(MXU_DTYPE)
        vh = qkv3[:, :, 2 * hdim + h * dh:2 * hdim + (h + 1) * dh].astype(MXU_DTYPE)
        s = jnp.einsum("bqd,bkd->bqk", qh, kh,
                       preferred_element_type=ACC_DTYPE) * scale    # (Bb,N,N)
        s = s + bias[None, :, :]                                    # additive mask
        m = jnp.max(s, axis=-1, keepdims=True)
        p = jnp.exp(s - m)
        p = p * pl.reciprocal(jnp.sum(p, axis=-1, keepdims=True), approx=True)
        oh = jnp.einsum("bqk,bkd->bqd", p.astype(MXU_DTYPE), vh,
                        preferred_element_type=ACC_DTYPE)           # (Bb,N,dh)
        attn = attn + jnp.dot(oh.reshape(rows, dh).astype(MXU_DTYPE),
                              wo[h * dh:(h + 1) * dh, :],
                              preferred_element_type=ACC_DTYPE)
    attn = attn + bo_ref[...].astype(ACC_DTYPE)
    # attention_dropout: identity in eval mode
    y1 = _layernorm(attn, g1_ref[...].astype(ACC_DTYPE),
                    bl1_ref[...].astype(ACC_DTYPE))

    # ---- FFN: Linear(H,2H)+ReLU -> Linear(2H,H) -> LayerNorm (in VMEM) -----
    h1 = jnp.dot(y1.astype(MXU_DTYPE), w1_ref[...],
                 preferred_element_type=ACC_DTYPE) + b1_ref[...].astype(ACC_DTYPE)
    h1 = jnp.maximum(h1, 0.0)
    h2 = jnp.dot(h1.astype(MXU_DTYPE), w2_ref[...],
                 preferred_element_type=ACC_DTYPE) + b2_ref[...].astype(ACC_DTYPE)
    y2 = _layernorm(h2, g2_ref[...].astype(ACC_DTYPE),
                    bl2_ref[...].astype(ACC_DTYPE))

    if has_decoder:
        out = jnp.dot(y2.astype(MXU_DTYPE), dw_ref[...],
                      preferred_element_type=ACC_DTYPE) + db_ref[...].astype(ACC_DTYPE)
        o_ref[...] = out.reshape(bb, n, -1).astype(o_ref.dtype)
    else:
        o_ref[...] = y2.reshape(bb, n, hdim).astype(o_ref.dtype)


def layer_block(x, lp, mask_bias, *, num_heads, dec_w=None, dec_b=None):
    """One fused transformer layer. x:(B,N,H) bf16 -> (B,N,H) bf16, or, when
    dec_w is given (last layer), -> (B,N,H//window) f32."""
    B, N, H = x.shape
    H2 = lp["ff1_w"].shape[1]
    bb = _batch_tile(B)
    scale = 1.0 / math.sqrt(H // num_heads)
    has_dec = dec_w is not None
    Ho = dec_w.shape[1] if has_dec else H
    out_dtype = jnp.float32 if has_dec else ACT_DTYPE

    in_specs = [
        pl.BlockSpec((bb, N, H), lambda i: (i, 0, 0)),
        _const_spec((H, 3 * H)),
        _const_spec((1, 3 * H)),
        _const_spec((H, H)),
        _const_spec((1, H)),
        _const_spec((1, H)),
        _const_spec((1, H)),
        _const_spec((N, N)),
        _const_spec((H, H2)),
        _const_spec((1, H2)),
        _const_spec((H2, H)),
        _const_spec((1, H)),
        _const_spec((1, H)),
        _const_spec((1, H)),
    ]
    args = [x, lp["wqkv"], lp["bqkv"].reshape(1, 3 * H), lp["wo"],
            lp["bo"].reshape(1, H), lp["ln1_g"].reshape(1, H),
            lp["ln1_b"].reshape(1, H), mask_bias,
            lp["ff1_w"], lp["ff1_b"].reshape(1, H2), lp["ff2_w"],
            lp["ff2_b"].reshape(1, H), lp["ln2_g"].reshape(1, H),
            lp["ln2_b"].reshape(1, H)]
    if has_dec:
        in_specs += [_const_spec((H, Ho)), _const_spec((1, Ho))]
        args += [dec_w, dec_b.reshape(1, Ho)]

    kernel = functools.partial(_layer_kernel, num_heads=num_heads,
                               scale=scale, has_decoder=has_dec)
    # TODO(synk): for very large N, flash-style query tiling (grid=(B, N//TQ))
    # would be needed to keep the (N,N) scores inside v7x's 64 MiB VMEM.
    return pl.pallas_call(
        kernel,
        out_shape=jax.ShapeDtypeStruct((B, N, Ho), out_dtype),
        grid=(B // bb,),
        in_specs=in_specs,
        out_specs=pl.BlockSpec((bb, N, Ho), lambda i: (i, 0, 0)),
        compiler_params=_cparams(1),
    )(*args)


# ----------------------------------------------------------------------------
# Parameter construction (deterministic, PyTorch-Linear-style uniform init)
# ----------------------------------------------------------------------------
def _linear_params(key, fan_in, fan_out):
    bound = 1.0 / math.sqrt(fan_in)
    kw, kb = jax.random.split(key)
    w = jax.random.uniform(kw, (fan_in, fan_out), jnp.float32, -bound, bound)
    b = jax.random.uniform(kb, (fan_out,), jnp.float32, -bound, bound)
    return w.astype(WGT_DTYPE), b                    # weights bf16, bias f32


def make_params(key, *, input_size, hidden_size, window, num_heads, num_layers):
    d_in = input_size * window
    keys = jax.random.split(key, 2 + 6 * num_layers)
    params = {}
    params["enc_w"], params["enc_b"] = _linear_params(keys[0], d_in, hidden_size)
    params["dec_w"], params["dec_b"] = _linear_params(
        keys[1], hidden_size, hidden_size // window)
    layers = []
    for l in range(num_layers):
        k = keys[2 + 6 * l: 2 + 6 * (l + 1)]
        lp = {}
        wq, bq = _linear_params(k[0], hidden_size, hidden_size)
        wk, bk = _linear_params(k[1], hidden_size, hidden_size)
        wv, bv = _linear_params(k[2], hidden_size, hidden_size)
        # fused QKV projection: single (H, 3H) bf16 weight / (3H,) f32 bias
        lp["wqkv"] = jnp.concatenate([wq, wk, wv], axis=1)
        lp["bqkv"] = jnp.concatenate([bq, bk, bv], axis=0)
        lp["wo"], lp["bo"] = _linear_params(k[3], hidden_size, hidden_size)
        lp["ff1_w"], lp["ff1_b"] = _linear_params(k[4], hidden_size, 2 * hidden_size)
        lp["ff2_w"], lp["ff2_b"] = _linear_params(k[5], 2 * hidden_size, hidden_size)
        lp["ln1_g"] = jnp.ones((hidden_size,), jnp.float32)
        lp["ln1_b"] = jnp.zeros((hidden_size,), jnp.float32)
        lp["ln2_g"] = jnp.ones((hidden_size,), jnp.float32)
        lp["ln2_b"] = jnp.zeros((hidden_size,), jnp.float32)
        layers.append(lp)
    params["layers"] = layers
    return params


def sinusoidal_pe(length, d_model):
    """Standard sinusoidal positional encoding, shape (length, d_model)."""
    position = jnp.arange(length, dtype=jnp.float32)[:, None]
    div_term = jnp.exp(jnp.arange(0, d_model, 2, dtype=jnp.float32)
                       * (-math.log(10000.0) / d_model))
    ang = position * div_term
    pe = jnp.zeros((length, d_model), dtype=jnp.float32)
    pe = pe.at[:, 0::2].set(jnp.sin(ang))
    pe = pe.at[:, 1::2].set(jnp.cos(ang))
    return pe


# ----------------------------------------------------------------------------
# Forward pass
# ----------------------------------------------------------------------------
def spatio_temporal_transformer_forward(params, x, edge_index, edge_weight,
                                        *, num_heads, window):
    b, t, n, f = x.shape
    assert t == window
    hidden = params["enc_w"].shape[1]

    # (B,T,N,F) -> (B*N, T*F) in bf16; everything downstream stays in a
    # (batch, node, hidden) layout so no per-layer head-split transposes.
    x2 = jnp.transpose(x, (0, 2, 1, 3)).reshape(b * n, t * f).astype(ACT_DTYPE)

    # positional encoding over the node axis, row-replicated to B*N rows so
    # the encoder kernel sees a lane/row-dense (tile_m, H) PE slab.
    pe = jnp.tile(sinusoidal_pe(n, hidden), (b, 1)).astype(ACT_DTYPE)

    # fused encoder Linear(T*F -> H) + PE add (row-tiled over B*N)
    h = encode(x2, params["enc_w"], params["enc_b"], pe).reshape(b, n, hidden)

    # dense adjacency from COO edges; additive attention bias (constant over
    # layers/heads), -1e30 where attention is forbidden; stored in bf16.
    adj = jnp.zeros((n, n), jnp.float32).at[edge_index[0], edge_index[1]].add(
        edge_weight.astype(jnp.float32))
    mask_bias = jnp.where(adj == 0.0, -1e30, 0.0).astype(WGT_DTYPE)
    # TODO(synk): rows with no edges get a uniform softmax rather than
    # PyTorch's NaN from masked_fill(-inf).

    n_layers = len(params["layers"])
    for li, lp in enumerate(params["layers"]):
        last = li == n_layers - 1
        # One fused pallas_call per layer (attention + LN + FFN + LN, plus the
        # decoder Linear(H, H//window) fused into the LAST layer).
        h = layer_block(h, lp, mask_bias, num_heads=num_heads,
                        dec_w=params["dec_w"] if last else None,
                        dec_b=params["dec_b"] if last else None)
        # Dropout layers: identity in eval mode.
    return h            # (B, N, hidden // window), f32


# ----------------------------------------------------------------------------
if __name__ == "__main__":
    # Small, shape-consistent configuration:
    #   input_size (F) = 4, window (T) = 8, nodes (N) = 16, batch (B) = 2
    #   hidden_size = input_size * window = 32, heads = 8, layers = 1
    B, T, N, F_ = 2, 8, 16, 4
    HIDDEN, HEADS, LAYERS = 32, 8, 1

    key = jax.random.PRNGKey(0)
    kx, kp = jax.random.split(key)

    x = jax.random.normal(kx, (B, T, N, F_), dtype=jnp.float32)

    # ring graph + self loops (guarantees every attention row has >=1 edge)
    idx = jnp.arange(N)
    src = jnp.concatenate([idx, idx, idx])
    dst = jnp.concatenate([idx, (idx + 1) % N, (idx - 1) % N])
    edge_index = jnp.stack([src, dst], axis=0).astype(jnp.int32)
    edge_weight = jnp.ones((edge_index.shape[1],), jnp.float32)

    params = make_params(kp, input_size=F_, hidden_size=HIDDEN, window=T,
                         num_heads=HEADS, num_layers=LAYERS)

    # Probe Buffered(1) support eagerly (outside jit) so tracing only reads
    # the cached result.
    _const_pipeline_mode()

    fwd = jax.jit(functools.partial(spatio_temporal_transformer_forward,
                                    num_heads=HEADS, window=T))
    out = jax.block_until_ready(fwd(params, x, edge_index, edge_weight))

    assert out.shape == (B, N, HIDDEN // T), out.shape
    assert bool(jnp.all(jnp.isfinite(out)))
    print("KERNEL_OK")
</pallas_src>

<mosaic_0001>
module attributes {stable_mosaic.version = 11 : i64} {
  func.func @_copy(%arg0: i32, %arg1: memref<8x128xf32, #tpu.memory_space<vmem>>, %arg2: memref<8x128xf32, #tpu.memory_space<vmem>>) attributes {dimension_semantics = [#tpu.dimension_semantics<arbitrary>], iteration_bounds = array<i64: 2>, scalar_prefetch = 0 : i64, scratch_operands = 0 : i64, tpu.core_type = #tpu.core_type<tc>, window_params = [{pipeline_mode = #tpu.pipeline_mode<synchronous>, transform_indices = @transform_0, window_bounds = array<i64: 8, 128>}, {transform_indices = @transform_1, window_bounds = array<i64: 8, 128>}]} {
    %c0 = arith.constant 0 : index
    %c0_0 = arith.constant 0 : index
    %0 = vector.load %arg1[%c0, %c0_0] : memref<8x128xf32, #tpu.memory_space<vmem>>, vector<8x128xf32>
    %c0_1 = arith.constant 0 : index
    %c0_2 = arith.constant 0 : index
    %1 = vector.load %arg2[%c0_1, %c0_2] : memref<8x128xf32, #tpu.memory_space<vmem>>, vector<8x128xf32>
    tpu.vector_store %arg2[%c0_1, %c0_2], %0 {strides = array<i32>} : memref<8x128xf32, #tpu.memory_space<vmem>>, vector<8x128xf32>,
    return
  }
  func.func @transform_0(%arg0: i32) -> (i32, i32) {
    %c0_i32 = arith.constant 0 : i32
    %c0_i32_0 = arith.constant 0 : i32
    %c0_i32_1 = arith.constant 0 : i32
    return %c0_i32, %c0_i32_0 : i32, i32
  }
  func.func @transform_1(%arg0: i32) -> (i32, i32) {
    %c0_i32 = arith.constant 0 : i32
    %c0_i32_0 = arith.constant 0 : i32
    return %arg0, %c0_i32 : i32, i32
  }
}

module attributes {stable_mosaic.version = 11 : i64} {
  func.func @_encoder_kernel(%arg0: i32, %arg1: memref<32x32xbf16, #tpu.memory_space<vmem>>, %arg2: memref<32x32xbf16, #tpu.memory_space<vmem>>, %arg3: memref<1x32xf32, #tpu.memory_space<vmem>>, %arg4: memref<32x32xbf16, #tpu.memory_space<vmem>>, %arg5: memref<32x32xbf16, #tpu.memory_space<vmem>>) attributes {dimension_semantics = [#tpu.dimension_semantics<parallel>], iteration_bounds = array<i64: 1>, scalar_prefetch = 0 : i64, scratch_operands = 0 : i64, tpu.core_type = #tpu.core_type<tc>, window_params = [{transform_indices = @transform_0, window_bounds = array<i64: 32, 32>}, {pipeline_mode = #tpu.pipeline_mode<synchronous>, transform_indices = @transform_1, window_bounds = array<i64: 32, 32>}, {pipeline_mode = #tpu.pipeline_mode<synchronous>, transform_indices = @transform_2, window_bounds = array<i64: 1, 32>}, {transform_indices = @transform_3, window_bounds = array<i64: 32, 32>}, {transform_indices = @transform_4, window_bounds = array<i64: 32, 32>}]} {
    %c0 = arith.constant 0 : index
    %c0_0 = arith.constant 0 : index
    %0 = vector.load %arg1[%c0, %c0_0] : memref<32x32xbf16, #tpu.memory_space<vmem>>, vector<32x32xbf16>
    %c0_1 = arith.constant 0 : index
    %c0_2 = arith.constant 0 : index
    %1 = vector.load %arg2[%c0_1, %c0_2] : memref<32x32xbf16, #tpu.memory_space<vmem>>, vector<32x32xbf16>
    %cst = arith.constant dense<0.000000e+00> : vector<32x32xf32>
    %2 = tpu.matmul %0, %1, %cst {dimension_numbers = #tpu.dot_dimension_numbers<[1], [0], [0], [1], [0, 0, 1, 1], [], []>} : vector<32x32xbf16>, vector<32x32xbf16>, vector<32x32xf32> -> vector<32x32xf32>
    %c0_3 = arith.constant 0 : index
    %c0_4 = arith.constant 0 : index
    %3 = vector.load %arg3[%c0_3, %c0_4] : memref<1x32xf32, #tpu.memory_space<vmem>>, vector<1x32xf32>
    %4 = vector.broadcast %3 : vector<1x32xf32> to vector<32x32xf32>
    %5 = arith.addf %2, %4 : vector<32x32xf32>
    %c0_5 = arith.constant 0 : index
    %c0_6 = arith.constant 0 : index
    %6 = vector.load %arg4[%c0_5, %c0_6] : memref<32x32xbf16, #tpu.memory_space<vmem>>, vector<32x32xbf16>
    %7 = arith.extf %6 : vector<32x32xbf16> to vector<32x32xf32>
    %8 = arith.addf %5, %7 : vector<32x32xf32>
    %9 = arith.truncf %8 : vector<32x32xf32> to vector<32x32xbf16>
    %c0_7 = arith.constant 0 : index
    %c0_8 = arith.constant 0 : index
    %10 = vector.load %arg5[%c0_7, %c0_8] : memref<32x32xbf16, #tpu.memory_space<vmem>>, vector<32x32xbf16>
    tpu.vector_store %arg5[%c0_7, %c0_8], %9 {strides = array<i32>} : memref<32x32xbf16, #tpu.memory_space<vmem>>, vector<32x32xbf16>,
    return
  }
  func.func @transform_0(%arg0: i32) -> (i32, i32) {
    %c0_i32 = arith.constant 0 : i32
    %c0_i32_0 = arith.constant 0 : i32
    return %arg0, %c0_i32 : i32, i32
  }
  func.func @transform_1(%arg0: i32) -> (i32, i32) {
    %c0_i32 = arith.constant 0 : i32
    %c0_i32_0 = arith.constant 0 : i32
    %c0_i32_1 = arith.constant 0 : i32
    return %c0_i32, %c0_i32_0 : i32, i32
  }
  func.func @transform_2(%arg0: i32) -> (i32, i32) {
    %c0_i32 = arith.constant 0 : i32
    %c0_i32_0 = arith.constant 0 : i32
    %c0_i32_1 = arith.constant 0 : i32
    return %c0_i32, %c0_i32_0 : i32, i32
  }
  func.func @transform_3(%arg0: i32) -> (i32, i32) {
    %c0_i32 = arith.constant 0 : i32
    %c0_i32_0 = arith.constant 0 : i32
    return %arg0, %c0_i32 : i32, i32
  }
  func.func @transform_4(%arg0: i32) -> (i32, i32) {
    %c0_i32 = arith.constant 0 : i32
    %c0_i32_0 = arith.constant 0 : i32
    return %arg0, %c0_i32 : i32, i32
  }
}

module attributes {stable_mosaic.version = 11 : i64} {
  func.func @_layer_kernel(%arg0: i32, %arg1: memref<2x16x32xbf16, #tpu.memory_space<vmem>>, %arg2: memref<32x96xbf16, #tpu.memory_space<vmem>>, %arg3: memref<1x96xf32, #tpu.memory_space<vmem>>, %arg4: memref<32x32xbf16, #tpu.memory_space<vmem>>, %arg5: memref<1x32xf32, #tpu.memory_space<vmem>>, %arg6: memref<1x32xf32, #tpu.memory_space<vmem>>, %arg7: memref<1x32xf32, #tpu.memory_space<vmem>>, %arg8: memref<16x16xbf16, #tpu.memory_space<vmem>>, %arg9: memref<32x64xbf16, #tpu.memory_space<vmem>>, %arg10: memref<1x64xf32, #tpu.memory_space<vmem>>, %arg11: memref<64x32xbf16, #tpu.memory_space<vmem>>, %arg12: memref<1x32xf32, #tpu.memory_space<vmem>>, %arg13: memref<1x32xf32, #tpu.memory_space<vmem>>, %arg14: memref<1x32xf32, #tpu.memory_space<vmem>>, %arg15: memref<32x4xbf16, #tpu.memory_space<vmem>>, %arg16: memref<1x4xf32, #tpu.memory_space<vmem>>, %arg17: memref<2x16x4xf32, #tpu.memory_space<vmem>>) attributes {dimension_semantics = [#tpu.dimension_semantics<parallel>], iteration_bounds = array<i64: 1>, scalar_prefetch = 0 : i64, scratch_operands = 0 : i64, tpu.core_type = #tpu.core_type<tc>, window_params = [{transform_indices = @transform_0, window_bounds = array<i64: 2, 16, 32>}, {pipeline_mode = #tpu.pipeline_mode<synchronous>, transform_indices = @transform_1, window_bounds = array<i64: 32, 96>}, {pipeline_mode = #tpu.pipeline_mode<synchronous>, transform_indices = @transform_2, window_bounds = array<i64: 1, 96>}, {pipeline_mode = #tpu.pipeline_mode<synchronous>, transform_indices = @transform_3, window_bounds = array<i64: 32, 32>}, {pipeline_mode = #tpu.pipeline_mode<synchronous>, transform_indices = @transform_4, window_bounds = array<i64: 1, 32>}, {pipeline_mode = #tpu.pipeline_mode<synchronous>, transform_indices = @transform_5, window_bounds = array<i64: 1, 32>}, {pipeline_mode = #tpu.pipeline_mode<synchronous>, transform_indices = @transform_6, window_bounds = array<i64: 1, 32>}, {pipeline_mode = #tpu.pipeline_mode<synchronous>, transform_indices = @transform_7, window_bounds = array<i64: 16, 16>}, {pipeline_mode = #tpu.pipeline_mode<synchronous>, transform_indices = @transform_8, window_bounds = array<i64: 32, 64>}, {pipeline_mode = #tpu.pipeline_mode<synchronous>, transform_indices = @transform_9, window_bounds = array<i64: 1, 64>}, {pipeline_mode = #tpu.pipeline_mode<synchronous>, transform_indices = @transform_10, window_bounds = array<i64: 64, 32>}, {pipeline_mode = #tpu.pipeline_mode<synchronous>, transform_indices = @transform_11, window_bounds = array<i64: 1, 32>}, {pipeline_mode = #tpu.pipeline_mode<synchronous>, transform_indices = @transform_12, window_bounds = array<i64: 1, 32>}, {pipeline_mode = #tpu.pipeline_mode<synchronous>, transform_indices = @transform_13, window_bounds = array<i64: 1, 32>}, {pipeline_mode = #tpu.pipeline_mode<synchronous>, transform_indices = @transform_14, window_bounds = array<i64: 32, 4>}, {pipeline_mode = #tpu.pipeline_mode<synchronous>, transform_indices = @transform_15, window_bounds = array<i64: 1, 4>}, {transform_indices = @transform_16, window_bounds = array<i64: 2, 16, 4>}]} {
    %c0 = arith.constant 0 : index
    %c0_0 = arith.constant 0 : index
    %c0_1 = arith.constant 0 : index
    %0 = vector.load %arg1[%c0, %c0_0, %c0_1] : memref<2x16x32xbf16, #tpu.memory_space<vmem>>, vector<2x16x32xbf16>
    %1 = vector.shape_cast %0 : vector<2x16x32xbf16> to vector<32x32xbf16>
    %c0_2 = arith.constant 0 : index
    %c0_3 = arith.constant 0 : index
    %2 = vector.load %arg2[%c0_2, %c0_3] : memref<32x96xbf16, #tpu.memory_space<vmem>>, vector<32x96xbf16>
    %cst = arith.constant dense<0.000000e+00> : vector<32x96xf32>
    %3 = tpu.matmul %1, %2, %cst {dimension_numbers = #tpu.dot_dimension_numbers<[1], [0], [0], [1], [0, 0, 1, 1], [], []>} : vector<32x32xbf16>, vector<32x96xbf16>, vector<32x96xf32> -> vector<32x96xf32>
    %c0_4 = arith.constant 0 : index
    %c0_5 = arith.constant 0 : index
    %4 = vector.load %arg3[%c0_4, %c0_5] : memref<1x96xf32, #tpu.memory_space<vmem>>, vector<1x96xf32>
    %5 = vector.broadcast %4 : vector<1x96xf32> to vector<32x96xf32>
    %6 = arith.addf %3, %5 : vector<32x96xf32>
    %7 = vector.shape_cast %6 : vector<32x96xf32> to vector<2x16x96xf32>
    %c0_6 = arith.constant 0 : index
    %c0_7 = arith.constant 0 : index
    %8 = vector.load %arg8[%c0_6, %c0_7] : memref<16x16xbf16, #tpu.memory_space<vmem>>, vector<16x16xbf16>
    %9 = arith.extf %8 : vector<16x16xbf16> to vector<16x16xf32>
    %c0_8 = arith.constant 0 : index
    %c0_9 = arith.constant 0 : index
    %10 = vector.load %arg4[%c0_8, %c0_9] : memref<32x32xbf16, #tpu.memory_space<vmem>>, vector<32x32xbf16>
    %cst_10 = arith.constant 0.000000e+00 : f32
    %11 = vector.broadcast %cst_10 : f32 to vector<32x32xf32>
    %12 = vector.extract_strided_slice %7 {offsets = [0, 0, 0], sizes = [2, 16, 4], strides = [1, 1, 1]} : vector<2x16x96xf32> to vector<2x16x4xf32>
    %13 = arith.truncf %12 : vector<2x16x4xf32> to vector<2x16x4xbf16>
    %14 = vector.extract_strided_slice %7 {offsets = [0, 0, 32], sizes = [2, 16, 4], strides = [1, 1, 1]} : vector<2x16x96xf32> to vector<2x16x4xf32>
    %15 = arith.truncf %14 : vector<2x16x4xf32> to vector<2x16x4xbf16>
    %16 = vector.extract_strided_slice %7 {offsets = [0, 0, 64], sizes = [2, 16, 4], strides = [1, 1, 1]} : vector<2x16x96xf32> to vector<2x16x4xf32>
    %17 = arith.truncf %16 : vector<2x16x4xf32> to vector<2x16x4xbf16>
    "tpu.trace_start"() <{level = 10 : i32, message = "bqd,bkd->bqk"}> : () -> ()
    %cst_11 = arith.constant dense<0.000000e+00> : vector<2x16x16xf32>
    %18 = tpu.matmul %13, %15, %cst_11 {dimension_numbers = #tpu.dot_dimension_numbers<[2], [2], [1], [1], [0, 0, 0, 1, 1, 1], [0], [0]>} : vector<2x16x4xbf16>, vector<2x16x4xbf16>, vector<2x16x16xf32> -> vector<2x16x16xf32>
    "tpu.trace_stop"() : () -> ()
    %cst_12 = arith.constant 5.000000e-01 : f32
    %19 = vector.broadcast %cst_12 : f32 to vector<2x16x16xf32>
    %20 = arith.mulf %18, %19 : vector<2x16x16xf32>
    %21 = vector.shape_cast %9 : vector<16x16xf32> to vector<1x16x16xf32>
    %22 = vector.broadcast %21 : vector<1x16x16xf32> to vector<2x16x16xf32>
    %23 = arith.addf %20, %22 : vector<2x16x16xf32>
    %cst_13 = arith.constant dense<0xFF800000> : vector<2x16xf32>
    %24 = vector.multi_reduction <maximumf>, %23, %cst_13 [2] : vector<2x16x16xf32> to vector<2x16xf32>
    %25 = vector.shape_cast %24 : vector<2x16xf32> to vector<2x16x1xf32>
    %26 = vector.broadcast %25 : vector<2x16x1xf32> to vector<2x16x16xf32>
    %27 = arith.subf %23, %26 : vector<2x16x16xf32>
    %28 = math.exp %27 : vector<2x16x16xf32>
    %cst_14 = arith.constant dense<0.000000e+00> : vector<2x16xf32>
    %29 = vector.multi_reduction <add>, %28, %cst_14 [2] : vector<2x16x16xf32> to vector<2x16xf32>
    %30 = vector.shape_cast %29 : vector<2x16xf32> to vector<2x16x1xf32>
    %31 = tpu.reciprocal %30 {approx = true} : vector<2x16x1xf32> -> vector<2x16x1xf32>
    %32 = vector.broadcast %31 : vector<2x16x1xf32> to vector<2x16x16xf32>
    %33 = arith.mulf %28, %32 : vector<2x16x16xf32>
    %34 = arith.truncf %33 : vector<2x16x16xf32> to vector<2x16x16xbf16>
    "tpu.trace_start"() <{level = 10 : i32, message = "bqk,bkd->bqd"}> : () -> ()
    %cst_15 = arith.constant dense<0.000000e+00> : vector<2x16x4xf32>
    %35 = tpu.matmul %34, %17, %cst_15 {dimension_numbers = #tpu.dot_dimension_numbers<[2], [1], [1], [2], [0, 0, 0, 1, 1, 2], [0], [0]>} : vector<2x16x16xbf16>, vector<2x16x4xbf16>, vector<2x16x4xf32> -> vector<2x16x4xf32>
    "tpu.trace_stop"() : () -> ()
    %36 = vector.shape_cast %35 : vector<2x16x4xf32> to vector<32x4xf32>
    %37 = arith.truncf %36 : vector<32x4xf32> to vector<32x4xbf16>
    %38 = vector.extract_strided_slice %10 {offsets = [0, 0], sizes = [4, 32], strides = [1, 1]} : vector<32x32xbf16> to vector<4x32xbf16>
    %cst_16 = arith.constant dense<0.000000e+00> : vector<32x32xf32>
    %39 = tpu.matmul %37, %38, %cst_16 {dimension_numbers = #tpu.dot_dimension_numbers<[1], [0], [0], [1], [0, 0, 1, 1], [], []>} : vector<32x4xbf16>, vector<4x32xbf16>, vector<32x32xf32> -> vector<32x32xf32>
    %40 = arith.addf %11, %39 : vector<32x32xf32>
    %41 = vector.extract_strided_slice %7 {offsets = [0, 0, 4], sizes = [2, 16, 4], strides = [1, 1, 1]} : vector<2x16x96xf32> to vector<2x16x4xf32>
    %42 = arith.truncf %41 : vector<2x16x4xf32> to vector<2x16x4xbf16>
    %43 = vector.extract_strided_slice %7 {offsets = [0, 0, 36], sizes = [2, 16, 4], strides = [1, 1, 1]} : vector<2x16x96xf32> to vector<2x16x4xf32>
    %44 = arith.truncf %43 : vector<2x16x4xf32> to vector<2x16x4xbf16>
    %45 = vector.extract_strided_slice %7 {offsets = [0, 0, 68], sizes = [2, 16, 4], strides = [1, 1, 1]} : vector<2x16x96xf32> to vector<2x16x4xf32>
    %46 = arith.truncf %45 : vector<2x16x4xf32> to vector<2x16x4xbf16>
    "tpu.trace_start"() <{level = 10 : i32, message = "bqd,bkd->bqk"}> : () -> ()
    %cst_17 = arith.constant dense<0.000000e+00> : vector<2x16x16xf32>
    %47 = tpu.matmul %42, %44, %cst_17 {dimension_numbers = #tpu.dot_dimension_numbers<[2], [2], [1], [1], [0, 0, 0, 1, 1, 1], [0], [0]>} : vector<2x16x4xbf16>, vector<2x16x4xbf16>, vector<2x16x16xf32> -> vector<2x16x16xf32>
    "tpu.trace_stop"() : () -> ()
    %cst_18 = arith.constant 5.000000e-01 : f32
    %48 = vector.broadcast %cst_18 : f32 to vector<2x16x16xf32>
    %49 = arith.mulf %47, %48 : vector<2x16x16xf32>
    %50 = vector.shape_cast %9 : vector<16x16xf32> to vector<1x16x16xf32>
    %51 = vector.broadcast %50 : vector<1x16x16xf32> to vector<2x16x16xf32>
    %52 = arith.addf %49, %51 : vector<2x16x16xf32>
    %cst_19 = arith.constant dense<0xFF800000> : vector<2x16xf32>
    %53 = vector.multi_reduction <maximumf>, %52, %cst_19 [2] : vector<2x16x16xf32> to vector<2x16xf32>
    %54 = vector.shape_cast %53 : vector<2x16xf32> to vector<2x16x1xf32>
    %55 = vector.broadcast %54 : vector<2x16x1xf32> to vector<2x16x16xf32>
    %56 = arith.subf %52, %55 : vector<2x16x16xf32>
    %57 = math.exp %56 : vector<2x16x16xf32>
    %cst_20 = arith.constant dense<0.000000e+00> : vector<2x16xf32>
    %58 = vector.multi_reduction <add>, %57, %cst_20 [2] : vector<2x16x16xf32> to vector<2x16xf32>
    %59 = vector.shape_cast %58 : vector<2x16xf32> to vector<2x16x1xf32>
    %60 = tpu.reciprocal %59 {approx = true} : vector<2x16x1xf32> -> vector<2x16x1xf32>
    %61 = vector.broadcast %60 : vector<2x16x1xf32> to vector<2x16x16xf32>
    %62 = arith.mulf %57, %61 : vector<2x16x16xf32>
    %63 = arith.truncf %62 : vector<2x16x16xf32> to vector<2x16x16xbf16>
    "tpu.trace_start"() <{level = 10 : i32, message = "bqk,bkd->bqd"}> : () -> ()
    %cst_21 = arith.constant dense<0.000000e+00> : vector<2x16x4xf32>
    %64 = tpu.matmul %63, %46, %cst_21 {dimension_numbers = #tpu.dot_dimension_numbers<[2], [1], [1], [2], [0, 0, 0, 1, 1, 2], [0], [0]>} : vector<2x16x16xbf16>, vector<2x16x4xbf16>, vector<2x16x4xf32> -> vector<2x16x4xf32>
    "tpu.trace_stop"() : () -> ()
    %65 = vector.shape_cast %64 : vector<2x16x4xf32> to vector<32x4xf32>
    %66 = arith.truncf %65 : vector<32x4xf32> to vector<32x4xbf16>
    %67 = vector.extract_strided_slice %10 {offsets = [4, 0], sizes = [4, 32], strides = [1, 1]} : vector<32x32xbf16> to vector<4x32xbf16>
    %cst_22 = arith.constant dense<0.000000e+00> : vector<32x32xf32>
    %68 = tpu.matmul %66, %67, %cst_22 {dimension_numbers = #tpu.dot_dimension_numbers<[1], [0], [0], [1], [0, 0, 1, 1], [], []>} : vector<32x4xbf16>, vector<4x32xbf16>, vector<32x32xf32> -> vector<32x32xf32>
    %69 = arith.addf %40, %68 : vector<32x32xf32>
    %70 = vector.extract_strided_slice %7 {offsets = [0, 0, 8], sizes = [2, 16, 4], strides = [1, 1, 1]} : vector<2x16x96xf32> to vector<2x16x4xf32>
    %71 = arith.truncf %70 : vector<2x16x4xf32> to vector<2x16x4xbf16>
    %72 = vector.extract_strided_slice %7 {offsets = [0, 0, 40], sizes = [2, 16, 4], strides = [1, 1, 1]} : vector<2x16x96xf32> to vector<2x16x4xf32>
    %73 = arith.truncf %72 : vector<2x16x4xf32> to vector<2x16x4xbf16>
    %74 = vector.extract_strided_slice %7 {offsets = [0, 0, 72], sizes = [2, 16, 4], strides = [1, 1, 1]} : vector<2x16x96xf32> to vector<2x16x4xf32>
    %75 = arith.truncf %74 : vector<2x16x4xf32> to vector<2x16x4xbf16>
    "tpu.trace_start"() <{level = 10 : i32, message = "bqd,bkd->bqk"}> : () -> ()
    %cst_23 = arith.constant dense<0.000000e+00> : vector<2x16x16xf32>
    %76 = tpu.matmul %71, %73, %cst_23 {dimension_numbers = #tpu.dot_dimension_numbers<[2], [2], [1], [1], [0, 0, 0, 1, 1, 1], [0], [0]>} : vector<2x16x4xbf16>, vector<2x16x4xbf16>, vector<2x16x16xf32> -> vector<2x16x16xf32>
    "tpu.trace_stop"() : () -> ()
    %cst_24 = arith.constant 5.000000e-01 : f32
    %77 = vector.broadcast %cst_24 : f32 to vector<2x16x16xf32>
    %78 = arith.mulf %76, %77 : vector<2x16x16xf32>
    %79 = vector.shape_cast %9 : vector<16x16xf32> to vector<1x16x16xf32>
    %80 = vector.broadcast %79 : vector<1x16x16xf32> to vector<2x16x16xf32>
    %81 = arith.addf %78, %80 : vector<2x16x16xf32>
    %cst_25 = arith.constant dense<0xFF800000> : vector<2x16xf32>
    %82 = vector.multi_reduction <maximumf>, %81, %cst_25 [2] : vector<2x16x16xf32> to vector<2x16xf32>
    %83 = vector.shape_cast %82 : vector<2x16xf32> to vector<2x16x1xf32>
    %84 = vector.broadcast %83 : vector<2x16x1xf32> to vector<2x16x16xf32>
    %85 = arith.subf %81, %84 : vector<2x16x16xf32>
    %86 = math.exp %85 : vector<2x16x16xf32>
    %cst_26 = arith.constant dense<0.000000e+00> : vector<2x16xf32>
    %87 = vector.multi_reduction <add>, %86, %cst_26 [2] : vector<2x16x16xf32> to vector<2x16xf32>
    %88 = vector.shape_cast %87 : vector<2x16xf32> to vector<2x16x1xf32>
    %89 = tpu.reciprocal %88 {approx = true} : vector<2x16x1xf32> -> vector<2x16x1xf32>
    %90 = vector.broadcast %89 : vector<2x16x1xf32> to vector<2x16x16xf32>
    %91 = arith.mulf %86, %90 : vector<2x16x16xf32>
    %92 = arith.truncf %91 : vector<2x16x16xf32> to vector<2x16x16xbf16>
    "tpu.trace_start"() <{level = 10 : i32, message = "bqk,bkd->bqd"}> : () -> ()
    %cst_27 = arith.constant dense<0.000000e+00> : vector<2x16x4xf32>
    %93 = tpu.matmul %92, %75, %cst_27 {dimension_numbers = #tpu.dot_dimension_numbers<[2], [1], [1], [2], [0, 0, 0, 1, 1, 2], [0], [0]>} : vector<2x16x16xbf16>, vector<2x16x4xbf16>, vector<2x16x4xf32> -> vector<2x16x4xf32>
    "tpu.trace_stop"() : () -> ()
    %94 = vector.shape_cast %93 : vector<2x16x4xf32> to vector<32x4xf32>
    %95 = arith.truncf %94 : vector<32x4xf32> to vector<32x4xbf16>
    %96 = vector.extract_strided_slice %10 {offsets = [8, 0], sizes = [4, 32], strides = [1, 1]} : vector<32x32xbf16> to vector<4x32xbf16>
    %cst_28 = arith.constant dense<0.000000e+00> : vector<32x32xf32>
    %97 = tpu.matmul %95, %96, %cst_28 {dimension_numbers = #tpu.dot_dimension_numbers<[1], [0], [0], [1], [0, 0, 1, 1], [], []>} : vector<32x4xbf16>, vector<4x32xbf16>, vector<32x32xf32> -> vector<32x32xf32>
    %98 = arith.addf %69, %97 : vector<32x32xf32>
    %99 = vector.extract_strided_slice %7 {offsets = [0, 0, 12], sizes = [2, 16, 4], strides = [1, 1, 1]} : vector<2x16x96xf32> to vector<2x16x4xf32>
    %100 = arith.truncf %99 : vector<2x16x4xf32> to vector<2x16x4xbf16>
    %101 = vector.extract_strided_slice %7 {offsets = [0, 0, 44], sizes = [2, 16, 4], strides = [1, 1, 1]} : vector<2x16x96xf32> to vector<2x16x4xf32>
    %102 = arith.truncf %101 : vector<2x16x4xf32> to vector<2x16x4xbf16>
    %103 = vector.extract_strided_slice %7 {offsets = [0, 0, 76], sizes = [2, 16, 4], strides = [1, 1, 1]} : vector<2x16x96xf32> to vector<2x16x4xf32>
    %104 = arith.truncf %103 : vector<2x16x4xf32> to vector<2x16x4xbf16>
    "tpu.trace_start"() <{level = 10 : i32, message = "bqd,bkd->bqk"}> : () -> ()
    %cst_29 = arith.constant dense<0.000000e+00> : vector<2x16x16xf32>
    %105 = tpu.matmul %100, %102, %cst_29 {dimension_numbers = #tpu.dot_dimension_numbers<[2], [2], [1], [1], [0, 0, 0, 1, 1, 1], [0], [0]>} : vector<2x16x4xbf16>, vector<2x16x4xbf16>, vector<2x16x16xf32> -> vector<2x16x16xf32>
    "tpu.trace_stop"() : () -> ()
    %cst_30 = arith.constant 5.000000e-01 : f32
    %106 = vector.broadcast %cst_30 : f32 to vector<2x16x16xf32>
    %107 = arith.mulf %105, %106 : vector<2x16x16xf32>
    %108 = vector.shape_cast %9 : vector<16x16xf32> to vector<1x16x16xf32>
    %109 = vector.broadcast %108 : vector<1x16x16xf32> to vector<2x16x16xf32>
    %110 = arith.addf %107, %109 : vector<2x16x16xf32>
    %cst_31 = arith.constant dense<0xFF800000> : vector<2x16xf32>
    %111 = vector.multi_reduction <maximumf>, %110, %cst_31 [2] : vector<2x16x16xf32> to vector<2x16xf32>
    %112 = vector.shape_cast %111 : vector<2x16xf32> to vector<2x16x1xf32>
    %113 = vector.broadcast %112 : vector<2x16x1xf32> to vector<2x16x16xf32>
    %114 = arith.subf %110, %113 : vector<2x16x16xf32>
    %115 = math.exp %114 : vector<2x16x16xf32>
    %cst_32 = arith.constant dense<0.000000e+00> : vector<2x16xf32>
    %116 = vector.multi_reduction <add>, %115, %cst_32 [2] : vector<2x16x16xf32> to vector<2x16xf32>
    %117 = vector.shape_cast %116 : vector<2x16xf32> to vector<2x16x1xf32>
    %118 = tpu.reciprocal %117 {approx = true} : vector<2x16x1xf32> -> vector<2x16x1xf32>
    %119 = vector.broadcast %118 : vector<2x16x1xf32> to vector<2x16x16xf32>
    %120 = arith.mulf %115, %119 : vector<2x16x16xf32>
    %121 = arith.truncf %120 : vector<2x16x16xf32> to vector<2x16x16xbf16>
    "tpu.trace_start"() <{level = 10 : i32, message = "bqk,bkd->bqd"}> : () -> ()
    %cst_33 = arith.constant dense<0.000000e+00> : vector<2x16x4xf32>
    %122 = tpu.matmul %121, %104, %cst_33 {dimension_numbers = #tpu.dot_dimension_numbers<[2], [1], [1], [2], [0, 0, 0, 1, 1, 2], [0], [0]>} : vector<2x16x16xbf16>, vector<2x16x4xbf16>, vector<2x16x4xf32> -> vector<2x16x4xf32>
    "tpu.trace_stop"() : () -> ()
    %123 = vector.shape_cast %122 : vector<2x16x4xf32> to vector<32x4xf32>
    %124 = arith.truncf %123 : vector<32x4xf32> to vector<32x4xbf16>
    %125 = vector.extract_strided_slice %10 {offsets = [12, 0], sizes = [4, 32], strides = [1, 1]} : vector<32x32xbf16> to vector<4x32xbf16>
    %cst_34 = arith.constant dense<0.000000e+00> : vector<32x32xf32>
    %126 = tpu.matmul %124, %125, %cst_34 {dimension_numbers = #tpu.dot_dimension_numbers<[1], [0], [0], [1], [0, 0, 1, 1], [], []>} : vector<32x4xbf16>, vector<4x32xbf16>, vector<32x32xf32> -> vector<32x32xf32>
    %127 = arith.addf %98, %126 : vector<32x32xf32>
    %128 = vector.extract_strided_slice %7 {offsets = [0, 0, 16], sizes = [2, 16, 4], strides = [1, 1, 1]} : vector<2x16x96xf32> to vector<2x16x4xf32>
    %129 = arith.truncf %128 : vector<2x16x4xf32> to vector<2x16x4xbf16>
    %130 = vector.extract_strided_slice %7 {offsets = [0, 0, 48], sizes = [2, 16, 4], strides = [1, 1, 1]} : vector<2x16x96xf32> to vector<2x16x4xf32>
    %131 = arith.truncf %130 : vector<2x16x4xf32> to vector<2x16x4xbf16>
    %132 = vector.extract_strided_slice %7 {offsets = [0, 0, 80], sizes = [2, 16, 4], strides = [1, 1, 1]} : vector<2x16x96xf32> to vector<2x16x4xf32>
    %133 = arith.truncf %132 : vector<2x16x4xf32> to vector<2x16x4xbf16>
    "tpu.trace_start"() <{level = 10 : i32, message = "bqd,bkd->bqk"}> : () -> ()
    %cst_35 = arith.constant dense<0.000000e+00> : vector<2x16x16xf32>
    %134 = tpu.matmul %129, %131, %cst_35 {dimension_numbers = #tpu.dot_dimension_numbers<[2], [2], [1], [1], [0, 0, 0, 1, 1, 1], [0], [0]>} : vector<2x16x4xbf16>, vector<2x16x4xbf16>, vector<2x16x16xf32> -> vector<2x16x16xf32>
    "tpu.trace_stop"() : () -> ()
    %cst_36 = arith.constant 5.000000e-01 : f32
    %135 = vector.broadcast %cst_36 : f32 to vector<2x16x16xf32>
    %136 = arith.mulf %134, %135 : vector<2x16x16xf32>
    %137 = vector.shape_cast %9 : vector<16x16xf32> to vector<1x16x16xf32>
    %138 = vector.broadcast %137 : vector<1x16x16xf32> to vector<2x16x16xf32>
    %139 = arith.addf %136, %138 : vector<2x16x16xf32>
    %cst_37 = arith.constant dense<0xFF800000> : vector<2x16xf32>
    %140 = vector.multi_reduction <maximumf>, %139, %cst_37 [2] : vector<2x16x16xf32> to vector<2x16xf32>
    %141 = vector.shape_cast %140 : vector<2x16xf32> to vector<2x16x1xf32>
    %142 = vector.broadcast %141 : vector<2x16x1xf32> to vector<2x16x16xf32>
    %143 = arith.subf %139, %142 : vector<2x16x16xf32>
    %144 = math.exp %143 : vector<2x16x16xf32>
    %cst_38 = arith.constant dense<0.000000e+00> : vector<2x16xf32>
    %145 = vector.multi_reduction <add>, %144, %cst_38 [2] : vector<2x16x16xf32> to vector<2x16xf32>
    %146 = vector.shape_cast %145 : vector<2x16xf32> to vector<2x16x1xf32>
    %147 = tpu.reciprocal %146 {approx = true} : vector<2x16x1xf32> -> vector<2x16x1xf32>
    %148 = vector.broadcast %147 : vector<2x16x1xf32> to vector<2x16x16xf32>
    %149 = arith.mulf %144, %148 : vector<2x16x16xf32>
    %150 = arith.truncf %149 : vector<2x16x16xf32> to vector<2x16x16xbf16>
    "tpu.trace_start"() <{level = 10 : i32, message = "bqk,bkd->bqd"}> : () -> ()
    %cst_39 = arith.constant dense<0.000000e+00> : vector<2x16x4xf32>
    %151 = tpu.matmul %150, %133, %cst_39 {dimension_numbers = #tpu.dot_dimension_numbers<[2], [1], [1], [2], [0, 0, 0, 1, 1, 2], [0], [0]>} : vector<2x16x16xbf16>, vector<2x16x4xbf16>, vector<2x16x4xf32> -> vector<2x16x4xf32>
    "tpu.trace_stop"() : () -> ()
    %152 = vector.shape_cast %151 : vector<2x16x4xf32> to vector<32x4xf32>
    %153 = arith.truncf %152 : vector<32x4xf32> to vector<32x4xbf16>
    %154 = vector.extract_strided_slice %10 {offsets = [16, 0], sizes = [4, 32], strides = [1, 1]} : vector<32x32xbf16> to vector<4x32xbf16>
    %cst_40 = arith.constant dense<0.000000e+00> : vector<32x32xf32>
    %155 = tpu.matmul %153, %154, %cst_40 {dimension_numbers = #tpu.dot_dimension_numbers<[1], [0], [0], [1], [0, 0, 1, 1], [], []>} : vector<32x4xbf16>, vector<4x32xbf16>, vector<32x32xf32> -> vector<32x32xf32>
    %156 = arith.addf %127, %155 : vector<32x32xf32>
    %157 = vector.extract_strided_slice %7 {offsets = [0, 0, 20], sizes = [2, 16, 4], strides = [1, 1, 1]} : vector<2x16x96xf32> to vector<2x16x4xf32>
    %158 = arith.truncf %157 : vector<2x16x4xf32> to vector<2x16x4xbf16>
    %159 = vector.extract_strided_slice %7 {offsets = [0, 0, 52], sizes = [2, 16, 4], strides = [1, 1, 1]} : vector<2x16x96xf32> to vector<2x16x4xf32>
    %160 = arith.truncf %159 : vector<2x16x4xf32> to vector<2x16x4xbf16>
    %161 = vector.extract_strided_slice %7 {offsets = [0, 0, 84], sizes = [2, 16, 4], strides = [1, 1, 1]} : vector<2x16x96xf32> to vector<2x16x4xf32>
    %162 = arith.truncf %161 : vector<2x16x4xf32> to vector<2x16x4xbf16>
    "tpu.trace_start"() <{level = 10 : i32, message = "bqd,bkd->bqk"}> : () -> ()
    %cst_41 = arith.constant dense<0.000000e+00> : vector<2x16x16xf32>
    %163 = tpu.matmul %158, %160, %cst_41 {dimension_numbers = #tpu.dot_dimension_numbers<[2], [2], [1], [1], [0, 0, 0, 1, 1, 1], [0], [0]>} : vector<2x16x4xbf16>, vector<2x16x4xbf16>, vector<2x16x16xf32> -> vector<2x16x16xf32>
    "tpu.trace_stop"() : () -> ()
    %cst_42 = arith.constant 5.000000e-01 : f32
    %164 = vector.broadcast %cst_42 : f32 to vector<2x16x16xf32>
    %165 = arith.mulf %163, %164 : vector<2x16x16xf32>
    %166 = vector.shape_cast %9 : vector<16x16xf32> to vector<1x16x16xf32>
    %167 = vector.broadcast %166 : vector<1x16x16xf32> to vector<2x16x16xf32>
    %168 = arith.addf %165, %167 : vector<2x16x16xf32>
    %cst_43 = arith.constant dense<0xFF800000> : vector<2x16xf32>
    %169 = vector.multi_reduction <maximumf>, %168, %cst_43 [2] : vector<2x16x16xf32> to vector<2x16xf32>
    %170 = vector.shape_cast %169 : vector<2x16xf32> to vector<2x16x1xf32>
    %171 = vector.broadcast %170 : vector<2x16x1xf32> to vector<2x16x16xf32>
    %172 = arith.subf %168, %171 : vector<2x16x16xf32>
    %173 = math.exp %172 : vector<2x16x16xf32>
    %cst_44 = arith.constant dense<0.000000e+00> : vector<2x16xf32>
    %174 = vector.multi_reduction <add>, %173, %cst_44 [2] : vector<2x16x16xf32> to vector<2x16xf32>
    %175 = vector.shape_cast %174 : vector<2x16xf32> to vector<2x16x1xf32>
    %176 = tpu.reciprocal %175 {approx = true} : vector<2x16x1xf32> -> vector<2x16x1xf32>
    %177 = vector.broadcast %176 : vector<2x16x1xf32> to vector<2x16x16xf32>
    %178 = arith.mulf %173, %177 : vector<2x16x16xf32>
    %179 = arith.truncf %178 : vector<2x16x16xf32> to vector<2x16x16xbf16>
    "tpu.trace_start"() <{level = 10 : i32, message = "bqk,bkd->bqd"}> : () -> ()
    %cst_45 = arith.constant dense<0.000000e+00> : vector<2x16x4xf32>
    %180 = tpu.matmul %179, %162, %cst_45 {dimension_numbers = #tpu.dot_dimension_numbers<[2], [1], [1], [2], [0, 0, 0, 1, 1, 2], [0], [0]>} : vector<2x16x16xbf16>, vector<2x16x4xbf16>, vector<2x16x4xf32> -> vector<2x16x4xf32>
    "tpu.trace_stop"() : () -> ()
    %181 = vector.shape_cast %180 : vector<2x16x4xf32> to vector<32x4xf32>
    %182 = arith.truncf %181 : vector<32x4xf32> to vector<32x4xbf16>
    %183 = vector.extract_strided_slice %10 {offsets = [20, 0], sizes = [4, 32], strides = [1, 1]} : vector<32x32xbf16> to vector<4x32xbf16>
    %cst_46 = arith.constant dense<0.000000e+00> : vector<32x32xf32>
    %184 = tpu.matmul %182, %183, %cst_46 {dimension_numbers = #tpu.dot_dimension_numbers<[1], [0], [0], [1], [0, 0, 1, 1], [], []>} : vector<32x4xbf16>, vector<4x32xbf16>, vector<32x32xf32> -> vector<32x32xf32>
    %185 = arith.addf %156, %184 : vector<32x32xf32>
    %186 = vector.extract_strided_slice %7 {offsets = [0, 0, 24], sizes = [2, 16, 4], strides = [1, 1, 1]} : vector<2x16x96xf32> to vector<2x16x4xf32>
    %187 = arith.truncf %186 : vector<2x16x4xf32> to vector<2x16x4xbf16>
    %188 = vector.extract_strided_slice %7 {offsets = [0, 0, 56], sizes = [2, 16, 4], strides = [1, 1, 1]} : vector<2x16x96xf32> to vector<2x16x4xf32>
    %189 = arith.truncf %188 : vector<2x16x4xf32> to vector<2x16x4xbf16>
    %190 = vector.extract_strided_slice %7 {offsets = [0, 0, 88], sizes = [2, 16, 4], strides = [1, 1, 1]} : vector<2x16x96xf32> to vector<2x16x4xf32>
    %191 = arith.truncf %190 : vector<2x16x4xf32> to vector<2x16x4xbf16>
    "tpu.trace_start"() <{level = 10 : i32, message = "bqd,bkd->bqk"}> : () -> ()
    %cst_47 = arith.constant dense<0.000000e+00> : vector<2x16x16xf32>
    %192 = tpu.matmul %187, %189, %cst_47 {dimension_numbers = #tpu.dot_dimension_numbers<[2], [2], [1], [1], [0, 0, 0, 1, 1, 1], [0], [0]>} : vector<2x16x4xbf16>, vector<2x16x4xbf16>, vector<2x16x16xf32> -> vector<2x16x16xf32>
    "tpu.trace_stop"() : () -> ()
    %cst_48 = arith.constant 5.000000e-01 : f32
    %193 = vector.broadcast %cst_48 : f32 to vector<2x16x16xf32>
    %194 = arith.mulf %192, %193 : vector<2x16x16xf32>
    %195 = vector.shape_cast %9 : vector<16x16xf32> to vector<1x16x16xf32>
    %196 = vector.broadcast %195 : vector<1x16x16xf32> to vector<2x16x16xf32>
    %197 = arith.addf %194, %196 : vector<2x16x16xf32>
    %cst_49 = arith.constant dense<0xFF800000> : vector<2x16xf32>
    %198 = vector.multi_reduction <maximumf>, %197, %cst_49 [2] : vector<2x16x16xf32> to vector<2x16xf32>
    %199 = vector.shape_cast %198 : vector<2x16xf32> to vector<2x16x1xf32>
    %200 = vector.broadcast %199 : vector<2x16x1xf32> to vector<2x16x16xf32>
    %201 = arith.subf %197, %200 : vector<2x16x16xf32>
    %202 = math.exp %201 : vector<2x16x16xf32>
    %cst_50 = arith.constant dense<0.000000e+00> : vector<2x16xf32>
    %203 = vector.multi_reduction <add>, %202, %cst_50 [2] : vector<2x16x16xf32> to vector<2x16xf32>
    %204 = vector.shape_cast %203 : vector<2x16xf32> to vector<2x16x1xf32>
    %205 = tpu.reciprocal %204 {approx = true} : vector<2x16x1xf32> -> vector<2x16x1xf32>
    %206 = vector.broadcast %205 : vector<2x16x1xf32> to vector<2x16x16xf32>
    %207 = arith.mulf %202, %206 : vector<2x16x16xf32>
    %208 = arith.truncf %207 : vector<2x16x16xf32> to vector<2x16x16xbf16>
    "tpu.trace_start"() <{level = 10 : i32, message = "bqk,bkd->bqd"}> : () -> ()
    %cst_51 = arith.constant dense<0.000000e+00> : vector<2x16x4xf32>
    %209 = tpu.matmul %208, %191, %cst_51 {dimension_numbers = #tpu.dot_dimension_numbers<[2], [1], [1], [2], [0, 0, 0, 1, 1, 2], [0], [0]>} : vector<2x16x16xbf16>, vector<2x16x4xbf16>, vector<2x16x4xf32> -> vector<2x16x4xf32>
    "tpu.trace_stop"() : () -> ()
    %210 = vector.shape_cast %209 : vector<2x16x4xf32> to vector<32x4xf32>
    %211 = arith.truncf %210 : vector<32x4xf32> to vector<32x4xbf16>
    %212 = vector.extract_strided_slice %10 {offsets = [24, 0], sizes = [4, 32], strides = [1, 1]} : vector<32x32xbf16> to vector<4x32xbf16>
    %cst_52 = arith.constant dense<0.000000e+00> : vector<32x32xf32>
    %213 = tpu.matmul %211, %212, %cst_52 {dimension_numbers = #tpu.dot_dimension_numbers<[1], [0], [0], [1], [0, 0, 1, 1], [], []>} : vector<32x4xbf16>, vector<4x32xbf16>, vector<32x32xf32> -> vector<32x32xf32>
    %214 = arith.addf %185, %213 : vector<32x32xf32>
    %215 = vector.extract_strided_slice %7 {offsets = [0, 0, 28], sizes = [2, 16, 4], strides = [1, 1, 1]} : vector<2x16x96xf32> to vector<2x16x4xf32>
    %216 = arith.truncf %215 : vector<2x16x4xf32> to vector<2x16x4xbf16>
    %217 = vector.extract_strided_slice %7 {offsets = [0, 0, 60], sizes = [2, 16, 4], strides = [1, 1, 1]} : vector<2x16x96xf32> to vector<2x16x4xf32>
    %218 = arith.truncf %217 : vector<2x16x4xf32> to vector<2x16x4xbf16>
    %219 = vector.extract_strided_slice %7 {offsets = [0, 0, 92], sizes = [2, 16, 4], strides = [1, 1, 1]} : vector<2x16x96xf32> to vector<2x16x4xf32>
    %220 = arith.truncf %219 : vector<2x16x4xf32> to vector<2x16x4xbf16>
    "tpu.trace_start"() <{level = 10 : i32, message = "bqd,bkd->bqk"}> : () -> ()
    %cst_53 = arith.constant dense<0.000000e+00> : vector<2x16x16xf32>
    %221 = tpu.matmul %216, %218, %cst_53 {dimension_numbers = #tpu.dot_dimension_numbers<[2], [2], [1], [1], [0, 0, 0, 1, 1, 1], [0], [0]>} : vector<2x16x4xbf16>, vector<2x16x4xbf16>, vector<2x16x16xf32> -> vector<2x16x16xf32>
    "tpu.trace_stop"() : () -> ()
    %cst_54 = arith.constant 5.000000e-01 : f32
    %222 = vector.broadcast %cst_54 : f32 to vector<2x16x16xf32>
    %223 = arith.mulf %221, %222 : vector<2x16x16xf32>
    %224 = vector.shape_cast %9 : vector<16x16xf32> to vector<1x16x16xf32>
    %225 = vector.broadcast %224 : vector<1x16x16xf32> to vector<2x16x16xf32>
    %226 = arith.addf %223, %225 : vector<2x16x16xf32>
    %cst_55 = arith.constant dense<0xFF800000> : vector<2x16xf32>
    %227 = vector.multi_reduction <maximumf>, %226, %cst_55 [2] : vector<2x16x16xf32> to vector<2x16xf32>
    %228 = vector.shape_cast %227 : vector<2x16xf32> to vector<2x16x1xf32>
    %229 = vector.broadcast %228 : vector<2x16x1xf32> to vector<2x16x16xf32>
    %230 = arith.subf %226, %229 : vector<2x16x16xf32>
    %231 = math.exp %230 : vector<2x16x16xf32>
    %cst_56 = arith.constant dense<0.000000e+00> : vector<2x16xf32>
    %232 = vector.multi_reduction <add>, %231, %cst_56 [2] : vector<2x16x16xf32> to vector<2x16xf32>
    %233 = vector.shape_cast %232 : vector<2x16xf32> to vector<2x16x1xf32>
    %234 = tpu.reciprocal %233 {approx = true} : vector<2x16x1xf32> -> vector<2x16x1xf32>
    %235 = vector.broadcast %234 : vector<2x16x1xf32> to vector<2x16x16xf32>
    %236 = arith.mulf %231, %235 : vector<2x16x16xf32>
    %237 = arith.truncf %236 : vector<2x16x16xf32> to vector<2x16x16xbf16>
    "tpu.trace_start"() <{level = 10 : i32, message = "bqk,bkd->bqd"}> : () -> ()
    %cst_57 = arith.constant dense<0.000000e+00> : vector<2x16x4xf32>
    %238 = tpu.matmul %237, %220, %cst_57 {dimension_numbers = #tpu.dot_dimension_numbers<[2], [1], [1], [2], [0, 0, 0, 1, 1, 2], [0], [0]>} : vector<2x16x16xbf16>, vector<2x16x4xbf16>, vector<2x16x4xf32> -> vector<2x16x4xf32>
    "tpu.trace_stop"() : () -> ()
    %239 = vector.shape_cast %238 : vector<2x16x4xf32> to vector<32x4xf32>
    %240 = arith.truncf %239 : vector<32x4xf32> to vector<32x4xbf16>
    %241 = vector.extract_strided_slice %10 {offsets = [28, 0], sizes = [4, 32], strides = [1, 1]} : vector<32x32xbf16> to vector<4x32xbf16>
    %cst_58 = arith.constant dense<0.000000e+00> : vector<32x32xf32>
    %242 = tpu.matmul %240, %241, %cst_58 {dimension_numbers = #tpu.dot_dimension_numbers<[1], [0], [0], [1], [0, 0, 1, 1], [], []>} : vector<32x4xbf16>, vector<4x32xbf16>, vector<32x32xf32> -> vector<32x32xf32>
    %243 = arith.addf %214, %242 : vector<32x32xf32>
    %c0_59 = arith.constant 0 : index
    %c0_60 = arith.constant 0 : index
    %244 = vector.load %arg5[%c0_59, %c0_60] : memref<1x32xf32, #tpu.memory_space<vmem>>, vector<1x32xf32>
    %245 = vector.broadcast %244 : vector<1x32xf32> to vector<32x32xf32>
    %246 = arith.addf %243, %245 : vector<32x32xf32>
    %c0_61 = arith.constant 0 : index
    %c0_62 = arith.constant 0 : index
    %247 = vector.load %arg6[%c0_61, %c0_62] : memref<1x32xf32, #tpu.memory_space<vmem>>, vector<1x32xf32>
    %c0_63 = arith.constant 0 : index
    %c0_64 = arith.constant 0 : index
    %248 = vector.load %arg7[%c0_63, %c0_64] : memref<1x32xf32, #tpu.memory_space<vmem>>, vector<1x32xf32>
    %cst_65 = arith.constant dense<0.000000e+00> : vector<32xf32>
    %249 = vector.multi_reduction <add>, %246, %cst_65 [1] : vector<32x32xf32> to vector<32xf32>
    %250 = vector.shape_cast %249 : vector<32xf32> to vector<32x1xf32>
    %cst_66 = arith.constant 3.200000e+01 : f32
    %251 = vector.broadcast %cst_66 : f32 to vector<32x1xf32>
    %252 = arith.divf %250, %251 : vector<32x1xf32>
    %253 = vector.broadcast %252 : vector<32x1xf32> to vector<32x32xf32>
    %254 = arith.subf %246, %253 : vector<32x32xf32>
    %255 = arith.mulf %254, %254 : vector<32x32xf32>
    %cst_67 = arith.constant dense<0.000000e+00> : vector<32xf32>
    %256 = vector.multi_reduction <add>, %255, %cst_67 [1] : vector<32x32xf32> to vector<32xf32>
    %257 = vector.shape_cast %256 : vector<32xf32> to vector<32x1xf32>
    %cst_68 = arith.constant 3.200000e+01 : f32
    %258 = vector.broadcast %cst_68 : f32 to vector<32x1xf32>
    %259 = arith.divf %257, %258 : vector<32x1xf32>
    %cst_69 = arith.constant 9.99999974E-6 : f32
    %260 = vector.broadcast %cst_69 : f32 to vector<32x1xf32>
    %261 = arith.addf %259, %260 : vector<32x1xf32>
    %262 = math.rsqrt %261 : vector<32x1xf32>
    %263 = vector.broadcast %262 : vector<32x1xf32> to vector<32x32xf32>
    %264 = arith.mulf %254, %263 : vector<32x32xf32>
    %265 = vector.broadcast %247 : vector<1x32xf32> to vector<32x32xf32>
    %266 = arith.mulf %264, %265 : vector<32x32xf32>
    %267 = vector.broadcast %248 : vector<1x32xf32> to vector<32x32xf32>
    %268 = arith.addf %266, %267 : vector<32x32xf32>
    %269 = arith.truncf %268 : vector<32x32xf32> to vector<32x32xbf16>
    %c0_70 = arith.constant 0 : index
    %c0_71 = arith.constant 0 : index
    %270 = vector.load %arg9[%c0_70, %c0_71] : memref<32x64xbf16, #tpu.memory_space<vmem>>, vector<32x64xbf16>
    %cst_72 = arith.constant dense<0.000000e+00> : vector<32x64xf32>
    %271 = tpu.matmul %269, %270, %cst_72 {dimension_numbers = #tpu.dot_dimension_numbers<[1], [0], [0], [1], [0, 0, 1, 1], [], []>} : vector<32x32xbf16>, vector<32x64xbf16>, vector<32x64xf32> -> vector<32x64xf32>
    %c0_73 = arith.constant 0 : index
    %c0_74 = arith.constant 0 : index
    %272 = vector.load %arg10[%c0_73, %c0_74] : memref<1x64xf32, #tpu.memory_space<vmem>>, vector<1x64xf32>
    %273 = vector.broadcast %272 : vector<1x64xf32> to vector<32x64xf32>
    %274 = arith.addf %271, %273 : vector<32x64xf32>
    %cst_75 = arith.constant 0.000000e+00 : f32
    %275 = vector.broadcast %cst_75 : f32 to vector<32x64xf32>
    %276 = arith.maximumf %274, %275 : vector<32x64xf32>
    %277 = arith.truncf %276 : vector<32x64xf32> to vector<32x64xbf16>
    %c0_76 = arith.constant 0 : index
    %c0_77 = arith.constant 0 : index
    %278 = vector.load %arg11[%c0_76, %c0_77] : memref<64x32xbf16, #tpu.memory_space<vmem>>, vector<64x32xbf16>
    %cst_78 = arith.constant dense<0.000000e+00> : vector<32x32xf32>
    %279 = tpu.matmul %277, %278, %cst_78 {dimension_numbers = #tpu.dot_dimension_numbers<[1], [0], [0], [1], [0, 0, 1, 1], [], []>} : vector<32x64xbf16>, vector<64x32xbf16>, vector<32x32xf32> -> vector<32x32xf32>
    %c0_79 = arith.constant 0 : index
    %c0_80 = arith.constant 0 : index
    %280 = vector.load %arg12[%c0_79, %c0_80] : memref<1x32xf32, #tpu.memory_space<vmem>>, vector<1x32xf32>
    %281 = vector.broadcast %280 : vector<1x32xf32> to vector<32x32xf32>
    %282 = arith.addf %279, %281 : vector<32x32xf32>
    %c0_81 = arith.constant 0 : index
    %c0_82 = arith.constant 0 : index
    %283 = vector.load %arg13[%c0_81, %c0_82] : memref<1x32xf32, #tpu.memory_space<vmem>>, vector<1x32xf32>
    %c0_83 = arith.constant 0 : index
    %c0_84 = arith.constant 0 : index
    %284 = vector.load %arg14[%c0_83, %c0_84] : memref<1x32xf32, #tpu.memory_space<vmem>>, vector<1x32xf32>
    %cst_85 = arith.constant dense<0.000000e+00> : vector<32xf32>
    %285 = vector.multi_reduction <add>, %282, %cst_85 [1] : vector<32x32xf32> to vector<32xf32>
    %286 = vector.shape_cast %285 : vector<32xf32> to vector<32x1xf32>
    %cst_86 = arith.constant 3.200000e+01 : f32
    %287 = vector.broadcast %cst_86 : f32 to vector<32x1xf32>
    %288 = arith.divf %286, %287 : vector<32x1xf32>
    %289 = vector.broadcast %288 : vector<32x1xf32> to vector<32x32xf32>
    %290 = arith.subf %282, %289 : vector<32x32xf32>
    %291 = arith.mulf %290, %290 : vector<32x32xf32>
    %cst_87 = arith.constant dense<0.000000e+00> : vector<32xf32>
    %292 = vector.multi_reduction <add>, %291, %cst_87 [1] : vector<32x32xf32> to vector<32xf32>
    %293 = vector.shape_cast %292 : vector<32xf32> to vector<32x1xf32>
    %cst_88 = arith.constant 3.200000e+01 : f32
    %294 = vector.broadcast %cst_88 : f32 to vector<32x1xf32>
    %295 = arith.divf %293, %294 : vector<32x1xf32>
    %cst_89 = arith.constant 9.99999974E-6 : f32
    %296 = vector.broadcast %cst_89 : f32 to vector<32x1xf32>
    %297 = arith.addf %295, %296 : vector<32x1xf32>
    %298 = math.rsqrt %297 : vector<32x1xf32>
    %299 = vector.broadcast %298 : vector<32x1xf32> to vector<32x32xf32>
    %300 = arith.mulf %290, %299 : vector<32x32xf32>
    %301 = vector.broadcast %283 : vector<1x32xf32> to vector<32x32xf32>
    %302 = arith.mulf %300, %301 : vector<32x32xf32>
    %303 = vector.broadcast %284 : vector<1x32xf32> to vector<32x32xf32>
    %304 = arith.addf %302, %303 : vector<32x32xf32>
    %305 = arith.truncf %304 : vector<32x32xf32> to vector<32x32xbf16>
    %c0_90 = arith.constant 0 : index
    %c0_91 = arith.constant 0 : index
    %306 = vector.load %arg15[%c0_90, %c0_91] : memref<32x4xbf16, #tpu.memory_space<vmem>>, vector<32x4xbf16>
    %cst_92 = arith.constant dense<0.000000e+00> : vector<32x4xf32>
    %307 = tpu.matmul %305, %306, %cst_92 {dimension_numbers = #tpu.dot_dimension_numbers<[1], [0], [0], [1], [0, 0, 1, 1], [], []>} : vector<32x32xbf16>, vector<32x4xbf16>, vector<32x4xf32> -> vector<32x4xf32>
    %c0_93 = arith.constant 0 : index
    %c0_94 = arith.constant 0 : index
    %308 = vector.load %arg16[%c0_93, %c0_94] : memref<1x4xf32, #tpu.memory_space<vmem>>, vector<1x4xf32>
    %309 = vector.broadcast %308 : vector<1x4xf32> to vector<32x4xf32>
    %310 = arith.addf %307, %309 : vector<32x4xf32>
    %311 = vector.shape_cast %310 : vector<32x4xf32> to vector<2x16x4xf32>
    %c0_95 = arith.constant 0 : index
    %c0_96 = arith.constant 0 : index
    %c0_97 = arith.constant 0 : index
    %312 = vector.load %arg17[%c0_95, %c0_96, %c0_97] : memref<2x16x4xf32, #tpu.memory_space<vmem>>, vector<2x16x4xf32>
    tpu.vector_store %arg17[%c0_95, %c0_96, %c0_97], %311 {strides = array<i32>} : memref<2x16x4xf32, #tpu.memory_space<vmem>>, vector<2x16x4xf32>,
    return
  }
  func.func @transform_0(%arg0: i32) -> (i32, i32, i32) {
    %c0_i32 = arith.constant 0 : i32
    %c0_i32_0 = arith.constant 0 : i32
    %c0_i32_1 = arith.constant 0 : i32
    return %arg0, %c0_i32, %c0_i32_0 : i32, i32, i32
  }
  func.func @transform_1(%arg0: i32) -> (i32, i32) {
    %c0_i32 = arith.constant 0 : i32
    %c0_i32_0 = arith.constant 0 : i32
    %c0_i32_1 = arith.constant 0 : i32
    return %c0_i32, %c0_i32_0 : i32, i32
  }
  func.func @transform_2(%arg0: i32) -> (i32, i32) {
    %c0_i32 = arith.constant 0 : i32
    %c0_i32_0 = arith.constant 0 : i32
    %c0_i32_1 = arith.constant 0 : i32
    return %c0_i32, %c0_i32_0 : i32, i32
  }
  func.func @transform_3(%arg0: i32) -> (i32, i32) {
    %c0_i32 = arith.constant 0 : i32
    %c0_i32_0 = arith.constant 0 : i32
    %c0_i32_1 = arith.constant 0 : i32
    return %c0_i32, %c0_i32_0 : i32, i32
  }
  func.func @transform_4(%arg0: i32) -> (i32, i32) {
    %c0_i32 = arith.constant 0 : i32
    %c0_i32_0 = arith.constant 0 : i32
    %c0_i32_1 = arith.constant 0 : i32
    return %c0_i32, %c0_i32_0 : i32, i32
  }
  func.func @transform_5(%arg0: i32) -> (i32, i32) {
    %c0_i32 = arith.constant 0 : i32
    %c0_i32_0 = arith.constant 0 : i32
    %c0_i32_1 = arith.constant 0 : i32
    return %c0_i32, %c0_i32_0 : i32, i32
  }
  func.func @transform_6(%arg0: i32) -> (i32, i32) {
    %c0_i32 = arith.constant 0 : i32
    %c0_i32_0 = arith.constant 0 : i32
    %c0_i32_1 = arith.constant 0 : i32
    return %c0_i32, %c0_i32_0 : i32, i32
  }
  func.func @transform_7(%arg0: i32) -> (i32, i32) {
    %c0_i32 = arith.constant 0 : i32
    %c0_i32_0 = arith.constant 0 : i32
    %c0_i32_1 = arith.constant 0 : i32
    return %c0_i32, %c0_i32_0 : i32, i32
  }
  func.func @transform_8(%arg0: i32) -> (i32, i32) {
    %c0_i32 = arith.constant 0 : i32
    %c0_i32_0 = arith.constant 0 : i32
    %c0_i32_1 = arith.constant 0 : i32
    return %c0_i32, %c0_i32_0 : i32, i32
  }
  func.func @transform_9(%arg0: i32) -> (i32, i32) {
    %c0_i32 = arith.constant 0 : i32
    %c0_i32_0 = arith.constant 0 : i32
    %c0_i32_1 = arith.constant 0 : i32
    return %c0_i32, %c0_i32_0 : i32, i32
  }
  func.func @transform_10(%arg0: i32) -> (i32, i32) {
    %c0_i32 = arith.constant 0 : i32
    %c0_i32_0 = arith.constant 0 : i32
    %c0_i32_1 = arith.constant 0 : i32
    return %c0_i32, %c0_i32_0 : i32, i32
  }
  func.func @transform_11(%arg0: i32) -> (i32, i32) {
    %c0_i32 = arith.constant 0 : i32
    %c0_i32_0 = arith.constant 0 : i32
    %c0_i32_1 = arith.constant 0 : i32
    return %c0_i32, %c0_i32_0 : i32, i32
  }
  func.func @transform_12(%arg0: i32) -> (i32, i32) {
    %c0_i32 = arith.constant 0 : i32
    %c0_i32_0 = arith.constant 0 : i32
    %c0_i32_1 = arith.constant 0 : i32
    return %c0_i32, %c0_i32_0 : i32, i32
  }
  func.func @transform_13(%arg0: i32) -> (i32, i32) {
    %c0_i32 = arith.constant 0 : i32
    %c0_i32_0 = arith.constant 0 : i32
    %c0_i32_1 = arith.constant 0 : i32
    return %c0_i32, %c0_i32_0 : i32, i32
  }
  func.func @transform_14(%arg0: i32) -> (i32, i32) {
    %c0_i32 = arith.constant 0 : i32
    %c0_i32_0 = arith.constant 0 : i32
    %c0_i32_1 = arith.constant 0 : i32
    return %c0_i32, %c0_i32_0 : i32, i32
  }
  func.func @transform_15(%arg0: i32) -> (i32, i32) {
    %c0_i32 = arith.constant 0 : i32
    %c0_i32_0 = arith.constant 0 : i32
    %c0_i32_1 = arith.constant 0 : i32
    return %c0_i32, %c0_i32_0 : i32, i32
  }
  func.func @transform_16(%arg0: i32) -> (i32, i32, i32) {
    %c0_i32 = arith.constant 0 : i32
    %c0_i32_0 = arith.constant 0 : i32
    %c0_i32_1 = arith.constant 0 : i32
    return %arg0, %c0_i32, %c0_i32_0 : i32, i32, i32
  }
}

</mosaic_0001>

<llo_original>
// kernel: tpu_custom_call.1
$region0: #{tpu_custom_call.1}
  #allocation0 [shape = 'u32[]', space=smem, size = 0x4, offset = 0x4, fixed_abs, tag = 'smem constant byte address 0x4 - core index']
  #allocation1 [shape = 'u32[72,128]{1,0:T(1,128)}', space=vmem, size = 0x9000, scoped, tag = 'internal scratch']
  %s0 = inlined_call_operand.hbm [shape: f32[8,128], index: 0, kind: input, shape index: {}]
  %s1 = inlined_call_operand.hbm [shape: f32[16,128], index: 1, kind: output, shape index: {}]
  %s2 = sld [smem:[#allocation0]]
  $region41: #{tpu_custom_call.1} parent=0
    _
  %s4 = ssub.s32 1, %s2
  %s5 = scalar_select 0, %s4, %s2
  $region1: #{tpu_custom_call.1} parent=0
    #allocation2 [shape = 'u8[4096]{0}', space=vmem, size = 0x1000, scoped, tag = 'input window, operand 0, single buffered']
    #allocation3 [shape = 's32[2]{0}', space=sflag, size = 0x8, scoped, tag = 'scoped memory for tpu_custom_call.1']
    #allocation4 [shape = 's32[2]{0}', space=sflag, size = 0x8, scoped, tag = 'scoped memory for tpu_custom_call.1']
    #allocation5 [shape = 'u8[8192]{0}', space=vmem, size = 0x2000, scoped, tag = 'output window, operand 0']
    %6 = vsyncpa [#allocation3], 0
    %7 = vsyncpa [#allocation4], 0
    %s8 = scalar_lea.sflag [#allocation4], 1
    %9 = vsyncpa %s8, 0
    loop: start=0, step=1, limit=4
    $region2: #{tpu_custom_call.1} parent=1 // loop_pre_header
      _
    $region3: #{tpu_custom_call.1} parent=1 // loop_header
      %s11 = sphi 0, %s15
      %p12 = scmp.ge.s32.totalorder %s11, 4
      %s19 = sphi 0, %s19
      %s21 = sphi 0, %s19
      %s22 = sphi 0, %s21
      %s36 = sphi 0, %s22
      %s42 = sphi 0, %s44
      %s45 = sphi 0, %s42
      %s46 = sphi 0, %s45
      %s62 = sphi 0, %s46
    $region4: #{tpu_custom_call.1} parent=1 // loop_header_branch
      %14 = sbr.rel (%p12) target = $region8
    $region5: #{tpu_custom_call.1} parent=1 // loop_body
      %s16 = ssub.s32 %s11, 1
      %s17 = ssub.s32 %s11, 2
      %s18 = sadd.s32 %s11, 1
      %s20 = sadd.s32 %s19, 1
      %p23 = scmp.eq.s32.totalorder %s11, 1
      %p24 = scmp.ne.s32.totalorder %s19, %s21
      %p25 = scmp.eq.s32.totalorder %s11, 0
      %p26 = por %p24, %p25
      %p27 = scmp.ne.s32.totalorder %s19, %s21
      %p28 = scmp.eq.s32.totalorder %s16, 1
      %p29 = por %p27, %p28
      %p30 = scmp.ne.s32.totalorder %s21, %s22
      %p31 = scmp.eq.s32.totalorder %s16, 0
      %p32 = por %p30, %p31
      %p33 = scmp.ne.s32.totalorder %s21, %s22
      %p34 = scmp.eq.s32.totalorder %s17, 1
      %p35 = por %p33, %p34
      %p37 = scmp.ne.s32.totalorder %s22, %s36
      %p38 = scmp.eq.s32.totalorder %s17, 0
      %p39 = por %p37, %p38
      %s40 = ssub.s32 %s11, %s18
      %p41 = scmp.eq.s32.totalorder %s40, 0
      %s43 = sadd.s32 %s42, 1
      %s44 = scalar_select %p41, %s42, %s43
      %p47 = pneg %p41
      %p48 = scmp.eq.s32.totalorder %s11, 1
      %p49 = por %p47, %p48
      %p50 = scmp.ne.s32.totalorder %s42, %s45
      %p51 = scmp.eq.s32.totalorder %s11, 0
      %p52 = por %p50, %p51
      %p53 = scmp.ne.s32.totalorder %s42, %s45
      %p54 = scmp.eq.s32.totalorder %s16, 1
      %p55 = por %p53, %p54
      %p56 = scmp.ne.s32.totalorder %s45, %s46
      %p57 = scmp.eq.s32.totalorder %s16, 0
      %p58 = por %p56, %p57
      %p59 = scmp.ne.s32.totalorder %s45, %s46
      %p60 = scmp.eq.s32.totalorder %s17, 1
      %p61 = por %p59, %p60
      %p63 = scmp.ne.s32.totalorder %s46, %s62
      %p64 = scmp.eq.s32.totalorder %s17, 0
      %p65 = por %p63, %p64
      %p66 = scmp.le.s32.totalorder 1, %s11
      %p67 = scmp.lt.s32.totalorder %s11, 3
      %p68 = pnand %p66, %p67
      %p69 = pneg %p68
      // Predicated region
      $region9: #{tpu_custom_call.1} parent=5 // pred_check
        _
      $region10: #{tpu_custom_call.1} parent=5 // pred_check_branch
        %71 = sbr.rel (%p68) target = $region12
      $region11: #{tpu_custom_call.1} parent=5 // pred_region
        %s72 = ssub.s32 %s11, 1
        // Predicated region
        $region13: #{tpu_custom_call.1} parent=11 // pred_check
          %p73 = pneg %p32
        $region14: #{tpu_custom_call.1} parent=11 // pred_check_branch
          %75 = sbr.rel (%p73) target = $region16
        $region15: #{tpu_custom_call.1} parent=11 // pred_region
          %77 = vsyncadd [#allocation3], 0
          %s79 = sshll.u32 %s0, 4
          %s80 = int_to_ptr.hbm [resolvable:$true] %s79
          %s81 = sshll.u32 [#allocation2], 4
          %s82 = int_to_ptr.vmem [resolvable:$true] %s81
          %84 = dma.hbm_to_vmem [thread:$0]  %s80, 128, %s82, [#allocation3]
        $region16: #{tpu_custom_call.1} parent=11 // pred_fallthru
          _
      $region12: #{tpu_custom_call.1} parent=5 // pred_fallthru
        _
      %p85 = scmp.lt.s32.totalorder %s11, 2
      // Predicated region
      $region17: #{tpu_custom_call.1} parent=5 // pred_check
        %p86 = pneg %p85
      $region18: #{tpu_custom_call.1} parent=5 // pred_check_branch
        %88 = sbr.rel (%p86) target = $region20
      $region19: #{tpu_custom_call.1} parent=5 // pred_region
        _
      $region20: #{tpu_custom_call.1} parent=5 // pred_fallthru
        _
      %p89 = scmp.le.s32.totalorder 1, %s11
      %p90 = scmp.lt.s32.totalorder %s11, 3
      %p91 = pnand %p89, %p90
      %p92 = pneg %p91
      // Predicated region
      $region21: #{tpu_custom_call.1} parent=5 // pred_check
        _
      $region22: #{tpu_custom_call.1} parent=5 // pred_check_branch
        %94 = sbr.rel (%p91) target = $region24
      $region23: #{tpu_custom_call.1} parent=5 // pred_region
        %s95 = ssub.s32 %s11, 1
        // Predicated region
        $region25: #{tpu_custom_call.1} parent=23 // pred_check
          %p96 = pneg %p32
        $region26: #{tpu_custom_call.1} parent=23 // pred_check_branch
          %98 = sbr.rel (%p96) target = $region28
        $region27: #{tpu_custom_call.1} parent=23 // pred_region
          %100 = dma.done [#allocation3], 128
        $region28: #{tpu_custom_call.1} parent=23 // pred_fallthru
          _
        %p101 = pneg %p32
        %p102 = pneg %p29
        %p103 = pneg %p58
        %p104 = pneg %p55
        %s105 = sand.u32 %s45, 1
        %s106 = scalar_lea.sflag [#allocation4], %s105
        %s107 = sand.u32 %s45, 1
        %s108 = smul.addr %s107, 8
        %s109 = scalar_lea.vmem [#allocation5], %s108
        %v110 = vld [vmem:[#allocation2] sm:$0xff]
        %111 = vst [vmem:[%s109] sm:$0xff] %v110
        %s112 = sand.u32 %s45, 1
        %s113 = scalar_lea.sflag [#allocation4], %s112
        %s114 = sand.u32 %s45, 1
        %s115 = smul.addr %s114, 8
        %s116 = scalar_lea.vmem [#allocation5], %s115
        // Predicated region
        $region29: #{tpu_custom_call.1} parent=23 // pred_check
          %p117 = pneg %p55
        $region30: #{tpu_custom_call.1} parent=23 // pred_check_branch
          %119 = sbr.rel (%p117) target = $region32
        $region31: #{tpu_custom_call.1} parent=23 // pred_region
          %121 = vsyncadd %s113, 0
          %s122 = smul.addr %s16, 8
          %s123 = scalar_lea.hbm %s1, %s122
          %s125 = sshll.u32 %s116, 4
          %s126 = int_to_ptr.vmem [resolvable:$true] %s125
          %s127 = sshll.u32 %s123, 4
          %s128 = int_to_ptr.hbm [resolvable:$true] %s127
          %130 = dma.vmem_to_hbm [thread:$0]  %s126, 128, %s128, %s113
        $region32: #{tpu_custom_call.1} parent=23 // pred_fallthru
          _
      $region24: #{tpu_custom_call.1} parent=5 // pred_fallthru
        _
      %p131 = scmp.le.s32.totalorder 2, %s11
      // Predicated region
      $region33: #{tpu_custom_call.1} parent=5 // pred_check
        %p132 = pneg %p131
      $region34: #{tpu_custom_call.1} parent=5 // pred_check_branch
        %134 = sbr.rel (%p132) target = $region36
      $region35: #{tpu_custom_call.1} parent=5 // pred_region
        %s135 = ssub.s32 %s11, 2
        // Predicated region
        $region37: #{tpu_custom_call.1} parent=35 // pred_check
          %p136 = pneg %p61
        $region38: #{tpu_custom_call.1} parent=35 // pred_check_branch
          %138 = sbr.rel (%p136) target = $region40
        $region39: #{tpu_custom_call.1} parent=35 // pred_region
          %s139 = sand.u32 %s46, 1
          %s140 = scalar_lea.sflag [#allocation4], %s139
          %s141 = sand.u32 %s46, 1
          %s142 = smul.addr %s141, 8
          %s143 = scalar_lea.vmem [#allocation5], %s142
          %145 = dma.done %s140, 128
        $region40: #{tpu_custom_call.1} parent=35 // pred_fallthru
          _
      $region36: #{tpu_custom_call.1} parent=5 // pred_fallthru
        _
    $region6: #{tpu_custom_call.1} parent=1 // loop_footer
      %s15 = sadd.s32 1, %s11
    $region7: #{tpu_custom_call.1} parent=1 // loop_footer_branch
      %10 = sbr.rel target = $region3
    $region8: #{tpu_custom_call.1} parent=1 // loop_exit
      _
    %146 = vsyncpa [#allocation3], 1
    %s147 = scalar_lea.sflag [#allocation3], 1
    %148 = vsyncpa %s147, 1
    %149 = vsyncpa [#allocation4], 1
    %s150 = scalar_lea.sflag [#allocation4], 1
    %151 = vsyncpa %s150, 1

// kernel: spatio_temporal_transformer_forward.2
$region0: #{spatio_temporal_transformer_forward.2}
  #allocation0 [shape = 'u32[]', space=smem, size = 0x4, offset = 0x4, fixed_abs, tag = 'smem constant byte address 0x4 - core index']
  #allocation1 [shape = 'u32[72,128]{1,0:T(1,128)}', space=vmem, size = 0x9000, scoped, tag = 'internal scratch']
  %s0 = inlined_call_operand.vmem [shape: bf16[32,32], index: 0, kind: input, shape index: {}]
  %s1 = inlined_call_operand.vmem [shape: bf16[32,32], index: 1, kind: input, shape index: {}]
  %s2 = inlined_call_operand.vmem [shape: f32[1,32], index: 2, kind: input, shape index: {}]
  %s3 = inlined_call_operand.vmem [shape: bf16[32,32], index: 3, kind: input, shape index: {}]
  %s4 = inlined_call_operand.vmem [shape: bf16[32,32], index: 4, kind: output, shape index: {}]
  %s5 = sld [smem:[#allocation0]]
  $region26: #{spatio_temporal_transformer_forward.2} parent=0
    _
  %s7 = ssub.s32 1, %s5
  %s8 = scalar_select 0, %s7, %s5
  // Predicated region
  $region2: #{spatio_temporal_transformer_forward.2} parent=0 // pred_check
    _
  $region3: #{spatio_temporal_transformer_forward.2} parent=0 // pred_check_branch
    %10 = sbr.rel (0) target = $region5
  $region4: #{spatio_temporal_transformer_forward.2} parent=0 // pred_region
    _
  $region5: #{spatio_temporal_transformer_forward.2} parent=0 // pred_fallthru
    _
  // Predicated region
  $region6: #{spatio_temporal_transformer_forward.2} parent=0 // pred_check
    _
  $region7: #{spatio_temporal_transformer_forward.2} parent=0 // pred_check_branch
    %12 = sbr.rel (0) target = $region9
  $region8: #{spatio_temporal_transformer_forward.2} parent=0 // pred_region
    _
  $region9: #{spatio_temporal_transformer_forward.2} parent=0 // pred_fallthru
    _
  // Predicated region
  $region10: #{spatio_temporal_transformer_forward.2} parent=0 // pred_check
    _
  $region11: #{spatio_temporal_transformer_forward.2} parent=0 // pred_check_branch
    %14 = sbr.rel (0) target = $region13
  $region12: #{spatio_temporal_transformer_forward.2} parent=0 // pred_region
    _
  $region13: #{spatio_temporal_transformer_forward.2} parent=0 // pred_fallthru
    _
  // Predicated region
  $region14: #{spatio_temporal_transformer_forward.2} parent=0 // pred_check
    _
  $region15: #{spatio_temporal_transformer_forward.2} parent=0 // pred_check_branch
    %16 = sbr.rel (0) target = $region17
  $region16: #{spatio_temporal_transformer_forward.2} parent=0 // pred_region
    _
  $region17: #{spatio_temporal_transformer_forward.2} parent=0 // pred_fallthru
    _
  %v18 = vld [vmem:[%s0] sm:$0xf]
  %v19 = vld [vmem:[%s0 + $0x4] sm:$0xf]
  %v20 = vld [vmem:[%s0 + $0x8] sm:$0xf]
  %v21 = vld [vmem:[%s0 + $0xc] sm:$0xf]
  %v22 = vld [vmem:[%s1] sm:$0xf]
  %v23 = vld [vmem:[%s1 + $0x4] sm:$0xf]
  %v24 = vld [vmem:[%s1 + $0x8] sm:$0xf]
  %v25 = vld [vmem:[%s1 + $0xc] sm:$0xf]
  %v26 = vld [vmem:[%s2] sm:$0x1]
  %v28 = vperm.slane %v26, 0
  %v34 = vunpack.c.l.b16 %v18
  %v35 = vunpack.c.l.b16 %v19
  %v36 = vunpack.c.l.b16 %v20
  %v37 = vunpack.c.l.b16 %v21
  %v38 = vpack.c.b16 %v35, %v34
  %v39 = vpack.c.b16 %v37, %v36
  %v44 = vunpack.c.l.b16 %v22
  %v45 = vunpack.c.l.b16 %v23
  %v46 = vunpack.c.l.b16 %v24
  %v47 = vunpack.c.l.b16 %v25
  %v48 = vpack.c.b16 %v45, %v44
  %v49 = vpack.c.b16 %v47, %v46
  %vm52 = vcmask 261120
  %v54 = vsel %vm52, %v38, 0
  %v57 = vsel %vm52, %v39, 0
  %59 = vmatpush.bf16.msra.mxu0 0
  %60 = vmatpush.bf16.msra.mxu0 0
  %61 = vmatpush.bf16.msra.mxu0 0
  %62 = vmatpush.bf16.msra.mxu0 0
  %63 = vmatpush.bf16.msra.mxu0 0
  %64 = vmatpush.bf16.msra.mxu0 0
  %65 = vmatpush.bf16.msra.mxu0 %v49
  %66 = vmatpush.bf16.msra.mxu0 %v48
  %67 = vmatmul.bf16.gmra.mxu0 %v54
  %v68 = vpop.f32.mrf.mxu0
  %v69 = vadd.f32 %v28, %v68
  %v70 = vpop.f32.mrf.mxu0
  %v71 = vadd.f32 %v28, %v70
  %72 = vmatmul.bf16.gmra.mxu0 %v57
  %v73 = vpop.f32.mrf.mxu0
  %v74 = vadd.f32 %v28, %v73
  %v75 = vpop.f32.mrf.mxu0
  %v76 = vadd.f32 %v28, %v75
  %77 = vdwg.mxu0
  %v78 = vld [vmem:[%s3] sm:$0xf]
  %v79 = vld [vmem:[%s3 + $0x4] sm:$0xf]
  %v80 = vld [vmem:[%s3 + $0x8] sm:$0xf]
  %v81 = vld [vmem:[%s3 + $0xc] sm:$0xf]
  %v82 = vunpack.c.l.bf16 %v78
  %v83 = vunpack.c.l.bf16 %v79
  %v84 = vunpack.c.l.bf16 %v80
  %v85 = vunpack.c.l.bf16 %v81
  %v86 = vadd.f32 %v69, %v82
  %v87 = vadd.f32 %v71, %v83
  %v88 = vadd.f32 %v74, %v84
  %v89 = vadd.f32 %v76, %v85
  %v90 = vpack.c.bf16 %v86, %v86
  %v91 = vpack.c.bf16 %v87, %v87
  %v92 = vpack.c.bf16 %v88, %v88
  %v93 = vpack.c.bf16 %v89, %v89
  %vm94 = vcmask 257024
  %95 = vst.msk [vmem:[%s4] sm:$0xf] %vm94, %v90
  %96 = vst.msk [vmem:[%s4 + $0x4] sm:$0xf] %vm94, %v91
  %97 = vst.msk [vmem:[%s4 + $0x8] sm:$0xf] %vm94, %v92
  %98 = vst.msk [vmem:[%s4 + $0xc] sm:$0xf] %vm94, %v93
  // Predicated region
  $region18: #{spatio_temporal_transformer_forward.2} parent=0 // pred_check
    _
  $region19: #{spatio_temporal_transformer_forward.2} parent=0 // pred_check_branch
    %100 = sbr.rel (0) target = $region21
  $region20: #{spatio_temporal_transformer_forward.2} parent=0 // pred_region
    _
  $region21: #{spatio_temporal_transformer_forward.2} parent=0 // pred_fallthru
    _
  // Predicated region
  $region22: #{spatio_temporal_transformer_forward.2} parent=0 // pred_check
    _
  $region23: #{spatio_temporal_transformer_forward.2} parent=0 // pred_check_branch
    %102 = sbr.rel (0) target = $region25
  $region24: #{spatio_temporal_transformer_forward.2} parent=0 // pred_region
    _
  $region25: #{spatio_temporal_transformer_forward.2} parent=0 // pred_fallthru
    _

// kernel: spatio_temporal_transformer_forward.3
$region0: #{spatio_temporal_transformer_forward.3}
  #allocation0 [shape = 'u32[]', space=smem, size = 0x4, offset = 0x4, fixed_abs, tag = 'smem constant byte address 0x4 - core index']
  #allocation1 [shape = 'u32[72,128]{1,0:T(1,128)}', space=vmem, size = 0x9000, scoped, tag = 'internal scratch']
  %s0 = inlined_call_operand.vmem [shape: bf16[2,16,32], index: 0, kind: input, shape index: {}]
  %s1 = inlined_call_operand.vmem [shape: bf16[32,96], index: 1, kind: input, shape index: {}]
  %s2 = inlined_call_operand.vmem [shape: f32[1,96], index: 2, kind: input, shape index: {}]
  %s3 = inlined_call_operand.vmem [shape: bf16[32,32], index: 3, kind: input, shape index: {}]
  %s4 = inlined_call_operand.vmem [shape: f32[1,32], index: 4, kind: input, shape index: {}]
  %s5 = inlined_call_operand.vmem [shape: f32[1,32], index: 5, kind: input, shape index: {}]
  %s6 = inlined_call_operand.vmem [shape: f32[1,32], index: 6, kind: input, shape index: {}]
  %s7 = inlined_call_operand.vmem [shape: bf16[16,16], index: 7, kind: input, shape index: {}]
  %s8 = inlined_call_operand.vmem [shape: bf16[32,64], index: 8, kind: input, shape index: {}]
  %s9 = inlined_call_operand.vmem [shape: f32[1,64], index: 9, kind: input, shape index: {}]
  %s10 = inlined_call_operand.vmem [shape: bf16[64,32], index: 10, kind: input, shape index: {}]
  %s11 = inlined_call_operand.vmem [shape: f32[1,32], index: 11, kind: input, shape index: {}]
  %s12 = inlined_call_operand.vmem [shape: f32[1,32], index: 12, kind: input, shape index: {}]
  %s13 = inlined_call_operand.vmem [shape: f32[1,32], index: 13, kind: input, shape index: {}]
  %s14 = inlined_call_operand.vmem [shape: bf16[32,4], index: 14, kind: input, shape index: {}]
  %s15 = inlined_call_operand.vmem [shape: f32[1,4], index: 15, kind: input, shape index: {}]
  %s16 = inlined_call_operand.vmem [shape: f32[2,16,4], index: 16, kind: output, shape index: {}]
  %s17 = sld [smem:[#allocation0]]
  $region74: #{spatio_temporal_transformer_forward.3} parent=0
    _
  %s19 = ssub.s32 1, %s17
  %s20 = scalar_select 0, %s19, %s17
  // Predicated region
  $region2: #{spatio_temporal_transformer_forward.3} parent=0 // pred_check
    _
  $region3: #{spatio_temporal_transformer_forward.3} parent=0 // pred_check_branch
    %22 = sbr.rel (0) target = $region5
  $region4: #{spatio_temporal_transformer_forward.3} parent=0 // pred_region
    _
  $region5: #{spatio_temporal_transformer_forward.3} parent=0 // pred_fallthru
    _
  // Predicated region
  $region6: #{spatio_temporal_transformer_forward.3} parent=0 // pred_check
    _
  $region7: #{spatio_temporal_transformer_forward.3} parent=0 // pred_check_branch
    %24 = sbr.rel (0) target = $region9
  $region8: #{spatio_temporal_transformer_forward.3} parent=0 // pred_region
    _
  $region9: #{spatio_temporal_transformer_forward.3} parent=0 // pred_fallthru
    _
  // Predicated region
  $region10: #{spatio_temporal_transformer_forward.3} parent=0 // pred_check
    _
  $region11: #{spatio_temporal_transformer_forward.3} parent=0 // pred_check_branch
    %26 = sbr.rel (0) target = $region13
  $region12: #{spatio_temporal_transformer_forward.3} parent=0 // pred_region
    _
  $region13: #{spatio_temporal_transformer_forward.3} parent=0 // pred_fallthru
    _
  // Predicated region
  $region14: #{spatio_temporal_transformer_forward.3} parent=0 // pred_check
    _
  $region15: #{spatio_temporal_transformer_forward.3} parent=0 // pred_check_branch
    %28 = sbr.rel (0) target = $region17
  $region16: #{spatio_temporal_transformer_forward.3} parent=0 // pred_region
    _
  $region17: #{spatio_temporal_transformer_forward.3} parent=0 // pred_fallthru
    _
  // Predicated region
  $region18: #{spatio_temporal_transformer_forward.3} parent=0 // pred_check
    _
  $region19: #{spatio_temporal_transformer_forward.3} parent=0 // pred_check_branch
    %30 = sbr.rel (0) target = $region21
  $region20: #{spatio_temporal_transformer_forward.3} parent=0 // pred_region
    _
  $region21: #{spatio_temporal_transformer_forward.3} parent=0 // pred_fallthru
    _
  // Predicated region
  $region22: #{spatio_temporal_transformer_forward.3} parent=0 // pred_check
    _
  $region23: #{spatio_temporal_transformer_forward.3} parent=0 // pred_check_branch
    %32 = sbr.rel (0) target = $region25
  $region24: #{spatio_temporal_transformer_forward.3} parent=0 // pred_region
    _
  $region25: #{spatio_temporal_transformer_forward.3} parent=0 // pred_fallthru
    _
  // Predicated region
  $region26: #{spatio_temporal_transformer_forward.3} parent=0 // pred_check
    _
  $region27: #{spatio_temporal_transformer_forward.3} parent=0 // pred_check_branch
    %34 = sbr.rel (0) target = $region29
  $region28: #{spatio_temporal_transformer_forward.3} parent=0 // pred_region
    _
  $region29: #{spatio_temporal_transformer_forward.3} parent=0 // pred_fallthru
    _
  // Predicated region
  $region30: #{spatio_temporal_transformer_forward.3} parent=0 // pred_check
    _
  $region31: #{spatio_temporal_transformer_forward.3} parent=0 // pred_check_branch
    %36 = sbr.rel (0) target = $region33
  $region32: #{spatio_temporal_transformer_forward.3} parent=0 // pred_region
    _
  $region33: #{spatio_temporal_transformer_forward.3} parent=0 // pred_fallthru
    _
  // Predicated region
  $region34: #{spatio_temporal_transformer_forward.3} parent=0 // pred_check
    _
  $region35: #{spatio_temporal_transformer_forward.3} parent=0 // pred_check_branch
    %38 = sbr.rel (0) target = $region37
  $region36: #{spatio_temporal_transformer_forward.3} parent=0 // pred_region
    _
  $region37: #{spatio_temporal_transformer_forward.3} parent=0 // pred_fallthru
    _
  // Predicated region
  $region38: #{spatio_temporal_transformer_forward.3} parent=0 // pred_check
    _
  $region39: #{spatio_temporal_transformer_forward.3} parent=0 // pred_check_branch
    %40 = sbr.rel (0) target = $region41
  $region40: #{spatio_temporal_transformer_forward.3} parent=0 // pred_region
    _
  $region41: #{spatio_temporal_transformer_forward.3} parent=0 // pred_fallthru
    _
  // Predicated region
  $region42: #{spatio_temporal_transformer_forward.3} parent=0 // pred_check
    _
  $region43: #{spatio_temporal_transformer_forward.3} parent=0 // pred_check_branch
    %42 = sbr.rel (0) target = $region45
  $region44: #{spatio_temporal_transformer_forward.3} parent=0 // pred_region
    _
  $region45: #{spatio_temporal_transformer_forward.3} parent=0 // pred_fallthru
    _
  // Predicated region
  $region46: #{spatio_temporal_transformer_forward.3} parent=0 // pred_check
    _
  $region47: #{spatio_temporal_transformer_forward.3} parent=0 // pred_check_branch
    %44 = sbr.rel (0) target = $region49
  $region48: #{spatio_temporal_transformer_forward.3} parent=0 // pred_region
    _
  $region49: #{spatio_temporal_transformer_forward.3} parent=0 // pred_fallthru
    _
  // Predicated region
  $region50: #{spatio_temporal_transformer_forward.3} parent=0 // pred_check
    _
  $region51: #{spatio_temporal_transformer_forward.3} parent=0 // pred_check_branch
    %46 = sbr.rel (0) target = $region53
  $region52: #{spatio_temporal_transformer_forward.3} parent=0 // pred_region
    _
  $region53: #{spatio_temporal_transformer_forward.3} parent=0 // pred_fallthru
    _
  // Predicated region
  $region54: #{spatio_temporal_transformer_forward.3} parent=0 // pred_check
    _
  $region55: #{spatio_temporal_transformer_forward.3} parent=0 // pred_check_branch
    %48 = sbr.rel (0) target = $region57
  $region56: #{spatio_temporal_transformer_forward.3} parent=0 // pred_region
    _
  $region57: #{spatio_temporal_transformer_forward.3} parent=0 // pred_fallthru
    _
  // Predicated region
  $region58: #{spatio_temporal_transformer_forward.3} parent=0 // pred_check
    _
  $region59: #{spatio_temporal_transformer_forward.3} parent=0 // pred_check_branch
    %50 = sbr.rel (0) target = $region61
  $region60: #{spatio_temporal_transformer_forward.3} parent=0 // pred_region
    _
  $region61: #{spatio_temporal_transformer_forward.3} parent=0 // pred_fallthru
    _
  // Predicated region
  $region62: #{spatio_temporal_transformer_forward.3} parent=0 // pred_check
    _
  $region63: #{spatio_temporal_transformer_forward.3} parent=0 // pred_check_branch
    %52 = sbr.rel (0) target = $region65
  $region64: #{spatio_temporal_transformer_forward.3} parent=0 // pred_region
    _
  $region65: #{spatio_temporal_transformer_forward.3} parent=0 // pred_fallthru
    _
  %v54 = vld [vmem:[%s0] sm:$0xf]
  %v55 = vld [vmem:[%s0 + $0x4] sm:$0xf]
  %v56 = vld [vmem:[%s0 + $0x8] sm:$0xf]
  %v57 = vld [vmem:[%s0 + $0xc] sm:$0xf]
  %v58 = vld [vmem:[%s1] sm:$0xf]
  %v59 = vld [vmem:[%s1 + $0x4] sm:$0xf]
  %v60 = vld [vmem:[%s1 + $0x8] sm:$0xf]
  %v61 = vld [vmem:[%s1 + $0xc] sm:$0xf]
  %v62 = vld [vmem:[%s2] sm:$0x1]
  %v64 = vperm.slane %v62, 0
  %v70 = vunpack.c.l.b16 %v54
  %v71 = vunpack.c.l.b16 %v55
  %v72 = vunpack.c.l.b16 %v56
  %v73 = vunpack.c.l.b16 %v57
  %v74 = vpack.c.b16 %v71, %v70
  %v75 = vpack.c.b16 %v73, %v72
  %v80 = vunpack.c.l.b16 %v58
  %v81 = vunpack.c.l.b16 %v59
  %v82 = vunpack.c.l.b16 %v60
  %v83 = vunpack.c.l.b16 %v61
  %v84 = vpack.c.b16 %v81, %v80
  %v85 = vpack.c.b16 %v83, %v82
  %vm88 = vcmask 261120
  %v90 = vsel %vm88, %v74, 0
  %v93 = vsel %vm88, %v75, 0
  %95 = vmatpush.bf16.msra.mxu0 0
  %96 = vmatpush.bf16.msra.mxu0 0
  %97 = vmatpush.bf16.msra.mxu0 0
  %98 = vmatpush.bf16.msra.mxu0 0
  %99 = vmatpush.bf16.msra.mxu0 0
  %100 = vmatpush.bf16.msra.mxu0 0
  %101 = vmatpush.bf16.msra.mxu0 %v85
  %102 = vmatpush.bf16.msra.mxu0 %v84
  %103 = vmatmul.bf16.gmra.mxu0 %v90
  %v104 = vpop.f32.mrf.mxu0
  %v105 = vadd.f32 %v64, %v104
  %v106 = vpop.f32.mrf.mxu0
  %v107 = vadd.f32 %v64, %v106
  %108 = vmatmul.bf16.gmra.mxu0 %v93
  %v109 = vpop.f32.mrf.mxu0
  %v110 = vadd.f32 %v64, %v109
  %v111 = vpop.f32.mrf.mxu0
  %v112 = vadd.f32 %v64, %v111
  %113 = vdwg.mxu0
  %v114 = vld [vmem:[%s7] sm:$0xf]
  %v115 = vld [vmem:[%s7 + $0x4] sm:$0xf]
  %v116 = vunpack.c.l.bf16 %v114
  %v117 = vunpack.c.l.bf16 %v115
  %v118 = vld [vmem:[%s3] sm:$0xf]
  %v119 = vld [vmem:[%s3 + $0x4] sm:$0xf]
  %v120 = vld [vmem:[%s3 + $0x8] sm:$0xf]
  %v121 = vld [vmem:[%s3 + $0xc] sm:$0xf]
  %v122 = vpack.c.bf16 %v105, %v105
  %v123 = vpack.c.bf16 %v107, %v107
  %v124 = vpack.c.bf16 %v110, %v110
  %v125 = vpack.c.bf16 %v112, %v112
  %v128 = vunpack.c.l.b16 %v122
  %v129 = vunpack.c.l.b16 %v123
  %v130 = vpack.c.b16 %v129, %v128
  %131 = vrot.lane.b32.xlu0 %v130, 96
  %v132 = vpop.permute.xlu0 %131
  %vm133 = vcmask 31744
  %v135 = vsel %vm133, %v130, 0
  %v138 = vsel %vm133, %v132, 0
  %140 = vmatpush.bf16.xpose.msra.mxu0 0
  %141 = vmatpush.bf16.xpose.msra.mxu0 0
  %142 = vmatpush.bf16.xpose.msra.mxu0 0
  %143 = vmatpush.bf16.xpose.msra.mxu0 0
  %144 = vmatpush.bf16.xpose.msra.mxu0 0
  %145 = vmatpush.bf16.xpose.msra.mxu0 0
  %146 = vmatpush.bf16.xpose.msra.mxu0 0
  %147 = vmatpush.bf16.xpose.msra.mxu0 %v138
  %148 = vmatmul.bf16.gmra.mxu0 %v135
  %v149 = vpop.f32.mrf.mxu0
  %v150 = vadd.f32 0.0, %v149
  %v151 = vpop.f32.mrf.mxu0
  %v152 = vadd.f32 0.0, %v151
  %153 = vdwg.mxu0
  %v156 = vunpack.c.l.b16 %v124
  %v157 = vunpack.c.l.b16 %v125
  %v158 = vpack.c.b16 %v157, %v156
  %159 = vrot.lane.b32.xlu0 %v158, 96
  %v160 = vpop.permute.xlu0 %159
  %v162 = vsel %vm133, %v158, 0
  %v165 = vsel %vm133, %v160, 0
  %167 = vmatpush.bf16.xpose.msra.mxu0 0
  %168 = vmatpush.bf16.xpose.msra.mxu0 0
  %169 = vmatpush.bf16.xpose.msra.mxu0 0
  %170 = vmatpush.bf16.xpose.msra.mxu0 0
  %171 = vmatpush.bf16.xpose.msra.mxu0 0
  %172 = vmatpush.bf16.xpose.msra.mxu0 0
  %173 = vmatpush.bf16.xpose.msra.mxu0 0
  %174 = vmatpush.bf16.xpose.msra.mxu0 %v165
  %175 = vmatmul.bf16.gmra.mxu0 %v162
  %v176 = vpop.f32.mrf.mxu0
  %v177 = vadd.f32 0.0, %v176
  %v178 = vpop.f32.mrf.mxu0
  %v179 = vadd.f32 0.0, %v178
  %180 = vdwg.mxu0
  %v181 = vmul.f32 %v150, 0.5
  %v182 = vmul.f32 %v152, 0.5
  %v183 = vmul.f32 %v177, 0.5
  %v184 = vmul.f32 %v179, 0.5
  %v185 = vadd.f32 %v181, %v116
  %v186 = vadd.f32 %v182, %v117
  %v187 = vadd.f32 %v183, %v116
  %v188 = vadd.f32 %v184, %v117
  %vm189 = vcmask 130048
  %v190 = vsel %vm189, %v185, -inf
  %191 = vmax.xlane.f32.xlu0 %v190
  %v192 = vpop.xlane.xlu0 %191
  %v193 = vsel %vm189, %v186, -inf
  %194 = vmax.xlane.f32.xlu0 %v193
  %v195 = vpop.xlane.xlu0 %194
  %v196 = vsel %vm189, %v187, -inf
  %197 = vmax.xlane.f32.xlu0 %v196
  %v198 = vpop.xlane.xlu0 %197
  %v199 = vsel %vm189, %v188, -inf
  %200 = vmax.xlane.f32.xlu0 %v199
  %v201 = vpop.xlane.xlu0 %200
  %v202 = vsub.f32 %v185, %v192
  %v203 = vsub.f32 %v186, %v195
  %v204 = vsub.f32 %v187, %v198
  %v205 = vsub.f32 %v188, %v201
  %v206 = vmul.f32 %v202, 1.442695
  %v207 = vpow.pop %v206
  %v208 = vmul.f32 %v203, 1.442695
  %v209 = vpow.pop %v208
  %v210 = vmul.f32 %v204, 1.442695
  %v211 = vpow.pop %v210
  %v212 = vmul.f32 %v205, 1.442695
  %v213 = vpow.pop %v212
  %v214 = vsel %vm189, %v207, 0.0
  %215 = vadd.xlane.f32.xlu0 %v214
  %v216 = vpop.xlane.xlu0 %215
  %v217 = vsel %vm189, %v209, 0.0
  %218 = vadd.xlane.f32.xlu0 %v217
  %v219 = vpop.xlane.xlu0 %218
  %v220 = vsel %vm189, %v211, 0.0
  %221 = vadd.xlane.f32.xlu0 %v220
  %v222 = vpop.xlane.xlu0 %221
  %v223 = vsel %vm189, %v213, 0.0
  %224 = vadd.xlane.f32.xlu0 %v223
  %v225 = vpop.xlane.xlu0 %224
  %v226 = vrcp.pop %v216
  %v227 = vrcp.pop %v219
  %v228 = vrcp.pop %v222
  %v229 = vrcp.pop %v225
  %v230 = vmul.f32 %v207, %v226
  %v231 = vmul.f32 %v209, %v227
  %v232 = vmul.f32 %v211, %v228
  %v233 = vmul.f32 %v213, %v229
  %v234 = vpack.c.bf16 %v230, %v230
  %v235 = vpack.c.bf16 %v231, %v231
  %v236 = vpack.c.bf16 %v232, %v232
  %v237 = vpack.c.bf16 %v233, %v233
  %v240 = vunpack.c.l.b16 %v234
  %v241 = vunpack.c.l.b16 %v235
  %v242 = vpack.c.b16 %v241, %v240
  %243 = vrot.lane.b32.xlu0 %v130, 64
  %v244 = vpop.permute.xlu0 %243
  %v247 = vsel %vm189, %v242, 0
  %249 = vmatpush.bf16.msra.mxu0 0
  %250 = vmatpush.bf16.msra.mxu0 0
  %251 = vmatpush.bf16.msra.mxu0 0
  %252 = vmatpush.bf16.msra.mxu0 0
  %253 = vmatpush.bf16.msra.mxu0 0
  %254 = vmatpush.bf16.msra.mxu0 0
  %255 = vmatpush.bf16.msra.mxu0 0
  %256 = vmatpush.bf16.msra.mxu0 %v244
  %257 = vmatmul.bf16.gmra.mxu0 %v247
  %v258 = vpop.f32.mrf.mxu0
  %v259 = vadd.f32 0.0, %v258
  %v260 = vpop.f32.mrf.mxu0
  %v261 = vadd.f32 0.0, %v260
  %262 = vdwg.mxu0
  %v265 = vunpack.c.l.b16 %v236
  %v266 = vunpack.c.l.b16 %v237
  %v267 = vpack.c.b16 %v266, %v265
  %268 = vrot.lane.b32.xlu0 %v158, 64
  %v269 = vpop.permute.xlu0 %268
  %v272 = vsel %vm189, %v267, 0
  %274 = vmatpush.bf16.msra.mxu0 0
  %275 = vmatpush.bf16.msra.mxu0 0
  %276 = vmatpush.bf16.msra.mxu0 0
  %277 = vmatpush.bf16.msra.mxu0 0
  %278 = vmatpush.bf16.msra.mxu0 0
  %279 = vmatpush.bf16.msra.mxu0 0
  %280 = vmatpush.bf16.msra.mxu0 0
  %281 = vmatpush.bf16.msra.mxu0 %v269
  %282 = vmatmul.bf16.gmra.mxu0 %v272
  %v283 = vpop.f32.mrf.mxu0
  %v284 = vadd.f32 0.0, %v283
  %v285 = vpop.f32.mrf.mxu0
  %v286 = vadd.f32 0.0, %v285
  %287 = vdwg.mxu0
  %v288 = vpack.c.bf16 %v261, %v259
  %v289 = vpack.c.bf16 %v286, %v284
  %290 = vrot.lane.b32.xlu0 %v130, 124
  %v291 = vpop.permute.xlu0 %290
  %292 = vrot.lane.b32.xlu0 %v130, 92
  %v293 = vpop.permute.xlu0 %292
  %v295 = vsel %vm133, %v291, 0
  %v298 = vsel %vm133, %v293, 0
  %300 = vmatpush.bf16.xpose.msra.mxu0 0
  %301 = vmatpush.bf16.xpose.msra.mxu0 0
  %302 = vmatpush.bf16.xpose.msra.mxu0 0
  %303 = vmatpush.bf16.xpose.msra.mxu0 0
  %304 = vmatpush.bf16.xpose.msra.mxu0 0
  %305 = vmatpush.bf16.xpose.msra.mxu0 0
  %306 = vmatpush.bf16.xpose.msra.mxu0 0
  %307 = vmatpush.bf16.xpose.msra.mxu0 %v298
  %308 = vmatmul.bf16.gmra.mxu0 %v295
  %v309 = vpop.f32.mrf.mxu0
  %v310 = vadd.f32 0.0, %v309
  %v311 = vpop.f32.mrf.mxu0
  %v312 = vadd.f32 0.0, %v311
  %313 = vdwg.mxu0
  %314 = vrot.lane.b32.xlu0 %v158, 124
  %v315 = vpop.permute.xlu0 %314
  %316 = vrot.lane.b32.xlu0 %v158, 92
  %v317 = vpop.permute.xlu0 %316
  %v319 = vsel %vm133, %v315, 0
  %v322 = vsel %vm133, %v317, 0
  %324 = vmatpush.bf16.xpose.msra.mxu0 0
  %325 = vmatpush.bf16.xpose.msra.mxu0 0
  %326 = vmatpush.bf16.xpose.msra.mxu0 0
  %327 = vmatpush.bf16.xpose.msra.mxu0 0
  %328 = vmatpush.bf16.xpose.msra.mxu0 0
  %329 = vmatpush.bf16.xpose.msra.mxu0 0
  %330 = vmatpush.bf16.xpose.msra.mxu0 0
  %331 = vmatpush.bf16.xpose.msra.mxu0 %v322
  %332 = vmatmul.bf16.gmra.mxu0 %v319
  %v333 = vpop.f32.mrf.mxu0
  %v334 = vadd.f32 0.0, %v333
  %v335 = vpop.f32.mrf.mxu0
  %v336 = vadd.f32 0.0, %v335
  %337 = vdwg.mxu0
  %v338 = vmul.f32 %v310, 0.5
  %v339 = vmul.f32 %v312, 0.5
  %v340 = vmul.f32 %v334, 0.5
  %v341 = vmul.f32 %v336, 0.5
  %v342 = vadd.f32 %v338, %v116
  %v343 = vadd.f32 %v339, %v117
  %v344 = vadd.f32 %v340, %v116
  %v345 = vadd.f32 %v341, %v117
  %v346 = vsel %vm189, %v342, -inf
  %347 = vmax.xlane.f32.xlu0 %v346
  %v348 = vpop.xlane.xlu0 %347
  %v349 = vsel %vm189, %v343, -inf
  %350 = vmax.xlane.f32.xlu0 %v349
  %v351 = vpop.xlane.xlu0 %350
  %v352 = vsel %vm189, %v344, -inf
  %353 = vmax.xlane.f32.xlu0 %v352
  %v354 = vpop.xlane.xlu0 %353
  %v355 = vsel %vm189, %v345, -inf
  %356 = vmax.xlane.f32.xlu0 %v355
  %v357 = vpop.xlane.xlu0 %356
  %v358 = vsub.f32 %v342, %v348
  %v359 = vsub.f32 %v343, %v351
  %v360 = vsub.f32 %v344, %v354
  %v361 = vsub.f32 %v345, %v357
  %v362 = vmul.f32 %v358, 1.442695
  %v363 = vpow.pop %v362
  %v364 = vmul.f32 %v359, 1.442695
  %v365 = vpow.pop %v364
  %v366 = vmul.f32 %v360, 1.442695
  %v367 = vpow.pop %v366
  %v368 = vmul.f32 %v361, 1.442695
  %v369 = vpow.pop %v368
  %v370 = vsel %vm189, %v363, 0.0
  %371 = vadd.xlane.f32.xlu0 %v370
  %v372 = vpop.xlane.xlu0 %371
  %v373 = vsel %vm189, %v365, 0.0
  %374 = vadd.xlane.f32.xlu0 %v373
  %v375 = vpop.xlane.xlu0 %374
  %v376 = vsel %vm189, %v367, 0.0
  %377 = vadd.xlane.f32.xlu0 %v376
  %v378 = vpop.xlane.xlu0 %377
  %v379 = vsel %vm189, %v369, 0.0
  %380 = vadd.xlane.f32.xlu0 %v379
  %v381 = vpop.xlane.xlu0 %380
  %v382 = vrcp.pop %v372
  %v383 = vrcp.pop %v375
  %v384 = vrcp.pop %v378
  %v385 = vrcp.pop %v381
  %v386 = vmul.f32 %v363, %v382
  %v387 = vmul.f32 %v365, %v383
  %v388 = vmul.f32 %v367, %v384
  %v389 = vmul.f32 %v369, %v385
  %v390 = vpack.c.bf16 %v386, %v386
  %v391 = vpack.c.bf16 %v387, %v387
  %v392 = vpack.c.bf16 %v388, %v388
  %v393 = vpack.c.bf16 %v389, %v389
  %v396 = vunpack.c.l.b16 %v390
  %v397 = vunpack.c.l.b16 %v391
  %v398 = vpack.c.b16 %v397, %v396
  %399 = vrot.lane.b32.xlu0 %v130, 60
  %v400 = vpop.permute.xlu0 %399
  %v403 = vsel %vm189, %v398, 0
  %405 = vmatpush.bf16.msra.mxu0 0
  %406 = vmatpush.bf16.msra.mxu0 0
  %407 = vmatpush.bf16.msra.mxu0 0
  %408 = vmatpush.bf16.msra.mxu0 0
  %409 = vmatpush.bf16.msra.mxu0 0
  %410 = vmatpush.bf16.msra.mxu0 0
  %411 = vmatpush.bf16.msra.mxu0 0
  %412 = vmatpush.bf16.msra.mxu0 %v400
  %413 = vmatmul.bf16.gmra.mxu0 %v403
  %v414 = vpop.f32.mrf.mxu0
  %v415 = vadd.f32 0.0, %v414
  %v416 = vpop.f32.mrf.mxu0
  %v417 = vadd.f32 0.0, %v416
  %418 = vdwg.mxu0
  %v421 = vunpack.c.l.b16 %v392
  %v422 = vunpack.c.l.b16 %v393
  %v423 = vpack.c.b16 %v422, %v421
  %424 = vrot.lane.b32.xlu0 %v158, 60
  %v425 = vpop.permute.xlu0 %424
  %v428 = vsel %vm189, %v423, 0
  %430 = vmatpush.bf16.msra.mxu0 0
  %431 = vmatpush.bf16.msra.mxu0 0
  %432 = vmatpush.bf16.msra.mxu0 0
  %433 = vmatpush.bf16.msra.mxu0 0
  %434 = vmatpush.bf16.msra.mxu0 0
  %435 = vmatpush.bf16.msra.mxu0 0
  %436 = vmatpush.bf16.msra.mxu0 0
  %437 = vmatpush.bf16.msra.mxu0 %v425
  %438 = vmatmul.bf16.gmra.mxu0 %v428
  %v439 = vpop.f32.mrf.mxu0
  %v440 = vadd.f32 0.0, %v439
  %v441 = vpop.f32.mrf.mxu0
  %v442 = vadd.f32 0.0, %v441
  %443 = vdwg.mxu0
  %v444 = vpack.c.bf16 %v417, %v415
  %v445 = vpack.c.bf16 %v442, %v440
  %v447 = vunpack.c.l.b16 %v118
  %v448 = vpack.c.b16 %v447, %v447
  %v449 = vrot.slane %v448, 2
  %v451 = vsel %vm133, %v444, 0
  %v454 = vsel %vm133, %v445, 0
  %vm456 = vcmask 1041408
  %v458 = vsel %vm456, %v449, 0
  %460 = vmatpush.bf16.msra.mxu0 0
  %461 = vmatpush.bf16.msra.mxu0 0
  %462 = vmatpush.bf16.msra.mxu0 0
  %463 = vmatpush.bf16.msra.mxu0 0
  %464 = vmatpush.bf16.msra.mxu0 0
  %465 = vmatpush.bf16.msra.mxu0 0
  %466 = vmatpush.bf16.msra.mxu0 0
  %467 = vmatpush.bf16.msra.mxu0 %v458
  %468 = vmatmul.bf16.gmra.mxu0 %v451
  %v469 = vpop.f32.mrf.mxu0
  %v470 = vadd.f32 0.0, %v469
  %v471 = vpop.f32.mrf.mxu0
  %v472 = vadd.f32 0.0, %v471
  %473 = vmatmul.bf16.gmra.mxu0 %v454
  %v474 = vpop.f32.mrf.mxu0
  %v475 = vadd.f32 0.0, %v474
  %v476 = vpop.f32.mrf.mxu0
  %v477 = vadd.f32 0.0, %v476
  %478 = vdwg.mxu0
  %v480 = vsel %vm133, %v288, 0
  %v483 = vsel %vm133, %v289, 0
  %v486 = vsel %vm456, %v118, 0
  %488 = vmatpush.bf16.msra.mxu0 0
  %489 = vmatpush.bf16.msra.mxu0 0
  %490 = vmatpush.bf16.msra.mxu0 0
  %491 = vmatpush.bf16.msra.mxu0 0
  %492 = vmatpush.bf16.msra.mxu0 0
  %493 = vmatpush.bf16.msra.mxu0 0
  %494 = vmatpush.bf16.msra.mxu0 0
  %495 = vmatpush.bf16.msra.mxu0 %v486
  %496 = vmatmul.bf16.gmra.mxu0 %v480
  %v497 = vpop.f32.mrf.mxu0
  %v498 = vadd.f32 %v470, %v497
  %v499 = vpop.f32.mrf.mxu0
  %v500 = vadd.f32 %v472, %v499
  %501 = vmatmul.bf16.gmra.mxu0 %v483
  %v502 = vpop.f32.mrf.mxu0
  %v503 = vadd.f32 %v475, %v502
  %v504 = vpop.f32.mrf.mxu0
  %v505 = vadd.f32 %v477, %v504
  %506 = vdwg.mxu0
  %507 = vrot.lane.b32.xlu0 %v130, 120
  %v508 = vpop.permute.xlu0 %507
  %509 = vrot.lane.b32.xlu0 %v130, 88
  %v510 = vpop.permute.xlu0 %509
  %v512 = vsel %vm133, %v508, 0
  %v515 = vsel %vm133, %v510, 0
  %517 = vmatpush.bf16.xpose.msra.mxu0 0
  %518 = vmatpush.bf16.xpose.msra.mxu0 0
  %519 = vmatpush.bf16.xpose.msra.mxu0 0
  %520 = vmatpush.bf16.xpose.msra.mxu0 0
  %521 = vmatpush.bf16.xpose.msra.mxu0 0
  %522 = vmatpush.bf16.xpose.msra.mxu0 0
  %523 = vmatpush.bf16.xpose.msra.mxu0 0
  %524 = vmatpush.bf16.xpose.msra.mxu0 %v515
  %525 = vmatmul.bf16.gmra.mxu0 %v512
  %v526 = vpop.f32.mrf.mxu0
  %v527 = vadd.f32 0.0, %v526
  %v528 = vpop.f32.mrf.mxu0
  %v529 = vadd.f32 0.0, %v528
  %530 = vdwg.mxu0
  %531 = vrot.lane.b32.xlu0 %v158, 120
  %v532 = vpop.permute.xlu0 %531
  %533 = vrot.lane.b32.xlu0 %v158, 88
  %v534 = vpop.permute.xlu0 %533
  %v536 = vsel %vm133, %v532, 0
  %v539 = vsel %vm133, %v534, 0
  %541 = vmatpush.bf16.xpose.msra.mxu0 0
  %542 = vmatpush.bf16.xpose.msra.mxu0 0
  %543 = vmatpush.bf16.xpose.msra.mxu0 0
  %544 = vmatpush.bf16.xpose.msra.mxu0 0
  %545 = vmatpush.bf16.xpose.msra.mxu0 0
  %546 = vmatpush.bf16.xpose.msra.mxu0 0
  %547 = vmatpush.bf16.xpose.msra.mxu0 0
  %548 = vmatpush.bf16.xpose.msra.mxu0 %v539
  %549 = vmatmul.bf16.gmra.mxu0 %v536
  %v550 = vpop.f32.mrf.mxu0
  %v551 = vadd.f32 0.0, %v550
  %v552 = vpop.f32.mrf.mxu0
  %v553 = vadd.f32 0.0, %v552
  %554 = vdwg.mxu0
  %v555 = vmul.f32 %v527, 0.5
  %v556 = vmul.f32 %v529, 0.5
  %v557 = vmul.f32 %v551, 0.5
  %v558 = vmul.f32 %v553, 0.5
  %v559 = vadd.f32 %v555, %v116
  %v560 = vadd.f32 %v556, %v117
  %v561 = vadd.f32 %v557, %v116
  %v562 = vadd.f32 %v558, %v117
  %v563 = vsel %vm189, %v559, -inf
  %564 = vmax.xlane.f32.xlu0 %v563
  %v565 = vpop.xlane.xlu0 %564
  %v566 = vsel %vm189, %v560, -inf
  %567 = vmax.xlane.f32.xlu0 %v566
  %v568 = vpop.xlane.xlu0 %567
  %v569 = vsel %vm189, %v561, -inf
  %570 = vmax.xlane.f32.xlu0 %v569
  %v571 = vpop.xlane.xlu0 %570
  %v572 = vsel %vm189, %v562, -inf
  %573 = vmax.xlane.f32.xlu0 %v572
  %v574 = vpop.xlane.xlu0 %573
  %v575 = vsub.f32 %v559, %v565
  %v576 = vsub.f32 %v560, %v568
  %v577 = vsub.f32 %v561, %v571
  %v578 = vsub.f32 %v562, %v574
  %v579 = vmul.f32 %v575, 1.442695
  %v580 = vpow.pop %v579
  %v581 = vmul.f32 %v576, 1.442695
  %v582 = vpow.pop %v581
  %v583 = vmul.f32 %v577, 1.442695
  %v584 = vpow.pop %v583
  %v585 = vmul.f32 %v578, 1.442695
  %v586 = vpow.pop %v585
  %v587 = vsel %vm189, %v580, 0.0
  %588 = vadd.xlane.f32.xlu0 %v587
  %v589 = vpop.xlane.xlu0 %588
  %v590 = vsel %vm189, %v582, 0.0
  %591 = vadd.xlane.f32.xlu0 %v590
  %v592 = vpop.xlane.xlu0 %591
  %v593 = vsel %vm189, %v584, 0.0
  %594 = vadd.xlane.f32.xlu0 %v593
  %v595 = vpop.xlane.xlu0 %594
  %v596 = vsel %vm189, %v586, 0.0
  %597 = vadd.xlane.f32.xlu0 %v596
  %v598 = vpop.xlane.xlu0 %597
  %v599 = vrcp.pop %v589
  %v600 = vrcp.pop %v592
  %v601 = vrcp.pop %v595
  %v602 = vrcp.pop %v598
  %v603 = vmul.f32 %v580, %v599
  %v604 = vmul.f32 %v582, %v600
  %v605 = vmul.f32 %v584, %v601
  %v606 = vmul.f32 %v586, %v602
  %v607 = vpack.c.bf16 %v603, %v603
  %v608 = vpack.c.bf16 %v604, %v604
  %v609 = vpack.c.bf16 %v605, %v605
  %v610 = vpack.c.bf16 %v606, %v606
  %v613 = vunpack.c.l.b16 %v607
  %v614 = vunpack.c.l.b16 %v608
  %v615 = vpack.c.b16 %v614, %v613
  %616 = vrot.lane.b32.xlu0 %v130, 56
  %v617 = vpop.permute.xlu0 %616
  %v620 = vsel %vm189, %v615, 0
  %622 = vmatpush.bf16.msra.mxu0 0
  %623 = vmatpush.bf16.msra.mxu0 0
  %624 = vmatpush.bf16.msra.mxu0 0
  %625 = vmatpush.bf16.msra.mxu0 0
  %626 = vmatpush.bf16.msra.mxu0 0
  %627 = vmatpush.bf16.msra.mxu0 0
  %628 = vmatpush.bf16.msra.mxu0 0
  %629 = vmatpush.bf16.msra.mxu0 %v617
  %630 = vmatmul.bf16.gmra.mxu0 %v620
  %v631 = vpop.f32.mrf.mxu0
  %v632 = vadd.f32 0.0, %v631
  %v633 = vpop.f32.mrf.mxu0
  %v634 = vadd.f32 0.0, %v633
  %635 = vdwg.mxu0
  %v638 = vunpack.c.l.b16 %v609
  %v639 = vunpack.c.l.b16 %v610
  %v640 = vpack.c.b16 %v639, %v638
  %641 = vrot.lane.b32.xlu0 %v158, 56
  %v642 = vpop.permute.xlu0 %641
  %v645 = vsel %vm189, %v640, 0
  %647 = vmatpush.bf16.msra.mxu0 0
  %648 = vmatpush.bf16.msra.mxu0 0
  %649 = vmatpush.bf16.msra.mxu0 0
  %650 = vmatpush.bf16.msra.mxu0 0
  %651 = vmatpush.bf16.msra.mxu0 0
  %652 = vmatpush.bf16.msra.mxu0 0
  %653 = vmatpush.bf16.msra.mxu0 0
  %654 = vmatpush.bf16.msra.mxu0 %v642
  %655 = vmatmul.bf16.gmra.mxu0 %v645
  %v656 = vpop.f32.mrf.mxu0
  %v657 = vadd.f32 0.0, %v656
  %v658 = vpop.f32.mrf.mxu0
  %v659 = vadd.f32 0.0, %v658
  %660 = vdwg.mxu0
  %v661 = vpack.c.bf16 %v634, %v632
  %v662 = vpack.c.bf16 %v659, %v657
  %v664 = vsel %vm133, %v661, 0
  %v667 = vsel %vm133, %v662, 0
  %v670 = vsel %vm456, %v119, 0
  %672 = vmatpush.bf16.msra.mxu0 0
  %673 = vmatpush.bf16.msra.mxu0 0
  %674 = vmatpush.bf16.msra.mxu0 0
  %675 = vmatpush.bf16.msra.mxu0 0
  %676 = vmatpush.bf16.msra.mxu0 0
  %677 = vmatpush.bf16.msra.mxu0 0
  %678 = vmatpush.bf16.msra.mxu0 0
  %679 = vmatpush.bf16.msra.mxu0 %v670
  %680 = vmatmul.bf16.gmra.mxu0 %v664
  %v681 = vpop.f32.mrf.mxu0
  %v682 = vadd.f32 0.0, %v681
  %v683 = vpop.f32.mrf.mxu0
  %v684 = vadd.f32 0.0, %v683
  %685 = vmatmul.bf16.gmra.mxu0 %v667
  %v686 = vpop.f32.mrf.mxu0
  %v687 = vadd.f32 0.0, %v686
  %v688 = vpop.f32.mrf.mxu0
  %v689 = vadd.f32 0.0, %v688
  %690 = vdwg.mxu0
  %v691 = vadd.f32 %v498, %v682
  %v692 = vadd.f32 %v500, %v684
  %v693 = vadd.f32 %v503, %v687
  %v694 = vadd.f32 %v505, %v689
  %695 = vrot.lane.b32.xlu0 %v130, 116
  %v696 = vpop.permute.xlu0 %695
  %697 = vrot.lane.b32.xlu0 %v130, 84
  %v698 = vpop.permute.xlu0 %697
  %v700 = vsel %vm133, %v696, 0
  %v703 = vsel %vm133, %v698, 0
  %705 = vmatpush.bf16.xpose.msra.mxu0 0
  %706 = vmatpush.bf16.xpose.msra.mxu0 0
  %707 = vmatpush.bf16.xpose.msra.mxu0 0
  %708 = vmatpush.bf16.xpose.msra.mxu0 0
  %709 = vmatpush.bf16.xpose.msra.mxu0 0
  %710 = vmatpush.bf16.xpose.msra.mxu0 0
  %711 = vmatpush.bf16.xpose.msra.mxu0 0
  %712 = vmatpush.bf16.xpose.msra.mxu0 %v703
  %713 = vmatmul.bf16.gmra.mxu0 %v700
  %v714 = vpop.f32.mrf.mxu0
  %v715 = vadd.f32 0.0, %v714
  %v716 = vpop.f32.mrf.mxu0
  %v717 = vadd.f32 0.0, %v716
  %718 = vdwg.mxu0
  %719 = vrot.lane.b32.xlu0 %v158, 116
  %v720 = vpop.permute.xlu0 %719
  %721 = vrot.lane.b32.xlu0 %v158, 84
  %v722 = vpop.permute.xlu0 %721
  %v724 = vsel %vm133, %v720, 0
  %v727 = vsel %vm133, %v722, 0
  %729 = vmatpush.bf16.xpose.msra.mxu0 0
  %730 = vmatpush.bf16.xpose.msra.mxu0 0
  %731 = vmatpush.bf16.xpose.msra.mxu0 0
  %732 = vmatpush.bf16.xpose.msra.mxu0 0
  %733 = vmatpush.bf16.xpose.msra.mxu0 0
  %734 = vmatpush.bf16.xpose.msra.mxu0 0
  %735 = vmatpush.bf16.xpose.msra.mxu0 0
  %736 = vmatpush.bf16.xpose.msra.mxu0 %v727
  %737 = vmatmul.bf16.gmra.mxu0 %v724
  %v738 = vpop.f32.mrf.mxu0
  %v739 = vadd.f32 0.0, %v738
  %v740 = vpop.f32.mrf.mxu0
  %v741 = vadd.f32 0.0, %v740
  %742 = vdwg.mxu0
  %v743 = vmul.f32 %v715, 0.5
  %v744 = vmul.f32 %v717, 0.5
  %v745 = vmul.f32 %v739, 0.5
  %v746 = vmul.f32 %v741, 0.5
  %v747 = vadd.f32 %v743, %v116
  %v748 = vadd.f32 %v744, %v117
  %v749 = vadd.f32 %v745, %v116
  %v750 = vadd.f32 %v746, %v117
  %v751 = vsel %vm189, %v747, -inf
  %752 = vmax.xlane.f32.xlu0 %v751
  %v753 = vpop.xlane.xlu0 %752
  %v754 = vsel %vm189, %v748, -inf
  %755 = vmax.xlane.f32.xlu0 %v754
  %v756 = vpop.xlane.xlu0 %755
  %v757 = vsel %vm189, %v749, -inf
  %758 = vmax.xlane.f32.xlu0 %v757
  %v759 = vpop.xlane.xlu0 %758
  %v760 = vsel %vm189, %v750, -inf
  %761 = vmax.xlane.f32.xlu0 %v760
  %v762 = vpop.xlane.xlu0 %761
  %v763 = vsub.f32 %v747, %v753
  %v764 = vsub.f32 %v748, %v756
  %v765 = vsub.f32 %v749, %v759
  %v766 = vsub.f32 %v750, %v762
  %v767 = vmul.f32 %v763, 1.442695
  %v768 = vpow.pop %v767
  %v769 = vmul.f32 %v764, 1.442695
  %v770 = vpow.pop %v769
  %v771 = vmul.f32 %v765, 1.442695
  %v772 = vpow.pop %v771
  %v773 = vmul.f32 %v766, 1.442695
  %v774 = vpow.pop %v773
  %v775 = vsel %vm189, %v768, 0.0
  %776 = vadd.xlane.f32.xlu0 %v775
  %v777 = vpop.xlane.xlu0 %776
  %v778 = vsel %vm189, %v770, 0.0
  %779 = vadd.xlane.f32.xlu0 %v778
  %v780 = vpop.xlane.xlu0 %779
  %v781 = vsel %vm189, %v772, 0.0
  %782 = vadd.xlane.f32.xlu0 %v781
  %v783 = vpop.xlane.xlu0 %782
  %v784 = vsel %vm189, %v774, 0.0
  %785 = vadd.xlane.f32.xlu0 %v784
  %v786 = vpop.xlane.xlu0 %785
  %v787 = vrcp.pop %v777
  %v788 = vrcp.pop %v780
  %v789 = vrcp.pop %v783
  %v790 = vrcp.pop %v786
  %v791 = vmul.f32 %v768, %v787
  %v792 = vmul.f32 %v770, %v788
  %v793 = vmul.f32 %v772, %v789
  %v794 = vmul.f32 %v774, %v790
  %v795 = vpack.c.bf16 %v791, %v791
  %v796 = vpack.c.bf16 %v792, %v792
  %v797 = vpack.c.bf16 %v793, %v793
  %v798 = vpack.c.bf16 %v794, %v794
  %v801 = vunpack.c.l.b16 %v795
  %v802 = vunpack.c.l.b16 %v796
  %v803 = vpack.c.b16 %v802, %v801
  %804 = vrot.lane.b32.xlu0 %v130, 52
  %v805 = vpop.permute.xlu0 %804
  %v808 = vsel %vm189, %v803, 0
  %810 = vmatpush.bf16.msra.mxu0 0
  %811 = vmatpush.bf16.msra.mxu0 0
  %812 = vmatpush.bf16.msra.mxu0 0
  %813 = vmatpush.bf16.msra.mxu0 0
  %814 = vmatpush.bf16.msra.mxu0 0
  %815 = vmatpush.bf16.msra.mxu0 0
  %816 = vmatpush.bf16.msra.mxu0 0
  %817 = vmatpush.bf16.msra.mxu0 %v805
  %818 = vmatmul.bf16.gmra.mxu0 %v808
  %v819 = vpop.f32.mrf.mxu0
  %v820 = vadd.f32 0.0, %v819
  %v821 = vpop.f32.mrf.mxu0
  %v822 = vadd.f32 0.0, %v821
  %823 = vdwg.mxu0
  %v826 = vunpack.c.l.b16 %v797
  %v827 = vunpack.c.l.b16 %v798
  %v828 = vpack.c.b16 %v827, %v826
  %829 = vrot.lane.b32.xlu0 %v158, 52
  %v830 = vpop.permute.xlu0 %829
  %v833 = vsel %vm189, %v828, 0
  %835 = vmatpush.bf16.msra.mxu0 0
  %836 = vmatpush.bf16.msra.mxu0 0
  %837 = vmatpush.bf16.msra.mxu0 0
  %838 = vmatpush.bf16.msra.mxu0 0
  %839 = vmatpush.bf16.msra.mxu0 0
  %840 = vmatpush.bf16.msra.mxu0 0
  %841 = vmatpush.bf16.msra.mxu0 0
  %842 = vmatpush.bf16.msra.mxu0 %v830
  %843 = vmatmul.bf16.gmra.mxu0 %v833
  %v844 = vpop.f32.mrf.mxu0
  %v845 = vadd.f32 0.0, %v844
  %v846 = vpop.f32.mrf.mxu0
  %v847 = vadd.f32 0.0, %v846
  %848 = vdwg.mxu0
  %v849 = vpack.c.bf16 %v822, %v820
  %v850 = vpack.c.bf16 %v847, %v845
  %v852 = vunpack.c.l.b16 %v119
  %v853 = vpack.c.b16 %v852, %v852
  %v854 = vrot.slane %v853, 2
  %v856 = vsel %vm133, %v849, 0
  %v859 = vsel %vm133, %v850, 0
  %v862 = vsel %vm456, %v854, 0
  %864 = vmatpush.bf16.msra.mxu0 0
  %865 = vmatpush.bf16.msra.mxu0 0
  %866 = vmatpush.bf16.msra.mxu0 0
  %867 = vmatpush.bf16.msra.mxu0 0
  %868 = vmatpush.bf16.msra.mxu0 0
  %869 = vmatpush.bf16.msra.mxu0 0
  %870 = vmatpush.bf16.msra.mxu0 0
  %871 = vmatpush.bf16.msra.mxu0 %v862
  %872 = vmatmul.bf16.gmra.mxu0 %v856
  %v873 = vpop.f32.mrf.mxu0
  %v874 = vadd.f32 0.0, %v873
  %v875 = vpop.f32.mrf.mxu0
  %v876 = vadd.f32 0.0, %v875
  %877 = vmatmul.bf16.gmra.mxu0 %v859
  %v878 = vpop.f32.mrf.mxu0
  %v879 = vadd.f32 0.0, %v878
  %v880 = vpop.f32.mrf.mxu0
  %v881 = vadd.f32 0.0, %v880
  %882 = vdwg.mxu0
  %v883 = vadd.f32 %v691, %v874
  %v884 = vadd.f32 %v692, %v876
  %v885 = vadd.f32 %v693, %v879
  %v886 = vadd.f32 %v694, %v881
  %887 = vrot.lane.b32.xlu0 %v130, 112
  %v888 = vpop.permute.xlu0 %887
  %889 = vrot.lane.b32.xlu0 %v130, 80
  %v890 = vpop.permute.xlu0 %889
  %v892 = vsel %vm133, %v888, 0
  %v895 = vsel %vm133, %v890, 0
  %897 = vmatpush.bf16.xpose.msra.mxu0 0
  %898 = vmatpush.bf16.xpose.msra.mxu0 0
  %899 = vmatpush.bf16.xpose.msra.mxu0 0
  %900 = vmatpush.bf16.xpose.msra.mxu0 0
  %901 = vmatpush.bf16.xpose.msra.mxu0 0
  %902 = vmatpush.bf16.xpose.msra.mxu0 0
  %903 = vmatpush.bf16.xpose.msra.mxu0 0
  %904 = vmatpush.bf16.xpose.msra.mxu0 %v895
  %905 = vmatmul.bf16.gmra.mxu0 %v892
  %v906 = vpop.f32.mrf.mxu0
  %v907 = vadd.f32 0.0, %v906
  %v908 = vpop.f32.mrf.mxu0
  %v909 = vadd.f32 0.0, %v908
  %910 = vdwg.mxu0
  %911 = vrot.lane.b32.xlu0 %v158, 112
  %v912 = vpop.permute.xlu0 %911
  %913 = vrot.lane.b32.xlu0 %v158, 80
  %v914 = vpop.permute.xlu0 %913
  %v916 = vsel %vm133, %v912, 0
  %v919 = vsel %vm133, %v914, 0
  %921 = vmatpush.bf16.xpose.msra.mxu0 0
  %922 = vmatpush.bf16.xpose.msra.mxu0 0
  %923 = vmatpush.bf16.xpose.msra.mxu0 0
  %924 = vmatpush.bf16.xpose.msra.mxu0 0
  %925 = vmatpush.bf16.xpose.msra.mxu0 0
  %926 = vmatpush.bf16.xpose.msra.mxu0 0
  %927 = vmatpush.bf16.xpose.msra.mxu0 0
  %928 = vmatpush.bf16.xpose.msra.mxu0 %v919
  %929 = vmatmul.bf16.gmra.mxu0 %v916
  %v930 = vpop.f32.mrf.mxu0
  %v931 = vadd.f32 0.0, %v930
  %v932 = vpop.f32.mrf.mxu0
  %v933 = vadd.f32 0.0, %v932
  %934 = vdwg.mxu0
  %v935 = vmul.f32 %v907, 0.5
  %v936 = vmul.f32 %v909, 0.5
  %v937 = vmul.f32 %v931, 0.5
  %v938 = vmul.f32 %v933, 0.5
  %v939 = vadd.f32 %v935, %v116
  %v940 = vadd.f32 %v936, %v117
  %v941 = vadd.f32 %v937, %v116
  %v942 = vadd.f32 %v938, %v117
  %v943 = vsel %vm189, %v939, -inf
  %944 = vmax.xlane.f32.xlu0 %v943
  %v945 = vpop.xlane.xlu0 %944
  %v946 = vsel %vm189, %v940, -inf
  %947 = vmax.xlane.f32.xlu0 %v946
  %v948 = vpop.xlane.xlu0 %947
  %v949 = vsel %vm189, %v941, -inf
  %950 = vmax.xlane.f32.xlu0 %v949
  %v951 = vpop.xlane.xlu0 %950
  %v952 = vsel %vm189, %v942, -inf
  %953 = vmax.xlane.f32.xlu0 %v952
  %v954 = vpop.xlane.xlu0 %953
  %v955 = vsub.f32 %v939, %v945
  %v956 = vsub.f32 %v940, %v948
  %v957 = vsub.f32 %v941, %v951
  %v958 = vsub.f32 %v942, %v954
  %v959 = vmul.f32 %v955, 1.442695
  %v960 = vpow.pop %v959
  %v961 = vmul.f32 %v956, 1.442695
  %v962 = vpow.pop %v961
  %v963 = vmul.f32 %v957, 1.442695
  %v964 = vpow.pop %v963
  %v965 = vmul.f32 %v958, 1.442695
  %v966 = vpow.pop %v965
  %v967 = vsel %vm189, %v960, 0.0
  %968 = vadd.xlane.f32.xlu0 %v967
  %v969 = vpop.xlane.xlu0 %968
  %v970 = vsel %vm189, %v962, 0.0
  %971 = vadd.xlane.f32.xlu0 %v970
  %v972 = vpop.xlane.xlu0 %971
  %v973 = vsel %vm189, %v964, 0.0
  %974 = vadd.xlane.f32.xlu0 %v973
  %v975 = vpop.xlane.xlu0 %974
  %v976 = vsel %vm189, %v966, 0.0
  %977 = vadd.xlane.f32.xlu0 %v976
  %v978 = vpop.xlane.xlu0 %977
  %v979 = vrcp.pop %v969
  %v980 = vrcp.pop %v972
  %v981 = vrcp.pop %v975
  %v982 = vrcp.pop %v978
  %v983 = vmul.f32 %v960, %v979
  %v984 = vmul.f32 %v962, %v980
  %v985 = vmul.f32 %v964, %v981
  %v986 = vmul.f32 %v966, %v982
  %v987 = vpack.c.bf16 %v983, %v983
  %v988 = vpack.c.bf16 %v984, %v984
  %v989 = vpack.c.bf16 %v985, %v985
  %v990 = vpack.c.bf16 %v986, %v986
  %v993 = vunpack.c.l.b16 %v987
  %v994 = vunpack.c.l.b16 %v988
  %v995 = vpack.c.b16 %v994, %v993
  %996 = vrot.lane.b32.xlu0 %v130, 48
  %v997 = vpop.permute.xlu0 %996
  %v1000 = vsel %vm189, %v995, 0
  %1002 = vmatpush.bf16.msra.mxu0 0
  %1003 = vmatpush.bf16.msra.mxu0 0
  %1004 = vmatpush.bf16.msra.mxu0 0
  %1005 = vmatpush.bf16.msra.mxu0 0
  %1006 = vmatpush.bf16.msra.mxu0 0
  %1007 = vmatpush.bf16.msra.mxu0 0
  %1008 = vmatpush.bf16.msra.mxu0 0
  %1009 = vmatpush.bf16.msra.mxu0 %v997
  %1010 = vmatmul.bf16.gmra.mxu0 %v1000
  %v1011 = vpop.f32.mrf.mxu0
  %v1012 = vadd.f32 0.0, %v1011
  %v1013 = vpop.f32.mrf.mxu0
  %v1014 = vadd.f32 0.0, %v1013
  %1015 = vdwg.mxu0
  %v1018 = vunpack.c.l.b16 %v989
  %v1019 = vunpack.c.l.b16 %v990
  %v1020 = vpack.c.b16 %v1019, %v1018
  %1021 = vrot.lane.b32.xlu0 %v158, 48
  %v1022 = vpop.permute.xlu0 %1021
  %v1025 = vsel %vm189, %v1020, 0
  %1027 = vmatpush.bf16.msra.mxu0 0
  %1028 = vmatpush.bf16.msra.mxu0 0
  %1029 = vmatpush.bf16.msra.mxu0 0
  %1030 = vmatpush.bf16.msra.mxu0 0
  %1031 = vmatpush.bf16.msra.mxu0 0
  %1032 = vmatpush.bf16.msra.mxu0 0
  %1033 = vmatpush.bf16.msra.mxu0 0
  %1034 = vmatpush.bf16.msra.mxu0 %v1022
  %1035 = vmatmul.bf16.gmra.mxu0 %v1025
  %v1036 = vpop.f32.mrf.mxu0
  %v1037 = vadd.f32 0.0, %v1036
  %v1038 = vpop.f32.mrf.mxu0
  %v1039 = vadd.f32 0.0, %v1038
  %1040 = vdwg.mxu0
  %v1041 = vpack.c.bf16 %v1014, %v1012
  %v1042 = vpack.c.bf16 %v1039, %v1037
  %v1044 = vsel %vm133, %v1041, 0
  %v1047 = vsel %vm133, %v1042, 0
  %v1050 = vsel %vm456, %v120, 0
  %1052 = vmatpush.bf16.msra.mxu0 0
  %1053 = vmatpush.bf16.msra.mxu0 0
  %1054 = vmatpush.bf16.msra.mxu0 0
  %1055 = vmatpush.bf16.msra.mxu0 0
  %1056 = vmatpush.bf16.msra.mxu0 0
  %1057 = vmatpush.bf16.msra.mxu0 0
  %1058 = vmatpush.bf16.msra.mxu0 0
  %1059 = vmatpush.bf16.msra.mxu0 %v1050
  %1060 = vmatmul.bf16.gmra.mxu0 %v1044
  %v1061 = vpop.f32.mrf.mxu0
  %v1062 = vadd.f32 0.0, %v1061
  %v1063 = vpop.f32.mrf.mxu0
  %v1064 = vadd.f32 0.0, %v1063
  %1065 = vmatmul.bf16.gmra.mxu0 %v1047
  %v1066 = vpop.f32.mrf.mxu0
  %v1067 = vadd.f32 0.0, %v1066
  %v1068 = vpop.f32.mrf.mxu0
  %v1069 = vadd.f32 0.0, %v1068
  %1070 = vdwg.mxu0
  %v1071 = vadd.f32 %v883, %v1062
  %v1072 = vadd.f32 %v884, %v1064
  %v1073 = vadd.f32 %v885, %v1067
  %v1074 = vadd.f32 %v886, %v1069
  %1075 = vrot.lane.b32.xlu0 %v130, 108
  %v1076 = vpop.permute.xlu0 %1075
  %1077 = vrot.lane.b32.xlu0 %v130, 76
  %v1078 = vpop.permute.xlu0 %1077
  %v1080 = vsel %vm133, %v1076, 0
  %v1083 = vsel %vm133, %v1078, 0
  %1085 = vmatpush.bf16.xpose.msra.mxu0 0
  %1086 = vmatpush.bf16.xpose.msra.mxu0 0
  %1087 = vmatpush.bf16.xpose.msra.mxu0 0
  %1088 = vmatpush.bf16.xpose.msra.mxu0 0
  %1089 = vmatpush.bf16.xpose.msra.mxu0 0
  %1090 = vmatpush.bf16.xpose.msra.mxu0 0
  %1091 = vmatpush.bf16.xpose.msra.mxu0 0
  %1092 = vmatpush.bf16.xpose.msra.mxu0 %v1083
  %1093 = vmatmul.bf16.gmra.mxu0 %v1080
  %v1094 = vpop.f32.mrf.mxu0
  %v1095 = vadd.f32 0.0, %v1094
  %v1096 = vpop.f32.mrf.mxu0
  %v1097 = vadd.f32 0.0, %v1096
  %1098 = vdwg.mxu0
  %1099 = vrot.lane.b32.xlu0 %v158, 108
  %v1100 = vpop.permute.xlu0 %1099
  %1101 = vrot.lane.b32.xlu0 %v158, 76
  %v1102 = vpop.permute.xlu0 %1101
  %v1104 = vsel %vm133, %v1100, 0
  %v1107 = vsel %vm133, %v1102, 0
  %1109 = vmatpush.bf16.xpose.msra.mxu0 0
  %1110 = vmatpush.bf16.xpose.msra.mxu0 0
  %1111 = vmatpush.bf16.xpose.msra.mxu0 0
  %1112 = vmatpush.bf16.xpose.msra.mxu0 0
  %1113 = vmatpush.bf16.xpose.msra.mxu0 0
  %1114 = vmatpush.bf16.xpose.msra.mxu0 0
  %1115 = vmatpush.bf16.xpose.msra.mxu0 0
  %1116 = vmatpush.bf16.xpose.msra.mxu0 %v1107
  %1117 = vmatmul.bf16.gmra.mxu0 %v1104
  %v1118 = vpop.f32.mrf.mxu0
  %v1119 = vadd.f32 0.0, %v1118
  %v1120 = vpop.f32.mrf.mxu0
  %v1121 = vadd.f32 0.0, %v1120
  %1122 = vdwg.mxu0
  %v1123 = vmul.f32 %v1095, 0.5
  %v1124 = vmul.f32 %v1097, 0.5
  %v1125 = vmul.f32 %v1119, 0.5
  %v1126 = vmul.f32 %v1121, 0.5
  %v1127 = vadd.f32 %v1123, %v116
  %v1128 = vadd.f32 %v1124, %v117
  %v1129 = vadd.f32 %v1125, %v116
  %v1130 = vadd.f32 %v1126, %v117
  %v1131 = vsel %vm189, %v1127, -inf
  %1132 = vmax.xlane.f32.xlu0 %v1131
  %v1133 = vpop.xlane.xlu0 %1132
  %v1134 = vsel %vm189, %v1128, -inf
  %1135 = vmax.xlane.f32.xlu0 %v1134
  %v1136 = vpop.xlane.xlu0 %1135
  %v1137 = vsel %vm189, %v1129, -inf
  %1138 = vmax.xlane.f32.xlu0 %v1137
  %v1139 = vpop.xlane.xlu0 %1138
  %v1140 = vsel %vm189, %v1130, -inf
  %1141 = vmax.xlane.f32.xlu0 %v1140
  %v1142 = vpop.xlane.xlu0 %1141
  %v1143 = vsub.f32 %v1127, %v1133
  %v1144 = vsub.f32 %v1128, %v1136
  %v1145 = vsub.f32 %v1129, %v1139
  %v1146 = vsub.f32 %v1130, %v1142
  %v1147 = vmul.f32 %v1143, 1.442695
  %v1148 = vpow.pop %v1147
  %v1149 = vmul.f32 %v1144, 1.442695
  %v1150 = vpow.pop %v1149
  %v1151 = vmul.f32 %v1145, 1.442695
  %v1152 = vpow.pop %v1151
  %v1153 = vmul.f32 %v1146, 1.442695
  %v1154 = vpow.pop %v1153
  %v1155 = vsel %vm189, %v1148, 0.0
  %1156 = vadd.xlane.f32.xlu0 %v1155
  %v1157 = vpop.xlane.xlu0 %1156
  %v1158 = vsel %vm189, %v1150, 0.0
  %1159 = vadd.xlane.f32.xlu0 %v1158
  %v1160 = vpop.xlane.xlu0 %1159
  %v1161 = vsel %vm189, %v1152, 0.0
  %1162 = vadd.xlane.f32.xlu0 %v1161
  %v1163 = vpop.xlane.xlu0 %1162
  %v1164 = vsel %vm189, %v1154, 0.0
  %1165 = vadd.xlane.f32.xlu0 %v1164
  %v1166 = vpop.xlane.xlu0 %1165
  %v1167 = vrcp.pop %v1157
  %v1168 = vrcp.pop %v1160
  %v1169 = vrcp.pop %v1163
  %v1170 = vrcp.pop %v1166
  %v1171 = vmul.f32 %v1148, %v1167
  %v1172 = vmul.f32 %v1150, %v1168
  %v1173 = vmul.f32 %v1152, %v1169
  %v1174 = vmul.f32 %v1154, %v1170
  %v1175 = vpack.c.bf16 %v1171, %v1171
  %v1176 = vpack.c.bf16 %v1172, %v1172
  %v1177 = vpack.c.bf16 %v1173, %v1173
  %v1178 = vpack.c.bf16 %v1174, %v1174
  %v1181 = vunpack.c.l.b16 %v1175
  %v1182 = vunpack.c.l.b16 %v1176
  %v1183 = vpack.c.b16 %v1182, %v1181
  %1184 = vrot.lane.b32.xlu0 %v130, 44
  %v1185 = vpop.permute.xlu0 %1184
  %v1188 = vsel %vm189, %v1183, 0
  %1190 = vmatpush.bf16.msra.mxu0 0
  %1191 = vmatpush.bf16.msra.mxu0 0
  %1192 = vmatpush.bf16.msra.mxu0 0
  %1193 = vmatpush.bf16.msra.mxu0 0
  %1194 = vmatpush.bf16.msra.mxu0 0
  %1195 = vmatpush.bf16.msra.mxu0 0
  %1196 = vmatpush.bf16.msra.mxu0 0
  %1197 = vmatpush.bf16.msra.mxu0 %v1185
  %1198 = vmatmul.bf16.gmra.mxu0 %v1188
  %v1199 = vpop.f32.mrf.mxu0
  %v1200 = vadd.f32 0.0, %v1199
  %v1201 = vpop.f32.mrf.mxu0
  %v1202 = vadd.f32 0.0, %v1201
  %1203 = vdwg.mxu0
  %v1206 = vunpack.c.l.b16 %v1177
  %v1207 = vunpack.c.l.b16 %v1178
  %v1208 = vpack.c.b16 %v1207, %v1206
  %1209 = vrot.lane.b32.xlu0 %v158, 44
  %v1210 = vpop.permute.xlu0 %1209
  %v1213 = vsel %vm189, %v1208, 0
  %1215 = vmatpush.bf16.msra.mxu0 0
  %1216 = vmatpush.bf16.msra.mxu0 0
  %1217 = vmatpush.bf16.msra.mxu0 0
  %1218 = vmatpush.bf16.msra.mxu0 0
  %1219 = vmatpush.bf16.msra.mxu0 0
  %1220 = vmatpush.bf16.msra.mxu0 0
  %1221 = vmatpush.bf16.msra.mxu0 0
  %1222 = vmatpush.bf16.msra.mxu0 %v1210
  %1223 = vmatmul.bf16.gmra.mxu0 %v1213
  %v1224 = vpop.f32.mrf.mxu0
  %v1225 = vadd.f32 0.0, %v1224
  %v1226 = vpop.f32.mrf.mxu0
  %v1227 = vadd.f32 0.0, %v1226
  %1228 = vdwg.mxu0
  %v1229 = vpack.c.bf16 %v1202, %v1200
  %v1230 = vpack.c.bf16 %v1227, %v1225
  %v1232 = vunpack.c.l.b16 %v120
  %v1233 = vpack.c.b16 %v1232, %v1232
  %v1234 = vrot.slane %v1233, 2
  %v1236 = vsel %vm133, %v1229, 0
  %v1239 = vsel %vm133, %v1230, 0
  %v1242 = vsel %vm456, %v1234, 0
  %1244 = vmatpush.bf16.msra.mxu0 0
  %1245 = vmatpush.bf16.msra.mxu0 0
  %1246 = vmatpush.bf16.msra.mxu0 0
  %1247 = vmatpush.bf16.msra.mxu0 0
  %1248 = vmatpush.bf16.msra.mxu0 0
  %1249 = vmatpush.bf16.msra.mxu0 0
  %1250 = vmatpush.bf16.msra.mxu0 0
  %1251 = vmatpush.bf16.msra.mxu0 %v1242
  %1252 = vmatmul.bf16.gmra.mxu0 %v1236
  %v1253 = vpop.f32.mrf.mxu0
  %v1254 = vadd.f32 0.0, %v1253
  %v1255 = vpop.f32.mrf.mxu0
  %v1256 = vadd.f32 0.0, %v1255
  %1257 = vmatmul.bf16.gmra.mxu0 %v1239
  %v1258 = vpop.f32.mrf.mxu0
  %v1259 = vadd.f32 0.0, %v1258
  %v1260 = vpop.f32.mrf.mxu0
  %v1261 = vadd.f32 0.0, %v1260
  %1262 = vdwg.mxu0
  %v1263 = vadd.f32 %v1071, %v1254
  %v1264 = vadd.f32 %v1072, %v1256
  %v1265 = vadd.f32 %v1073, %v1259
  %v1266 = vadd.f32 %v1074, %v1261
  %1267 = vrot.lane.b32.xlu0 %v130, 104
  %v1268 = vpop.permute.xlu0 %1267
  %1269 = vrot.lane.b32.xlu0 %v130, 72
  %v1270 = vpop.permute.xlu0 %1269
  %v1272 = vsel %vm133, %v1268, 0
  %v1275 = vsel %vm133, %v1270, 0
  %1277 = vmatpush.bf16.xpose.msra.mxu0 0
  %1278 = vmatpush.bf16.xpose.msra.mxu0 0
  %1279 = vmatpush.bf16.xpose.msra.mxu0 0
  %1280 = vmatpush.bf16.xpose.msra.mxu0 0
  %1281 = vmatpush.bf16.xpose.msra.mxu0 0
  %1282 = vmatpush.bf16.xpose.msra.mxu0 0
  %1283 = vmatpush.bf16.xpose.msra.mxu0 0
  %1284 = vmatpush.bf16.xpose.msra.mxu0 %v1275
  %1285 = vmatmul.bf16.gmra.mxu0 %v1272
  %v1286 = vpop.f32.mrf.mxu0
  %v1287 = vadd.f32 0.0, %v1286
  %v1288 = vpop.f32.mrf.mxu0
  %v1289 = vadd.f32 0.0, %v1288
  %1290 = vdwg.mxu0
  %1291 = vrot.lane.b32.xlu0 %v158, 104
  %v1292 = vpop.permute.xlu0 %1291
  %1293 = vrot.lane.b32.xlu0 %v158, 72
  %v1294 = vpop.permute.xlu0 %1293
  %v1296 = vsel %vm133, %v1292, 0
  %v1299 = vsel %vm133, %v1294, 0
  %1301 = vmatpush.bf16.xpose.msra.mxu0 0
  %1302 = vmatpush.bf16.xpose.msra.mxu0 0
  %1303 = vmatpush.bf16.xpose.msra.mxu0 0
  %1304 = vmatpush.bf16.xpose.msra.mxu0 0
  %1305 = vmatpush.bf16.xpose.msra.mxu0 0
  %1306 = vmatpush.bf16.xpose.msra.mxu0 0
  %1307 = vmatpush.bf16.xpose.msra.mxu0 0
  %1308 = vmatpush.bf16.xpose.msra.mxu0 %v1299
  %1309 = vmatmul.bf16.gmra.mxu0 %v1296
  %v1310 = vpop.f32.mrf.mxu0
  %v1311 = vadd.f32 0.0, %v1310
  %v1312 = vpop.f32.mrf.mxu0
  %v1313 = vadd.f32 0.0, %v1312
  %1314 = vdwg.mxu0
  %v1315 = vmul.f32 %v1287, 0.5
  %v1316 = vmul.f32 %v1289, 0.5
  %v1317 = vmul.f32 %v1311, 0.5
  %v1318 = vmul.f32 %v1313, 0.5
  %v1319 = vadd.f32 %v1315, %v116
  %v1320 = vadd.f32 %v1316, %v117
  %v1321 = vadd.f32 %v1317, %v116
  %v1322 = vadd.f32 %v1318, %v117
  %v1323 = vsel %vm189, %v1319, -inf
  %1324 = vmax.xlane.f32.xlu0 %v1323
  %v1325 = vpop.xlane.xlu0 %1324
  %v1326 = vsel %vm189, %v1320, -inf
  %1327 = vmax.xlane.f32.xlu0 %v1326
  %v1328 = vpop.xlane.xlu0 %1327
  %v1329 = vsel %vm189, %v1321, -inf
  %1330 = vmax.xlane.f32.xlu0 %v1329
  %v1331 = vpop.xlane.xlu0 %1330
  %v1332 = vsel %vm189, %v1322, -inf
  %1333 = vmax.xlane.f32.xlu0 %v1332
  %v1334 = vpop.xlane.xlu0 %1333
  %v1335 = vsub.f32 %v1319, %v1325
  %v1336 = vsub.f32 %v1320, %v1328
  %v1337 = vsub.f32 %v1321, %v1331
  %v1338 = vsub.f32 %v1322, %v1334
  %v1339 = vmul.f32 %v1335, 1.442695
  %v1340 = vpow.pop %v1339
  %v1341 = vmul.f32 %v1336, 1.442695
  %v1342 = vpow.pop %v1341
  %v1343 = vmul.f32 %v1337, 1.442695
  %v1344 = vpow.pop %v1343
  %v1345 = vmul.f32 %v1338, 1.442695
  %v1346 = vpow.pop %v1345
  %v1347 = vsel %vm189, %v1340, 0.0
  %1348 = vadd.xlane.f32.xlu0 %v1347
  %v1349 = vpop.xlane.xlu0 %1348
  %v1350 = vsel %vm189, %v1342, 0.0
  %1351 = vadd.xlane.f32.xlu0 %v1350
  %v1352 = vpop.xlane.xlu0 %1351
  %v1353 = vsel %vm189, %v1344, 0.0
  %1354 = vadd.xlane.f32.xlu0 %v1353
  %v1355 = vpop.xlane.xlu0 %1354
  %v1356 = vsel %vm189, %v1346, 0.0
  %1357 = vadd.xlane.f32.xlu0 %v1356
  %v1358 = vpop.xlane.xlu0 %1357
  %v1359 = vrcp.pop %v1349
  %v1360 = vrcp.pop %v1352
  %v1361 = vrcp.pop %v1355
  %v1362 = vrcp.pop %v1358
  %v1363 = vmul.f32 %v1340, %v1359
  %v1364 = vmul.f32 %v1342, %v1360
  %v1365 = vmul.f32 %v1344, %v1361
  %v1366 = vmul.f32 %v1346, %v1362
  %v1367 = vpack.c.bf16 %v1363, %v1363
  %v1368 = vpack.c.bf16 %v1364, %v1364
  %v1369 = vpack.c.bf16 %v1365, %v1365
  %v1370 = vpack.c.bf16 %v1366, %v1366
  %v1373 = vunpack.c.l.b16 %v1367
  %v1374 = vunpack.c.l.b16 %v1368
  %v1375 = vpack.c.b16 %v1374, %v1373
  %1376 = vrot.lane.b32.xlu0 %v130, 40
  %v1377 = vpop.permute.xlu0 %1376
  %v1380 = vsel %vm189, %v1375, 0
  %1382 = vmatpush.bf16.msra.mxu0 0
  %1383 = vmatpush.bf16.msra.mxu0 0
  %1384 = vmatpush.bf16.msra.mxu0 0
  %1385 = vmatpush.bf16.msra.mxu0 0
  %1386 = vmatpush.bf16.msra.mxu0 0
  %1387 = vmatpush.bf16.msra.mxu0 0
  %1388 = vmatpush.bf16.msra.mxu0 0
  %1389 = vmatpush.bf16.msra.mxu0 %v1377
  %1390 = vmatmul.bf16.gmra.mxu0 %v1380
  %v1391 = vpop.f32.mrf.mxu0
  %v1392 = vadd.f32 0.0, %v1391
  %v1393 = vpop.f32.mrf.mxu0
  %v1394 = vadd.f32 0.0, %v1393
  %1395 = vdwg.mxu0
  %v1398 = vunpack.c.l.b16 %v1369
  %v1399 = vunpack.c.l.b16 %v1370
  %v1400 = vpack.c.b16 %v1399, %v1398
  %1401 = vrot.lane.b32.xlu0 %v158, 40
  %v1402 = vpop.permute.xlu0 %1401
  %v1405 = vsel %vm189, %v1400, 0
  %1407 = vmatpush.bf16.msra.mxu0 0
  %1408 = vmatpush.bf16.msra.mxu0 0
  %1409 = vmatpush.bf16.msra.mxu0 0
  %1410 = vmatpush.bf16.msra.mxu0 0
  %1411 = vmatpush.bf16.msra.mxu0 0
  %1412 = vmatpush.bf16.msra.mxu0 0
  %1413 = vmatpush.bf16.msra.mxu0 0
  %1414 = vmatpush.bf16.msra.mxu0 %v1402
  %1415 = vmatmul.bf16.gmra.mxu0 %v1405
  %v1416 = vpop.f32.mrf.mxu0
  %v1417 = vadd.f32 0.0, %v1416
  %v1418 = vpop.f32.mrf.mxu0
  %v1419 = vadd.f32 0.0, %v1418
  %1420 = vdwg.mxu0
  %v1421 = vpack.c.bf16 %v1394, %v1392
  %v1422 = vpack.c.bf16 %v1419, %v1417
  %v1424 = vsel %vm133, %v1421, 0
  %v1427 = vsel %vm133, %v1422, 0
  %v1430 = vsel %vm456, %v121, 0
  %1432 = vmatpush.bf16.msra.mxu0 0
  %1433 = vmatpush.bf16.msra.mxu0 0
  %1434 = vmatpush.bf16.msra.mxu0 0
  %1435 = vmatpush.bf16.msra.mxu0 0
  %1436 = vmatpush.bf16.msra.mxu0 0
  %1437 = vmatpush.bf16.msra.mxu0 0
  %1438 = vmatpush.bf16.msra.mxu0 0
  %1439 = vmatpush.bf16.msra.mxu0 %v1430
  %1440 = vmatmul.bf16.gmra.mxu0 %v1424
  %v1441 = vpop.f32.mrf.mxu0
  %v1442 = vadd.f32 0.0, %v1441
  %v1443 = vpop.f32.mrf.mxu0
  %v1444 = vadd.f32 0.0, %v1443
  %1445 = vmatmul.bf16.gmra.mxu0 %v1427
  %v1446 = vpop.f32.mrf.mxu0
  %v1447 = vadd.f32 0.0, %v1446
  %v1448 = vpop.f32.mrf.mxu0
  %v1449 = vadd.f32 0.0, %v1448
  %1450 = vdwg.mxu0
  %v1451 = vadd.f32 %v1263, %v1442
  %v1452 = vadd.f32 %v1264, %v1444
  %v1453 = vadd.f32 %v1265, %v1447
  %v1454 = vadd.f32 %v1266, %v1449
  %1455 = vrot.lane.b32.xlu0 %v130, 100
  %v1456 = vpop.permute.xlu0 %1455
  %1457 = vrot.lane.b32.xlu0 %v130, 68
  %v1458 = vpop.permute.xlu0 %1457
  %v1460 = vsel %vm133, %v1456, 0
  %v1463 = vsel %vm133, %v1458, 0
  %1465 = vmatpush.bf16.xpose.msra.mxu0 0
  %1466 = vmatpush.bf16.xpose.msra.mxu0 0
  %1467 = vmatpush.bf16.xpose.msra.mxu0 0
  %1468 = vmatpush.bf16.xpose.msra.mxu0 0
  %1469 = vmatpush.bf16.xpose.msra.mxu0 0
  %1470 = vmatpush.bf16.xpose.msra.mxu0 0
  %1471 = vmatpush.bf16.xpose.msra.mxu0 0
  %1472 = vmatpush.bf16.xpose.msra.mxu0 %v1463
  %1473 = vmatmul.bf16.gmra.mxu0 %v1460
  %v1474 = vpop.f32.mrf.mxu0
  %v1475 = vadd.f32 0.0, %v1474
  %v1476 = vpop.f32.mrf.mxu0
  %v1477 = vadd.f32 0.0, %v1476
  %1478 = vdwg.mxu0
  %1479 = vrot.lane.b32.xlu0 %v158, 100
  %v1480 = vpop.permute.xlu0 %1479
  %1481 = vrot.lane.b32.xlu0 %v158, 68
  %v1482 = vpop.permute.xlu0 %1481
  %v1484 = vsel %vm133, %v1480, 0
  %v1487 = vsel %vm133, %v1482, 0
  %1489 = vmatpush.bf16.xpose.msra.mxu0 0
  %1490 = vmatpush.bf16.xpose.msra.mxu0 0
  %1491 = vmatpush.bf16.xpose.msra.mxu0 0
  %1492 = vmatpush.bf16.xpose.msra.mxu0 0
  %1493 = vmatpush.bf16.xpose.msra.mxu0 0
  %1494 = vmatpush.bf16.xpose.msra.mxu0 0
  %1495 = vmatpush.bf16.xpose.msra.mxu0 0
  %1496 = vmatpush.bf16.xpose.msra.mxu0 %v1487
  %1497 = vmatmul.bf16.gmra.mxu0 %v1484
  %v1498 = vpop.f32.mrf.mxu0
  %v1499 = vadd.f32 0.0, %v1498
  %v1500 = vpop.f32.mrf.mxu0
  %v1501 = vadd.f32 0.0, %v1500
  %1502 = vdwg.mxu0
  %v1503 = vmul.f32 %v1475, 0.5
  %v1504 = vmul.f32 %v1477, 0.5
  %v1505 = vmul.f32 %v1499, 0.5
  %v1506 = vmul.f32 %v1501, 0.5
  %v1507 = vadd.f32 %v1503, %v116
  %v1508 = vadd.f32 %v1504, %v117
  %v1509 = vadd.f32 %v1505, %v116
  %v1510 = vadd.f32 %v1506, %v117
  %v1511 = vsel %vm189, %v1507, -inf
  %1512 = vmax.xlane.f32.xlu0 %v1511
  %v1513 = vpop.xlane.xlu0 %1512
  %v1514 = vsel %vm189, %v1508, -inf
  %1515 = vmax.xlane.f32.xlu0 %v1514
  %v1516 = vpop.xlane.xlu0 %1515
  %v1517 = vsel %vm189, %v1509, -inf
  %1518 = vmax.xlane.f32.xlu0 %v1517
  %v1519 = vpop.xlane.xlu0 %1518
  %v1520 = vsel %vm189, %v1510, -inf
  %1521 = vmax.xlane.f32.xlu0 %v1520
  %v1522 = vpop.xlane.xlu0 %1521
  %v1523 = vsub.f32 %v1507, %v1513
  %v1524 = vsub.f32 %v1508, %v1516
  %v1525 = vsub.f32 %v1509, %v1519
  %v1526 = vsub.f32 %v1510, %v1522
  %v1527 = vmul.f32 %v1523, 1.442695
  %v1528 = vpow.pop %v1527
  %v1529 = vmul.f32 %v1524, 1.442695
  %v1530 = vpow.pop %v1529
  %v1531 = vmul.f32 %v1525, 1.442695
  %v1532 = vpow.pop %v1531
  %v1533 = vmul.f32 %v1526, 1.442695
  %v1534 = vpow.pop %v1533
  %v1535 = vsel %vm189, %v1528, 0.0
  %1536 = vadd.xlane.f32.xlu0 %v1535
  %v1537 = vpop.xlane.xlu0 %1536
  %v1538 = vsel %vm189, %v1530, 0.0
  %1539 = vadd.xlane.f32.xlu0 %v1538
  %v1540 = vpop.xlane.xlu0 %1539
  %v1541 = vsel %vm189, %v1532, 0.0
  %1542 = vadd.xlane.f32.xlu0 %v1541
  %v1543 = vpop.xlane.xlu0 %1542
  %v1544 = vsel %vm189, %v1534, 0.0
  %1545 = vadd.xlane.f32.xlu0 %v1544
  %v1546 = vpop.xlane.xlu0 %1545
  %v1547 = vrcp.pop %v1537
  %v1548 = vrcp.pop %v1540
  %v1549 = vrcp.pop %v1543
  %v1550 = vrcp.pop %v1546
  %v1551 = vmul.f32 %v1528, %v1547
  %v1552 = vmul.f32 %v1530, %v1548
  %v1553 = vmul.f32 %v1532, %v1549
  %v1554 = vmul.f32 %v1534, %v1550
  %v1555 = vpack.c.bf16 %v1551, %v1551
  %v1556 = vpack.c.bf16 %v1552, %v1552
  %v1557 = vpack.c.bf16 %v1553, %v1553
  %v1558 = vpack.c.bf16 %v1554, %v1554
  %v1561 = vunpack.c.l.b16 %v1555
  %v1562 = vunpack.c.l.b16 %v1556
  %v1563 = vpack.c.b16 %v1562, %v1561
  %1564 = vrot.lane.b32.xlu0 %v130, 36
  %v1565 = vpop.permute.xlu0 %1564
  %v1568 = vsel %vm189, %v1563, 0
  %1570 = vmatpush.bf16.msra.mxu0 0
  %1571 = vmatpush.bf16.msra.mxu0 0
  %1572 = vmatpush.bf16.msra.mxu0 0
  %1573 = vmatpush.bf16.msra.mxu0 0
  %1574 = vmatpush.bf16.msra.mxu0 0
  %1575 = vmatpush.bf16.msra.mxu0 0
  %1576 = vmatpush.bf16.msra.mxu0 0
  %1577 = vmatpush.bf16.msra.mxu0 %v1565
  %1578 = vmatmul.bf16.gmra.mxu0 %v1568
  %v1579 = vpop.f32.mrf.mxu0
  %v1580 = vadd.f32 0.0, %v1579
  %v1581 = vpop.f32.mrf.mxu0
  %v1582 = vadd.f32 0.0, %v1581
  %1583 = vdwg.mxu0
  %v1586 = vunpack.c.l.b16 %v1557
  %v1587 = vunpack.c.l.b16 %v1558
  %v1588 = vpack.c.b16 %v1587, %v1586
  %1589 = vrot.lane.b32.xlu0 %v158, 36
  %v1590 = vpop.permute.xlu0 %1589
  %v1593 = vsel %vm189, %v1588, 0
  %1595 = vmatpush.bf16.msra.mxu0 0
  %1596 = vmatpush.bf16.msra.mxu0 0
  %1597 = vmatpush.bf16.msra.mxu0 0
  %1598 = vmatpush.bf16.msra.mxu0 0
  %1599 = vmatpush.bf16.msra.mxu0 0
  %1600 = vmatpush.bf16.msra.mxu0 0
  %1601 = vmatpush.bf16.msra.mxu0 0
  %1602 = vmatpush.bf16.msra.mxu0 %v1590
  %1603 = vmatmul.bf16.gmra.mxu0 %v1593
  %v1604 = vpop.f32.mrf.mxu0
  %v1605 = vadd.f32 0.0, %v1604
  %v1606 = vpop.f32.mrf.mxu0
  %v1607 = vadd.f32 0.0, %v1606
  %1608 = vdwg.mxu0
  %v1609 = vpack.c.bf16 %v1582, %v1580
  %v1610 = vpack.c.bf16 %v1607, %v1605
  %v1612 = vunpack.c.l.b16 %v121
  %v1613 = vpack.c.b16 %v1612, %v1612
  %v1614 = vrot.slane %v1613, 2
  %v1616 = vsel %vm133, %v1609, 0
  %v1619 = vsel %vm133, %v1610, 0
  %v1622 = vsel %vm456, %v1614, 0
  %1624 = vmatpush.bf16.msra.mxu0 0
  %1625 = vmatpush.bf16.msra.mxu0 0
  %1626 = vmatpush.bf16.msra.mxu0 0
  %1627 = vmatpush.bf16.msra.mxu0 0
  %1628 = vmatpush.bf16.msra.mxu0 0
  %1629 = vmatpush.bf16.msra.mxu0 0
  %1630 = vmatpush.bf16.msra.mxu0 0
  %1631 = vmatpush.bf16.msra.mxu0 %v1622
  %1632 = vmatmul.bf16.gmra.mxu0 %v1616
  %v1633 = vpop.f32.mrf.mxu0
  %v1634 = vadd.f32 0.0, %v1633
  %v1635 = vpop.f32.mrf.mxu0
  %v1636 = vadd.f32 0.0, %v1635
  %1637 = vmatmul.bf16.gmra.mxu0 %v1619
  %v1638 = vpop.f32.mrf.mxu0
  %v1639 = vadd.f32 0.0, %v1638
  %v1640 = vpop.f32.mrf.mxu0
  %v1641 = vadd.f32 0.0, %v1640
  %1642 = vdwg.mxu0
  %v1643 = vadd.f32 %v1451, %v1634
  %v1644 = vadd.f32 %v1452, %v1636
  %v1645 = vadd.f32 %v1453, %v1639
  %v1646 = vadd.f32 %v1454, %v1641
  %v1647 = vld [vmem:[%s4] sm:$0x1]
  %v1649 = vperm.slane %v1647, 0
  %v1651 = vadd.f32 %v1643, %v1649
  %v1652 = vadd.f32 %v1644, %v1649
  %v1653 = vadd.f32 %v1645, %v1649
  %v1654 = vadd.f32 %v1646, %v1649
  %v1655 = vld [vmem:[%s5] sm:$0x1]
  %v1656 = vld [vmem:[%s6] sm:$0x1]
  %v1657 = vsel %vm88, %v1651, 0.0
  %1658 = vadd.xlane.f32.xlu0 %v1657
  %v1659 = vpop.xlane.xlu0 %1658
  %v1660 = vsel %vm88, %v1652, 0.0
  %1661 = vadd.xlane.f32.xlu0 %v1660
  %v1662 = vpop.xlane.xlu0 %1661
  %v1663 = vsel %vm88, %v1653, 0.0
  %1664 = vadd.xlane.f32.xlu0 %v1663
  %v1665 = vpop.xlane.xlu0 %1664
  %v1666 = vsel %vm88, %v1654, 0.0
  %1667 = vadd.xlane.f32.xlu0 %v1666
  %v1668 = vpop.xlane.xlu0 %1667
  %v1669 = vrcp.pop 32.0
  %v1670 = vmul.f32 32.0, %v1669
  %v1671 = vsub.f32 1.0, %v1670
  %v1672 = vmul.f32 %v1669, %v1671
  %v1673 = vadd.f32 %v1669, %v1672
  %vm1674 = vweird.f32 %v1669
  %v1675 = vsel %vm1674, %v1669, %v1673
  %v1676 = vmul.f32 %v1659, %v1675
  %v1677 = vmul.f32 %v1662, %v1675
  %v1678 = vmul.f32 %v1665, %v1675
  %v1679 = vmul.f32 %v1668, %v1675
  %v1680 = vsub.f32 %v1651, %v1676
  %v1681 = vsub.f32 %v1652, %v1677
  %v1682 = vsub.f32 %v1653, %v1678
  %v1683 = vsub.f32 %v1654, %v1679
  %v1684 = vmul.f32 %v1680, %v1680
  %v1685 = vmul.f32 %v1681, %v1681
  %v1686 = vmul.f32 %v1682, %v1682
  %v1687 = vmul.f32 %v1683, %v1683
  %v1688 = vsel %vm88, %v1684, 0.0
  %1689 = vadd.xlane.f32.xlu0 %v1688
  %v1690 = vpop.xlane.xlu0 %1689
  %v1691 = vsel %vm88, %v1685, 0.0
  %1692 = vadd.xlane.f32.xlu0 %v1691
  %v1693 = vpop.xlane.xlu0 %1692
  %v1694 = vsel %vm88, %v1686, 0.0
  %1695 = vadd.xlane.f32.xlu0 %v1694
  %v1696 = vpop.xlane.xlu0 %1695
  %v1697 = vsel %vm88, %v1687, 0.0
  %1698 = vadd.xlane.f32.xlu0 %v1697
  %v1699 = vpop.xlane.xlu0 %1698
  %v1700 = vmul.f32 %v1690, %v1675
  %v1701 = vmul.f32 %v1693, %v1675
  %v1702 = vmul.f32 %v1696, %v1675
  %v1703 = vmul.f32 %v1699, %v1675
  %v1704 = vadd.f32 %v1700, 1e-05
  %v1705 = vadd.f32 %v1701, 1e-05
  %v1706 = vadd.f32 %v1702, 1e-05
  %v1707 = vadd.f32 %v1703, 1e-05
  %v1708 = vrsqrt.pop %v1704
  %v1709 = vmul.f32 %v1708, %v1704
  %v1710 = vmul.f32 %v1709, %v1708
  %v1711 = vmul.f32 0.5, %v1710
  %v1712 = vsub.f32 1.5, %v1711
  %v1713 = vmul.f32 %v1708, %v1712
  %vm1714 = vweird.f32 %v1704
  %vm1715 = vweird.f32 %v1708
  %vm1716 = vmor %vm1714, %vm1715
  %v1717 = vsel %vm1716, %v1708, %v1713
  %v1718 = vrsqrt.pop %v1705
  %v1719 = vmul.f32 %v1718, %v1705
  %v1720 = vmul.f32 %v1719, %v1718
  %v1721 = vmul.f32 0.5, %v1720
  %v1722 = vsub.f32 1.5, %v1721
  %v1723 = vmul.f32 %v1718, %v1722
  %vm1724 = vweird.f32 %v1705
  %vm1725 = vweird.f32 %v1718
  %vm1726 = vmor %vm1724, %vm1725
  %v1727 = vsel %vm1726, %v1718, %v1723
  %v1728 = vrsqrt.pop %v1706
  %v1729 = vmul.f32 %v1728, %v1706
  %v1730 = vmul.f32 %v1729, %v1728
  %v1731 = vmul.f32 0.5, %v1730
  %v1732 = vsub.f32 1.5, %v1731
  %v1733 = vmul.f32 %v1728, %v1732
  %vm1734 = vweird.f32 %v1706
  %vm1735 = vweird.f32 %v1728
  %vm1736 = vmor %vm1734, %vm1735
  %v1737 = vsel %vm1736, %v1728, %v1733
  %v1738 = vrsqrt.pop %v1707
  %v1739 = vmul.f32 %v1738, %v1707
  %v1740 = vmul.f32 %v1739, %v1738
  %v1741 = vmul.f32 0.5, %v1740
  %v1742 = vsub.f32 1.5, %v1741
  %v1743 = vmul.f32 %v1738, %v1742
  %vm1744 = vweird.f32 %v1707
  %vm1745 = vweird.f32 %v1738
  %vm1746 = vmor %vm1744, %vm1745
  %v1747 = vsel %vm1746, %v1738, %v1743
  %v1748 = vmul.f32 %v1680, %v1717
  %v1749 = vmul.f32 %v1681, %v1727
  %v1750 = vmul.f32 %v1682, %v1737
  %v1751 = vmul.f32 %v1683, %v1747
  %v1753 = vperm.slane %v1655, 0
  %v1755 = vmul.f32 %v1748, %v1753
  %v1756 = vmul.f32 %v1749, %v1753
  %v1757 = vmul.f32 %v1750, %v1753
  %v1758 = vmul.f32 %v1751, %v1753
  %v1760 = vperm.slane %v1656, 0
  %v1762 = vadd.f32 %v1755, %v1760
  %v1763 = vadd.f32 %v1756, %v1760
  %v1764 = vadd.f32 %v1757, %v1760
  %v1765 = vadd.f32 %v1758, %v1760
  %v1766 = vpack.c.bf16 %v1763, %v1762
  %v1767 = vpack.c.bf16 %v1765, %v1764
  %v1768 = vld [vmem:[%s8] sm:$0xf]
  %v1769 = vld [vmem:[%s8 + $0x4] sm:$0xf]
  %v1770 = vld [vmem:[%s8 + $0x8] sm:$0xf]
  %v1771 = vld [vmem:[%s8 + $0xc] sm:$0xf]
  %v1772 = vld [vmem:[%s9] sm:$0x1]
  %v1774 = vperm.slane %v1772, 0
  %v1780 = vunpack.c.l.b16 %v1768
  %v1781 = vunpack.c.l.b16 %v1769
  %v1782 = vunpack.c.l.b16 %v1770
  %v1783 = vunpack.c.l.b16 %v1771
  %v1784 = vpack.c.b16 %v1781, %v1780
  %v1785 = vpack.c.b16 %v1783, %v1782
  %v1789 = vsel %vm88, %v1766, 0
  %v1792 = vsel %vm88, %v1767, 0
  %1794 = vmatpush.bf16.msra.mxu0 0
  %1795 = vmatpush.bf16.msra.mxu0 0
  %1796 = vmatpush.bf16.msra.mxu0 0
  %1797 = vmatpush.bf16.msra.mxu0 0
  %1798 = vmatpush.bf16.msra.mxu0 0
  %1799 = vmatpush.bf16.msra.mxu0 0
  %1800 = vmatpush.bf16.msra.mxu0 %v1785
  %1801 = vmatpush.bf16.msra.mxu0 %v1784
  %1802 = vmatmul.bf16.gmra.mxu0 %v1789
  %v1803 = vpop.f32.mrf.mxu0
  %v1804 = vadd.f32 %v1774, %v1803
  %v1805 = vpop.f32.mrf.mxu0
  %v1806 = vadd.f32 %v1774, %v1805
  %1807 = vmatmul.bf16.gmra.mxu0 %v1792
  %v1808 = vpop.f32.mrf.mxu0
  %v1809 = vadd.f32 %v1774, %v1808
  %v1810 = vpop.f32.mrf.mxu0
  %v1811 = vadd.f32 %v1774, %v1810
  %1812 = vdwg.mxu0
  %v1813 = vmax.f32 %v1804, 0.0
  %v1814 = vmax.f32 %v1806, 0.0
  %v1815 = vmax.f32 %v1809, 0.0
  %v1816 = vmax.f32 %v1811, 0.0
  %v1817 = vpack.c.bf16 %v1814, %v1813
  %v1818 = vpack.c.bf16 %v1816, %v1815
  %v1819 = vld [vmem:[%s10] sm:$0xf]
  %v1820 = vld [vmem:[%s10 + $0x4] sm:$0xf]
  %v1821 = vld [vmem:[%s10 + $0x8] sm:$0xf]
  %v1822 = vld [vmem:[%s10 + $0xc] sm:$0xf]
  %v1823 = vld [vmem:[%s10 + $0x10] sm:$0xf]
  %v1824 = vld [vmem:[%s10 + $0x14] sm:$0xf]
  %v1825 = vld [vmem:[%s10 + $0x18] sm:$0xf]
  %v1826 = vld [vmem:[%s10 + $0x1c] sm:$0xf]
  %v1827 = vld [vmem:[%s11] sm:$0x1]
  %v1829 = vperm.slane %v1827, 0
  %v1839 = vunpack.c.l.b16 %v1819
  %v1840 = vunpack.c.l.b16 %v1820
  %v1841 = vunpack.c.l.b16 %v1821
  %v1842 = vunpack.c.l.b16 %v1822
  %v1843 = vunpack.c.l.b16 %v1823
  %v1844 = vunpack.c.l.b16 %v1824
  %v1845 = vunpack.c.l.b16 %v1825
  %v1846 = vunpack.c.l.b16 %v1826
  %v1847 = vpack.c.b16 %v1840, %v1839
  %v1848 = vpack.c.b16 %v1842, %v1841
  %v1849 = vpack.c.b16 %v1844, %v1843
  %v1850 = vpack.c.b16 %v1846, %v1845
  %vm1855 = vcmask 523264
  %v1857 = vsel %vm1855, %v1817, 0
  %v1860 = vsel %vm1855, %v1818, 0
  %1862 = vmatpush.bf16.msra.mxu0 0
  %1863 = vmatpush.bf16.msra.mxu0 0
  %1864 = vmatpush.bf16.msra.mxu0 0
  %1865 = vmatpush.bf16.msra.mxu0 0
  %1866 = vmatpush.bf16.msra.mxu0 %v1850
  %1867 = vmatpush.bf16.msra.mxu0 %v1849
  %1868 = vmatpush.bf16.msra.mxu0 %v1848
  %1869 = vmatpush.bf16.msra.mxu0 %v1847
  %1870 = vmatmul.bf16.gmra.mxu0 %v1857
  %v1871 = vpop.f32.mrf.mxu0
  %v1872 = vadd.f32 %v1829, %v1871
  %v1873 = vpop.f32.mrf.mxu0
  %v1874 = vadd.f32 %v1829, %v1873
  %1875 = vmatmul.bf16.gmra.mxu0 %v1860
  %v1876 = vpop.f32.mrf.mxu0
  %v1877 = vadd.f32 %v1829, %v1876
  %v1878 = vpop.f32.mrf.mxu0
  %v1879 = vadd.f32 %v1829, %v1878
  %1880 = vdwg.mxu0
  %v1881 = vld [vmem:[%s12] sm:$0x1]
  %v1882 = vld [vmem:[%s13] sm:$0x1]
  %v1883 = vsel %vm88, %v1872, 0.0
  %1884 = vadd.xlane.f32.xlu0 %v1883
  %v1885 = vpop.xlane.xlu0 %1884
  %v1886 = vsel %vm88, %v1874, 0.0
  %1887 = vadd.xlane.f32.xlu0 %v1886
  %v1888 = vpop.xlane.xlu0 %1887
  %v1889 = vsel %vm88, %v1877, 0.0
  %1890 = vadd.xlane.f32.xlu0 %v1889
  %v1891 = vpop.xlane.xlu0 %1890
  %v1892 = vsel %vm88, %v1879, 0.0
  %1893 = vadd.xlane.f32.xlu0 %v1892
  %v1894 = vpop.xlane.xlu0 %1893
  %v1895 = vmul.f32 %v1885, %v1675
  %v1896 = vmul.f32 %v1888, %v1675
  %v1897 = vmul.f32 %v1891, %v1675
  %v1898 = vmul.f32 %v1894, %v1675
  %v1899 = vsub.f32 %v1872, %v1895
  %v1900 = vsub.f32 %v1874, %v1896
  %v1901 = vsub.f32 %v1877, %v1897
  %v1902 = vsub.f32 %v1879, %v1898
  %v1903 = vmul.f32 %v1899, %v1899
  %v1904 = vmul.f32 %v1900, %v1900
  %v1905 = vmul.f32 %v1901, %v1901
  %v1906 = vmul.f32 %v1902, %v1902
  %v1907 = vsel %vm88, %v1903, 0.0
  %1908 = vadd.xlane.f32.xlu0 %v1907
  %v1909 = vpop.xlane.xlu0 %1908
  %v1910 = vsel %vm88, %v1904, 0.0
  %1911 = vadd.xlane.f32.xlu0 %v1910
  %v1912 = vpop.xlane.xlu0 %1911
  %v1913 = vsel %vm88, %v1905, 0.0
  %1914 = vadd.xlane.f32.xlu0 %v1913
  %v1915 = vpop.xlane.xlu0 %1914
  %v1916 = vsel %vm88, %v1906, 0.0
  %1917 = vadd.xlane.f32.xlu0 %v1916
  %v1918 = vpop.xlane.xlu0 %1917
  %v1919 = vmul.f32 %v1909, %v1675
  %v1920 = vmul.f32 %v1912, %v1675
  %v1921 = vmul.f32 %v1915, %v1675
  %v1922 = vmul.f32 %v1918, %v1675
  %v1923 = vadd.f32 %v1919, 1e-05
  %v1924 = vadd.f32 %v1920, 1e-05
  %v1925 = vadd.f32 %v1921, 1e-05
  %v1926 = vadd.f32 %v1922, 1e-05
  %v1927 = vrsqrt.pop %v1923
  %v1928 = vmul.f32 %v1927, %v1923
  %v1929 = vmul.f32 %v1928, %v1927
  %v1930 = vmul.f32 0.5, %v1929
  %v1931 = vsub.f32 1.5, %v1930
  %v1932 = vmul.f32 %v1927, %v1931
  %vm1933 = vweird.f32 %v1923
  %vm1934 = vweird.f32 %v1927
  %vm1935 = vmor %vm1933, %vm1934
  %v1936 = vsel %vm1935, %v1927, %v1932
  %v1937 = vrsqrt.pop %v1924
  %v1938 = vmul.f32 %v1937, %v1924
  %v1939 = vmul.f32 %v1938, %v1937
  %v1940 = vmul.f32 0.5, %v1939
  %v1941 = vsub.f32 1.5, %v1940
  %v1942 = vmul.f32 %v1937, %v1941
  %vm1943 = vweird.f32 %v1924
  %vm1944 = vweird.f32 %v1937
  %vm1945 = vmor %vm1943, %vm1944
  %v1946 = vsel %vm1945, %v1937, %v1942
  %v1947 = vrsqrt.pop %v1925
  %v1948 = vmul.f32 %v1947, %v1925
  %v1949 = vmul.f32 %v1948, %v1947
  %v1950 = vmul.f32 0.5, %v1949
  %v1951 = vsub.f32 1.5, %v1950
  %v1952 = vmul.f32 %v1947, %v1951
  %vm1953 = vweird.f32 %v1925
  %vm1954 = vweird.f32 %v1947
  %vm1955 = vmor %vm1953, %vm1954
  %v1956 = vsel %vm1955, %v1947, %v1952
  %v1957 = vrsqrt.pop %v1926
  %v1958 = vmul.f32 %v1957, %v1926
  %v1959 = vmul.f32 %v1958, %v1957
  %v1960 = vmul.f32 0.5, %v1959
  %v1961 = vsub.f32 1.5, %v1960
  %v1962 = vmul.f32 %v1957, %v1961
  %vm1963 = vweird.f32 %v1926
  %vm1964 = vweird.f32 %v1957
  %vm1965 = vmor %vm1963, %vm1964
  %v1966 = vsel %vm1965, %v1957, %v1962
  %v1967 = vmul.f32 %v1899, %v1936
  %v1968 = vmul.f32 %v1900, %v1946
  %v1969 = vmul.f32 %v1901, %v1956
  %v1970 = vmul.f32 %v1902, %v1966
  %v1972 = vperm.slane %v1881, 0
  %v1974 = vmul.f32 %v1967, %v1972
  %v1975 = vmul.f32 %v1968, %v1972
  %v1976 = vmul.f32 %v1969, %v1972
  %v1977 = vmul.f32 %v1970, %v1972
  %v1979 = vperm.slane %v1882, 0
  %v1981 = vadd.f32 %v1974, %v1979
  %v1982 = vadd.f32 %v1975, %v1979
  %v1983 = vadd.f32 %v1976, %v1979
  %v1984 = vadd.f32 %v1977, %v1979
  %v1985 = vpack.c.bf16 %v1982, %v1981
  %v1986 = vpack.c.bf16 %v1984, %v1983
  %v1987 = vld [vmem:[%s14] sm:$0xf]
  %v1988 = vld [vmem:[%s14 + $0x4] sm:$0xf]
  %v1989 = vld [vmem:[%s14 + $0x8] sm:$0xf]
  %v1990 = vld [vmem:[%s14 + $0xc] sm:$0xf]
  %v1991 = vld [vmem:[%s15] sm:$0x1]
  %v1993 = vperm.slane %v1991, 0
  %v1999 = vunpack.c.l.b16 %v1987
  %v2000 = vunpack.c.l.b16 %v1988
  %v2001 = vunpack.c.l.b16 %v1989
  %v2002 = vunpack.c.l.b16 %v1990
  %v2003 = vpack.c.b16 %v2000, %v1999
  %v2004 = vpack.c.b16 %v2002, %v2001
  %v2008 = vsel %vm88, %v1985, 0
  %v2011 = vsel %vm88, %v1986, 0
  %2013 = vmatpush.bf16.msra.mxu0 0
  %2014 = vmatpush.bf16.msra.mxu0 0
  %2015 = vmatpush.bf16.msra.mxu0 0
  %2016 = vmatpush.bf16.msra.mxu0 0
  %2017 = vmatpush.bf16.msra.mxu0 0
  %2018 = vmatpush.bf16.msra.mxu0 0
  %2019 = vmatpush.bf16.msra.mxu0 %v2004
  %2020 = vmatpush.bf16.msra.mxu0 %v2003
  %2021 = vmatmul.bf16.gmra.mxu0 %v2008
  %v2022 = vpop.f32.mrf.mxu0
  %v2023 = vadd.f32 %v1993, %v2022
  %v2024 = vpop.f32.mrf.mxu0
  %v2025 = vadd.f32 %v1993, %v2024
  %2026 = vmatmul.bf16.gmra.mxu0 %v2011
  %v2027 = vpop.f32.mrf.mxu0
  %v2028 = vadd.f32 %v1993, %v2027
  %v2029 = vpop.f32.mrf.mxu0
  %v2030 = vadd.f32 %v1993, %v2029
  %2031 = vdwg.mxu0
  %2032 = vst.msk [vmem:[%s16] sm:$0xff] %vm133, %v2023
  %2033 = vst.msk [vmem:[%s16 + $0x8] sm:$0xff] %vm133, %v2025
  %2034 = vst.msk [vmem:[%s16 + $0x10] sm:$0xff] %vm133, %v2028
  %2035 = vst.msk [vmem:[%s16 + $0x18] sm:$0xff] %vm133, %v2030
  // Predicated region
  $region66: #{spatio_temporal_transformer_forward.3} parent=0 // pred_check
    _
  $region67: #{spatio_temporal_transformer_forward.3} parent=0 // pred_check_branch
    %2037 = sbr.rel (0) target = $region69
  $region68: #{spatio_temporal_transformer_forward.3} parent=0 // pred_region
    _
  $region69: #{spatio_temporal_transformer_forward.3} parent=0 // pred_fallthru
    _
  // Predicated region
  $region70: #{spatio_temporal_transformer_forward.3} parent=0 // pred_check
    _
  $region71: #{spatio_temporal_transformer_forward.3} parent=0 // pred_check_branch
    %2039 = sbr.rel (0) target = $region73
  $region72: #{spatio_temporal_transformer_forward.3} parent=0 // pred_region
    _
  $region73: #{spatio_temporal_transformer_forward.3} parent=0 // pred_fallthru
    _

</llo_original>
